<compile_context>
chip_gen: v5e
topology: v5e:2x2
jax: 0.10.0
libtpu: 0.0.40
codegen_flags: <defaults>
</compile_context>

<pallas_src>
import functools

import jax
import jax.numpy as jnp
from jax.experimental import pallas as pl
from jax.experimental.pallas import tpu as pltpu

LEAKY_SLOPE = 0.2
BN_EPS = 1e-5
KW = 4          # conv kernel size (kw=4 in the torch module)
PADW = 1        # conv padding  (padw=1 in the torch module)


def _round_up(x, m):
    return (x + m - 1) // m * m


# ----------------------------------------------------------------------------
# Pallas kernels
# ----------------------------------------------------------------------------
def _gemm_bias_act_kernel(a_ref, b_ref, bias_ref, o_ref, stats_ref, *,
                          apply_leaky, compute_stats, m_true, tm):
    """(M,K)-tiled GEMM; o_ref (f32) is the accumulator, resident across K.

    Epilogue at k == last: bias add, optional LeakyReLU(0.2), and (for BN
    layers) per-channel partial sum / sum-of-squares with out-of-range rows
    of the last ragged M tile masked out.
    """
    m = pl.program_id(0)
    k = pl.program_id(1)

    @pl.when(k == 0)
    def _():
        o_ref[...] = jnp.zeros_like(o_ref)

    o_ref[...] += jnp.dot(a_ref[...], b_ref[...],
                          preferred_element_type=jnp.float32)

    @pl.when(k == pl.num_programs(1) - 1)
    def _():
        out = o_ref[...] + bias_ref[...]          # bias broadcast over rows
        if apply_leaky:
            out = jnp.where(out >= 0, out, out * LEAKY_SLOPE)
        o_ref[...] = out
        if compute_stats:
            rows = m * tm + jax.lax.broadcasted_iota(jnp.int32, out.shape, 0)
            v = jnp.where(rows < m_true, out, 0.0)     # mask ragged tail rows
            stats_ref[0:1, :] = jnp.sum(v, axis=0, keepdims=True)
            stats_ref[1:2, :] = jnp.sum(v * v, axis=0, keepdims=True)


def _scale_shift_lrelu_kernel(x_ref, scale_ref, shift_ref, o_ref):
    """Per-channel affine (BatchNorm folded into scale/shift) + LeakyReLU."""
    y = x_ref[...] * scale_ref[...] + shift_ref[...]
    o_ref[...] = jnp.where(y >= 0, y, y * LEAKY_SLOPE).astype(o_ref.dtype)


# ----------------------------------------------------------------------------
# Pallas wrappers
# ----------------------------------------------------------------------------
def _conv_gemm(cols, wmat, bias, cout, *, apply_leaky, compute_stats):
    """cols:[M,Kp](bf16) @ wmat:[Kp,cout](bf16) + bias, fused act / BN stats."""
    M, Kp = cols.shape
    tm = min(512, _round_up(M, 16))
    if Kp % 512 == 0:
        tk = 512
    elif Kp % 256 == 0:
        tk = 256
    else:
        tk = 128
    grid_m = pl.cdiv(M, tm)
    grid_k = Kp // tk

    bias2 = bias.astype(jnp.float32).reshape(1, cout)

    kernel = functools.partial(
        _gemm_bias_act_kernel, apply_leaky=apply_leaky,
        compute_stats=compute_stats, m_true=M, tm=tm)

    # Explicit VMEM budget: double-buffered bf16 A/B slabs + resident f32
    # output/stat blocks (+margin).  Well under every generation's limit.
    need = (2 * (tm * tk * 2 + tk * cout * 2)        # A, B double-buffered
            + 2 * (tm * cout * 4)                    # output block (+wb buffer)
            + 2 * (8 * cout * 4) + 2 * (cout * 4))   # stats + bias
    vmem_limit = int(min(max(2 * need, 16 << 20), 32 << 20))

    out, stats = pl.pallas_call(
        kernel,
        out_shape=(jax.ShapeDtypeStruct((M, cout), jnp.float32),
                   jax.ShapeDtypeStruct((grid_m * 8, cout), jnp.float32)),
        grid_spec=pltpu.PrefetchScalarGridSpec(
            num_scalar_prefetch=0,
            grid=(grid_m, grid_k),                   # K last => valid accum
            in_specs=[
                pl.BlockSpec((tm, tk), lambda m, k: (m, k)),
                pl.BlockSpec((tk, cout), lambda m, k: (k, 0)),
                pl.BlockSpec((1, cout), lambda m, k: (0, 0)),
            ],
            out_specs=[
                pl.BlockSpec((tm, cout), lambda m, k: (m, 0)),
                pl.BlockSpec((8, cout), lambda m, k: (m, 0)),
            ],
        ),
        compiler_params=pltpu.CompilerParams(
            dimension_semantics=("parallel", "arbitrary"),
            vmem_limit_bytes=vmem_limit),
    )(cols, wmat, bias2)
    return out, stats


def _bn_lrelu(x, stats, gamma, beta, out_dtype):
    """Finish BN batch statistics from fused partial sums, then apply
    scale/shift + LeakyReLU with an M-tiled elementwise kernel."""
    M, C = x.shape
    st = stats.reshape(-1, 8, C)                     # tiny: (grid_m, 8, C)
    s1 = jnp.sum(st[:, 0, :], axis=0)
    s2 = jnp.sum(st[:, 1, :], axis=0)
    mean = s1 / M
    var = jnp.maximum(s2 / M - mean * mean, 0.0)     # biased var (PyTorch train)
    scale = gamma / jnp.sqrt(var + BN_EPS)
    shift = beta - mean * scale

    tmb = min(1024, _round_up(M, 16))
    grid_m = pl.cdiv(M, tmb)
    return pl.pallas_call(
        _scale_shift_lrelu_kernel,
        out_shape=jax.ShapeDtypeStruct((M, C), out_dtype),
        grid_spec=pltpu.PrefetchScalarGridSpec(
            num_scalar_prefetch=0,
            grid=(grid_m,),
            in_specs=[
                pl.BlockSpec((tmb, C), lambda m: (m, 0)),
                pl.BlockSpec((1, C), lambda m: (0, 0)),
                pl.BlockSpec((1, C), lambda m: (0, 0)),
            ],
            out_specs=pl.BlockSpec((tmb, C), lambda m: (m, 0)),
        ),
        compiler_params=pltpu.CompilerParams(
            dimension_semantics=("parallel",)),
    )(x, scale.reshape(1, C).astype(jnp.float32),
      shift.reshape(1, C).astype(jnp.float32))


# ----------------------------------------------------------------------------
# im2col (glue — slices + one concat, emitted directly in bf16 with K padding)
# ----------------------------------------------------------------------------
def _im2col(x_nhwc, kh, kw, stride, pad, k_pad_to):
    # TODO(synk): fuse the patch gather into the GEMM kernel — the stride-2
    # shifted windows are not expressible with BlockSpec index_maps, they need
    # manual strided DMA from a VMEM-resident spatial tile.
    x = jnp.pad(x_nhwc, ((0, 0), (pad, pad), (pad, pad), (0, 0)))
    n, h, w, c = x.shape
    ho = (h - kh) // stride + 1
    wo = (w - kw) // stride + 1
    taps = []
    for i in range(kh):
        for j in range(kw):
            taps.append(x[:, i:i + stride * ho:stride,
                          j:j + stride * wo:stride, :].astype(jnp.bfloat16))
    k_true = kh * kw * c
    if k_pad_to > k_true:                            # K padding fused into concat
        taps.append(jnp.zeros((n, ho, wo, k_pad_to - k_true), jnp.bfloat16))
    cols = jnp.concatenate(taps, axis=-1)            # [N,Ho,Wo,Kp]
    return cols.reshape(n * ho * wo, k_pad_to), n, ho, wo


# ----------------------------------------------------------------------------
# Discriminator: parameter construction + forward
# ----------------------------------------------------------------------------
def build_params(key, input_nc, ndf=8, n_layers=3):
    """Mirrors NLayerDiscriminator.__init__ (BatchNorm2d norm layer, no sigmoid).

    Conv weights stored as [kh, kw, Cin, Cout] (== torch [Cout,Cin,kh,kw]
    permuted (2,3,1,0)), matching the im2col feature order.
    """
    specs = []
    specs.append(dict(cin=input_nc, cout=ndf, stride=2, bias=True, bn=False, leaky=True))
    nf_mult = 1
    for n in range(1, n_layers):
        nf_mult_prev = nf_mult
        nf_mult = min(2 ** n, 8)
        specs.append(dict(cin=ndf * nf_mult_prev, cout=ndf * nf_mult,
                          stride=2, bias=False, bn=True, leaky=True))
    nf_mult_prev = nf_mult
    nf_mult = min(2 ** n_layers, 8)
    specs.append(dict(cin=ndf * nf_mult_prev, cout=ndf * nf_mult,
                      stride=1, bias=False, bn=True, leaky=True))
    specs.append(dict(cin=ndf * nf_mult, cout=1,
                      stride=1, bias=True, bn=False, leaky=False))

    params = []
    for spec in specs:
        key, k_w, k_b, k_g, k_bt = jax.random.split(key, 5)
        w = 0.02 * jax.random.normal(k_w, (KW, KW, spec["cin"], spec["cout"]),
                                     jnp.float32)
        if spec["bias"]:
            b = 0.02 * jax.random.normal(k_b, (spec["cout"],), jnp.float32)
        else:
            b = jnp.zeros((spec["cout"],), jnp.float32)
        if spec["bn"]:
            gamma = 1.0 + 0.1 * jax.random.normal(k_g, (spec["cout"],), jnp.float32)
            beta = 0.1 * jax.random.normal(k_bt, (spec["cout"],), jnp.float32)
        else:
            gamma, beta = None, None
        params.append((spec, w, b, gamma, beta))
    return params


def discriminator_forward(x_nchw, params):
    x = jnp.transpose(x_nchw, (0, 2, 3, 1)).astype(jnp.float32)    # -> NHWC
    for spec, w, b, gamma, beta in params:
        cin, cout = spec["cin"], spec["cout"]
        kdim = KW * KW * cin
        kp = _round_up(kdim, 128)
        cols, n, ho, wo = _im2col(x, KW, KW, spec["stride"], PADW, kp)
        wmat = w.reshape(kdim, cout)
        if kp > kdim:
            wmat = jnp.pad(wmat, ((0, kp - kdim), (0, 0)))          # tiny
        wmat = wmat.astype(jnp.bfloat16)
        fuse_leaky = spec["leaky"] and not spec["bn"]
        out, stats = _conv_gemm(cols, wmat, b, cout,
                                apply_leaky=fuse_leaky,
                                compute_stats=spec["bn"])           # [M, Cout]
        if spec["bn"]:
            out = _bn_lrelu(out, stats, gamma, beta, out_dtype=jnp.bfloat16)
        x = out.reshape(n, ho, wo, cout)
    return jnp.transpose(x, (0, 3, 1, 2)).astype(jnp.float32)       # -> NCHW


if __name__ == "__main__":
    key = jax.random.PRNGKey(0)
    k_in, k_par = jax.random.split(key)

    # Small shapes consistent with the module (3 stride-2 convs + two k4/s1
    # convs need spatial >= 32 to produce a non-empty patch map).
    N, C_IN, H, W = 2, 4, 32, 32
    NDF, N_LAYERS = 8, 3

    x = jax.random.normal(k_in, (N, C_IN, H, W), jnp.float32)
    params = build_params(k_par, input_nc=C_IN, ndf=NDF, n_layers=N_LAYERS)

    y = jax.jit(lambda inp: discriminator_forward(inp, params))(x)
    jax.block_until_ready(y)
    assert y.shape == (N, 1, 2, 2), y.shape
    print("KERNEL_OK")
</pallas_src>

<mosaic_0001>
module attributes {stable_mosaic.version = 11 : i64} {
  func.func @_gemm_bias_act_kernel(%arg0: i32, %arg1: i32, %arg2: memref<512x128xbf16, #tpu.memory_space<vmem>>, %arg3: memref<128x8xbf16, #tpu.memory_space<vmem>>, %arg4: memref<1x8xf32, #tpu.memory_space<vmem>>, %arg5: memref<512x8xf32, #tpu.memory_space<vmem>>, %arg6: memref<8x8xf32, #tpu.memory_space<vmem>>) attributes {dimension_semantics = [#tpu.dimension_semantics<parallel>, #tpu.dimension_semantics<arbitrary>], iteration_bounds = array<i64: 1, 1>, scalar_prefetch = 0 : i64, scratch_operands = 0 : i64, tpu.core_type = #tpu.core_type<tc>, window_params = [{transform_indices = @transform_0, window_bounds = array<i64: 512, 128>}, {transform_indices = @transform_1, window_bounds = array<i64: 128, 8>}, {pipeline_mode = #tpu.pipeline_mode<synchronous>, transform_indices = @transform_2, window_bounds = array<i64: 1, 8>}, {transform_indices = @transform_3, window_bounds = array<i64: 512, 8>}, {transform_indices = @transform_4, window_bounds = array<i64: 8, 8>}]} {
    %c0_i32 = arith.constant 0 : i32
    %0 = arith.cmpi eq, %arg1, %c0_i32 : i32
    %1 = arith.extui %0 : i1 to i32
    %c0_i32_0 = arith.constant 0 : i32
    %2 = arith.cmpi ne, %1, %c0_i32_0 : i32
    scf.if %2 {
      %cst_10 = arith.constant 0.000000e+00 : f32
      %12 = vector.broadcast %cst_10 : f32 to vector<512x8xf32>
      %c0_11 = arith.constant 0 : index
      %c0_12 = arith.constant 0 : index
      %13 = vector.load %arg5[%c0_11, %c0_12] : memref<512x8xf32, #tpu.memory_space<vmem>>, vector<512x8xf32>
      tpu.vector_store %arg5[%c0_11, %c0_12], %12 {strides = array<i32>} : memref<512x8xf32, #tpu.memory_space<vmem>>, vector<512x8xf32>,
    } else {
    }
    %c0 = arith.constant 0 : index
    %c0_1 = arith.constant 0 : index
    %3 = vector.load %arg5[%c0, %c0_1] : memref<512x8xf32, #tpu.memory_space<vmem>>, vector<512x8xf32>
    %c0_2 = arith.constant 0 : index
    %c0_3 = arith.constant 0 : index
    %4 = vector.load %arg2[%c0_2, %c0_3] : memref<512x128xbf16, #tpu.memory_space<vmem>>, vector<512x128xbf16>
    %c0_4 = arith.constant 0 : index
    %c0_5 = arith.constant 0 : index
    %5 = vector.load %arg3[%c0_4, %c0_5] : memref<128x8xbf16, #tpu.memory_space<vmem>>, vector<128x8xbf16>
    %cst = arith.constant dense<0.000000e+00> : vector<512x8xf32>
    %6 = tpu.matmul %4, %5, %cst {dimension_numbers = #tpu.dot_dimension_numbers<[1], [0], [0], [1], [0, 0, 1, 1], [], []>} : vector<512x128xbf16>, vector<128x8xbf16>, vector<512x8xf32> -> vector<512x8xf32>
    %7 = arith.addf %3, %6 : vector<512x8xf32>
    %c0_6 = arith.constant 0 : index
    %c0_7 = arith.constant 0 : index
    %8 = vector.load %arg5[%c0_6, %c0_7] : memref<512x8xf32, #tpu.memory_space<vmem>>, vector<512x8xf32>
    tpu.vector_store %arg5[%c0_6, %c0_7], %7 {strides = array<i32>} : memref<512x8xf32, #tpu.memory_space<vmem>>, vector<512x8xf32>,
    %c0_i32_8 = arith.constant 0 : i32
    %9 = arith.cmpi eq, %arg1, %c0_i32_8 : i32
    %10 = arith.extui %9 : i1 to i32
    %c0_i32_9 = arith.constant 0 : i32
    %11 = arith.cmpi ne, %10, %c0_i32_9 : i32
    scf.if %11 {
      %c0_10 = arith.constant 0 : index
      %c0_11 = arith.constant 0 : index
      %12 = vector.load %arg5[%c0_10, %c0_11] : memref<512x8xf32, #tpu.memory_space<vmem>>, vector<512x8xf32>
      %c0_12 = arith.constant 0 : index
      %c0_13 = arith.constant 0 : index
      %13 = vector.load %arg4[%c0_12, %c0_13] : memref<1x8xf32, #tpu.memory_space<vmem>>, vector<1x8xf32>
      %14 = vector.broadcast %13 : vector<1x8xf32> to vector<512x8xf32>
      %15 = arith.addf %12, %14 : vector<512x8xf32>
      %cst_14 = arith.constant 0.000000e+00 : f32
      %16 = vector.broadcast %cst_14 : f32 to vector<512x8xf32>
      %17 = arith.cmpf oge, %15, %16 : vector<512x8xf32>
      %cst_15 = arith.constant 2.000000e-01 : f32
      %18 = vector.broadcast %cst_15 : f32 to vector<512x8xf32>
      %19 = arith.mulf %15, %18 : vector<512x8xf32>
      %20 = arith.select %17, %15, %19 : vector<512x8xi1>, vector<512x8xf32>
      %c0_16 = arith.constant 0 : index
      %c0_17 = arith.constant 0 : index
      %21 = vector.load %arg5[%c0_16, %c0_17] : memref<512x8xf32, #tpu.memory_space<vmem>>, vector<512x8xf32>
      tpu.vector_store %arg5[%c0_16, %c0_17], %20 {strides = array<i32>} : memref<512x8xf32, #tpu.memory_space<vmem>>, vector<512x8xf32>,
    } else {
    }
    return
  }
  func.func @transform_0(%arg0: i32, %arg1: i32) -> (i32, i32) {
    %c0_i32 = arith.constant 0 : i32
    return %arg0, %arg1 : i32, i32
  }
  func.func @transform_1(%arg0: i32, %arg1: i32) -> (i32, i32) {
    %c0_i32 = arith.constant 0 : i32
    %c0_i32_0 = arith.constant 0 : i32
    return %arg1, %c0_i32 : i32, i32
  }
  func.func @transform_2(%arg0: i32, %arg1: i32) -> (i32, i32) {
    %c0_i32 = arith.constant 0 : i32
    %c0_i32_0 = arith.constant 0 : i32
    %c0_i32_1 = arith.constant 0 : i32
    return %c0_i32, %c0_i32_0 : i32, i32
  }
  func.func @transform_3(%arg0: i32, %arg1: i32) -> (i32, i32) {
    %c0_i32 = arith.constant 0 : i32
    %c0_i32_0 = arith.constant 0 : i32
    return %arg0, %c0_i32 : i32, i32
  }
  func.func @transform_4(%arg0: i32, %arg1: i32) -> (i32, i32) {
    %c0_i32 = arith.constant 0 : i32
    %c0_i32_0 = arith.constant 0 : i32
    return %arg0, %c0_i32 : i32, i32
  }
}

module attributes {stable_mosaic.version = 11 : i64} {
  func.func @_gemm_bias_act_kernel(%arg0: i32, %arg1: i32, %arg2: memref<128x128xbf16, #tpu.memory_space<vmem>>, %arg3: memref<128x16xbf16, #tpu.memory_space<vmem>>, %arg4: memref<1x16xf32, #tpu.memory_space<vmem>>, %arg5: memref<128x16xf32, #tpu.memory_space<vmem>>, %arg6: memref<8x16xf32, #tpu.memory_space<vmem>>) attributes {dimension_semantics = [#tpu.dimension_semantics<parallel>, #tpu.dimension_semantics<arbitrary>], iteration_bounds = array<i64: 1, 1>, scalar_prefetch = 0 : i64, scratch_operands = 0 : i64, tpu.core_type = #tpu.core_type<tc>, window_params = [{transform_indices = @transform_0, window_bounds = array<i64: 128, 128>}, {transform_indices = @transform_1, window_bounds = array<i64: 128, 16>}, {pipeline_mode = #tpu.pipeline_mode<synchronous>, transform_indices = @transform_2, window_bounds = array<i64: 1, 16>}, {transform_indices = @transform_3, window_bounds = array<i64: 128, 16>}, {transform_indices = @transform_4, window_bounds = array<i64: 8, 16>}]} {
    %c0_i32 = arith.constant 0 : i32
    %0 = arith.cmpi eq, %arg1, %c0_i32 : i32
    %1 = arith.extui %0 : i1 to i32
    %c0_i32_0 = arith.constant 0 : i32
    %2 = arith.cmpi ne, %1, %c0_i32_0 : i32
    scf.if %2 {
      %cst_10 = arith.constant 0.000000e+00 : f32
      %12 = vector.broadcast %cst_10 : f32 to vector<128x16xf32>
      %c0_11 = arith.constant 0 : index
      %c0_12 = arith.constant 0 : index
      %13 = vector.load %arg5[%c0_11, %c0_12] : memref<128x16xf32, #tpu.memory_space<vmem>>, vector<128x16xf32>
      tpu.vector_store %arg5[%c0_11, %c0_12], %12 {strides = array<i32>} : memref<128x16xf32, #tpu.memory_space<vmem>>, vector<128x16xf32>,
    } else {
    }
    %c0 = arith.constant 0 : index
    %c0_1 = arith.constant 0 : index
    %3 = vector.load %arg5[%c0, %c0_1] : memref<128x16xf32, #tpu.memory_space<vmem>>, vector<128x16xf32>
    %c0_2 = arith.constant 0 : index
    %c0_3 = arith.constant 0 : index
    %4 = vector.load %arg2[%c0_2, %c0_3] : memref<128x128xbf16, #tpu.memory_space<vmem>>, vector<128x128xbf16>
    %c0_4 = arith.constant 0 : index
    %c0_5 = arith.constant 0 : index
    %5 = vector.load %arg3[%c0_4, %c0_5] : memref<128x16xbf16, #tpu.memory_space<vmem>>, vector<128x16xbf16>
    %cst = arith.constant dense<0.000000e+00> : vector<128x16xf32>
    %6 = tpu.matmul %4, %5, %cst {dimension_numbers = #tpu.dot_dimension_numbers<[1], [0], [0], [1], [0, 0, 1, 1], [], []>} : vector<128x128xbf16>, vector<128x16xbf16>, vector<128x16xf32> -> vector<128x16xf32>
    %7 = arith.addf %3, %6 : vector<128x16xf32>
    %c0_6 = arith.constant 0 : index
    %c0_7 = arith.constant 0 : index
    %8 = vector.load %arg5[%c0_6, %c0_7] : memref<128x16xf32, #tpu.memory_space<vmem>>, vector<128x16xf32>
    tpu.vector_store %arg5[%c0_6, %c0_7], %7 {strides = array<i32>} : memref<128x16xf32, #tpu.memory_space<vmem>>, vector<128x16xf32>,
    %c0_i32_8 = arith.constant 0 : i32
    %9 = arith.cmpi eq, %arg1, %c0_i32_8 : i32
    %10 = arith.extui %9 : i1 to i32
    %c0_i32_9 = arith.constant 0 : i32
    %11 = arith.cmpi ne, %10, %c0_i32_9 : i32
    scf.if %11 {
      %c0_10 = arith.constant 0 : index
      %c0_11 = arith.constant 0 : index
      %12 = vector.load %arg5[%c0_10, %c0_11] : memref<128x16xf32, #tpu.memory_space<vmem>>, vector<128x16xf32>
      %c0_12 = arith.constant 0 : index
      %c0_13 = arith.constant 0 : index
      %13 = vector.load %arg4[%c0_12, %c0_13] : memref<1x16xf32, #tpu.memory_space<vmem>>, vector<1x16xf32>
      %14 = vector.broadcast %13 : vector<1x16xf32> to vector<128x16xf32>
      %15 = arith.addf %12, %14 : vector<128x16xf32>
      %c0_14 = arith.constant 0 : index
      %c0_15 = arith.constant 0 : index
      %16 = vector.load %arg5[%c0_14, %c0_15] : memref<128x16xf32, #tpu.memory_space<vmem>>, vector<128x16xf32>
      tpu.vector_store %arg5[%c0_14, %c0_15], %15 {strides = array<i32>} : memref<128x16xf32, #tpu.memory_space<vmem>>, vector<128x16xf32>,
      %c128_i32 = arith.constant 128 : i32
      %17 = arith.muli %arg0, %c128_i32 : i32
      %18 = tpu.iota {dimensions = array<i32: 0>} : vector<128x16xi32>
      %19 = vector.broadcast %17 : i32 to vector<128x16xi32>
      %20 = arith.addi %19, %18 : vector<128x16xi32>
      %c128_i32_16 = arith.constant 128 : i32
      %21 = vector.broadcast %c128_i32_16 : i32 to vector<128x16xi32>
      %22 = arith.cmpi slt, %20, %21 : vector<128x16xi32>
      %cst_17 = arith.constant 0.000000e+00 : f32
      %23 = vector.broadcast %cst_17 : f32 to vector<128x16xf32>
      %24 = arith.select %22, %15, %23 : vector<128x16xi1>, vector<128x16xf32>
      %cst_18 = arith.constant dense<0.000000e+00> : vector<16xf32>
      %25 = vector.multi_reduction <add>, %24, %cst_18 [0] : vector<128x16xf32> to vector<16xf32>
      %26 = vector.shape_cast %25 : vector<16xf32> to vector<1x16xf32>
      %c0_19 = arith.constant 0 : index
      %c0_20 = arith.constant 0 : index
      %27 = vector.load %arg6[%c0_19, %c0_20] : memref<8x16xf32, #tpu.memory_space<vmem>>, vector<1x16xf32>
      tpu.vector_store %arg6[%c0_19, %c0_20], %26 {strides = array<i32>} : memref<8x16xf32, #tpu.memory_space<vmem>>, vector<1x16xf32>,
      %28 = arith.mulf %24, %24 : vector<128x16xf32>
      %cst_21 = arith.constant dense<0.000000e+00> : vector<16xf32>
      %29 = vector.multi_reduction <add>, %28, %cst_21 [0] : vector<128x16xf32> to vector<16xf32>
      %30 = vector.shape_cast %29 : vector<16xf32> to vector<1x16xf32>
      %c1 = arith.constant 1 : index
      %c0_22 = arith.constant 0 : index
      %31 = vector.load %arg6[%c1, %c0_22] : memref<8x16xf32, #tpu.memory_space<vmem>>, vector<1x16xf32>
      tpu.vector_store %arg6[%c1, %c0_22], %30 {strides = array<i32>} : memref<8x16xf32, #tpu.memory_space<vmem>>, vector<1x16xf32>,
    } else {
    }
    return
  }
  func.func @transform_0(%arg0: i32, %arg1: i32) -> (i32, i32) {
    %c0_i32 = arith.constant 0 : i32
    return %arg0, %arg1 : i32, i32
  }
  func.func @transform_1(%arg0: i32, %arg1: i32) -> (i32, i32) {
    %c0_i32 = arith.constant 0 : i32
    %c0_i32_0 = arith.constant 0 : i32
    return %arg1, %c0_i32 : i32, i32
  }
  func.func @transform_2(%arg0: i32, %arg1: i32) -> (i32, i32) {
    %c0_i32 = arith.constant 0 : i32
    %c0_i32_0 = arith.constant 0 : i32
    %c0_i32_1 = arith.constant 0 : i32
    return %c0_i32, %c0_i32_0 : i32, i32
  }
  func.func @transform_3(%arg0: i32, %arg1: i32) -> (i32, i32) {
    %c0_i32 = arith.constant 0 : i32
    %c0_i32_0 = arith.constant 0 : i32
    return %arg0, %c0_i32 : i32, i32
  }
  func.func @transform_4(%arg0: i32, %arg1: i32) -> (i32, i32) {
    %c0_i32 = arith.constant 0 : i32
    %c0_i32_0 = arith.constant 0 : i32
    return %arg0, %c0_i32 : i32, i32
  }
}

module attributes {stable_mosaic.version = 11 : i64} {
  func.func @_scale_shift_lrelu_kernel(%arg0: i32, %arg1: memref<128x16xf32, #tpu.memory_space<vmem>>, %arg2: memref<1x16xf32, #tpu.memory_space<vmem>>, %arg3: memref<1x16xf32, #tpu.memory_space<vmem>>, %arg4: memref<128x16xbf16, #tpu.memory_space<vmem>>) attributes {dimension_semantics = [#tpu.dimension_semantics<parallel>], iteration_bounds = array<i64: 1>, scalar_prefetch = 0 : i64, scratch_operands = 0 : i64, tpu.core_type = #tpu.core_type<tc>, window_params = [{transform_indices = @transform_0, window_bounds = array<i64: 128, 16>}, {pipeline_mode = #tpu.pipeline_mode<synchronous>, transform_indices = @transform_1, window_bounds = array<i64: 1, 16>}, {pipeline_mode = #tpu.pipeline_mode<synchronous>, transform_indices = @transform_2, window_bounds = array<i64: 1, 16>}, {transform_indices = @transform_3, window_bounds = array<i64: 128, 16>}]} {
    %c0 = arith.constant 0 : index
    %c0_0 = arith.constant 0 : index
    %0 = vector.load %arg1[%c0, %c0_0] : memref<128x16xf32, #tpu.memory_space<vmem>>, vector<128x16xf32>
    %c0_1 = arith.constant 0 : index
    %c0_2 = arith.constant 0 : index
    %1 = vector.load %arg2[%c0_1, %c0_2] : memref<1x16xf32, #tpu.memory_space<vmem>>, vector<1x16xf32>
    %2 = vector.broadcast %1 : vector<1x16xf32> to vector<128x16xf32>
    %3 = arith.mulf %0, %2 : vector<128x16xf32>
    %c0_3 = arith.constant 0 : index
    %c0_4 = arith.constant 0 : index
    %4 = vector.load %arg3[%c0_3, %c0_4] : memref<1x16xf32, #tpu.memory_space<vmem>>, vector<1x16xf32>
    %5 = vector.broadcast %4 : vector<1x16xf32> to vector<128x16xf32>
    %6 = arith.addf %3, %5 : vector<128x16xf32>
    %cst = arith.constant 0.000000e+00 : f32
    %7 = vector.broadcast %cst : f32 to vector<128x16xf32>
    %8 = arith.cmpf oge, %6, %7 : vector<128x16xf32>
    %cst_5 = arith.constant 2.000000e-01 : f32
    %9 = vector.broadcast %cst_5 : f32 to vector<128x16xf32>
    %10 = arith.mulf %6, %9 : vector<128x16xf32>
    %11 = arith.select %8, %6, %10 : vector<128x16xi1>, vector<128x16xf32>
    %12 = arith.truncf %11 : vector<128x16xf32> to vector<128x16xbf16>
    %c0_6 = arith.constant 0 : index
    %c0_7 = arith.constant 0 : index
    %13 = vector.load %arg4[%c0_6, %c0_7] : memref<128x16xbf16, #tpu.memory_space<vmem>>, vector<128x16xbf16>
    tpu.vector_store %arg4[%c0_6, %c0_7], %12 {strides = array<i32>} : memref<128x16xbf16, #tpu.memory_space<vmem>>, vector<128x16xbf16>,
    return
  }
  func.func @transform_0(%arg0: i32) -> (i32, i32) {
    %c0_i32 = arith.constant 0 : i32
    %c0_i32_0 = arith.constant 0 : i32
    return %arg0, %c0_i32 : i32, i32
  }
  func.func @transform_1(%arg0: i32) -> (i32, i32) {
    %c0_i32 = arith.constant 0 : i32
    %c0_i32_0 = arith.constant 0 : i32
    %c0_i32_1 = arith.constant 0 : i32
    return %c0_i32, %c0_i32_0 : i32, i32
  }
  func.func @transform_2(%arg0: i32) -> (i32, i32) {
    %c0_i32 = arith.constant 0 : i32
    %c0_i32_0 = arith.constant 0 : i32
    %c0_i32_1 = arith.constant 0 : i32
    return %c0_i32, %c0_i32_0 : i32, i32
  }
  func.func @transform_3(%arg0: i32) -> (i32, i32) {
    %c0_i32 = arith.constant 0 : i32
    %c0_i32_0 = arith.constant 0 : i32
    return %arg0, %c0_i32 : i32, i32
  }
}

module attributes {stable_mosaic.version = 11 : i64} {
  func.func @_gemm_bias_act_kernel(%arg0: i32, %arg1: i32, %arg2: memref<32x256xbf16, #tpu.memory_space<vmem>>, %arg3: memref<256x32xbf16, #tpu.memory_space<vmem>>, %arg4: memref<1x32xf32, #tpu.memory_space<vmem>>, %arg5: memref<32x32xf32, #tpu.memory_space<vmem>>, %arg6: memref<8x32xf32, #tpu.memory_space<vmem>>) attributes {dimension_semantics = [#tpu.dimension_semantics<parallel>, #tpu.dimension_semantics<arbitrary>], iteration_bounds = array<i64: 1, 1>, scalar_prefetch = 0 : i64, scratch_operands = 0 : i64, tpu.core_type = #tpu.core_type<tc>, window_params = [{transform_indices = @transform_0, window_bounds = array<i64: 32, 256>}, {transform_indices = @transform_1, window_bounds = array<i64: 256, 32>}, {pipeline_mode = #tpu.pipeline_mode<synchronous>, transform_indices = @transform_2, window_bounds = array<i64: 1, 32>}, {transform_indices = @transform_3, window_bounds = array<i64: 32, 32>}, {transform_indices = @transform_4, window_bounds = array<i64: 8, 32>}]} {
    %c0_i32 = arith.constant 0 : i32
    %0 = arith.cmpi eq, %arg1, %c0_i32 : i32
    %1 = arith.extui %0 : i1 to i32
    %c0_i32_0 = arith.constant 0 : i32
    %2 = arith.cmpi ne, %1, %c0_i32_0 : i32
    scf.if %2 {
      %cst_10 = arith.constant 0.000000e+00 : f32
      %12 = vector.broadcast %cst_10 : f32 to vector<32x32xf32>
      %c0_11 = arith.constant 0 : index
      %c0_12 = arith.constant 0 : index
      %13 = vector.load %arg5[%c0_11, %c0_12] : memref<32x32xf32, #tpu.memory_space<vmem>>, vector<32x32xf32>
      tpu.vector_store %arg5[%c0_11, %c0_12], %12 {strides = array<i32>} : memref<32x32xf32, #tpu.memory_space<vmem>>, vector<32x32xf32>,
    } else {
    }
    %c0 = arith.constant 0 : index
    %c0_1 = arith.constant 0 : index
    %3 = vector.load %arg5[%c0, %c0_1] : memref<32x32xf32, #tpu.memory_space<vmem>>, vector<32x32xf32>
    %c0_2 = arith.constant 0 : index
    %c0_3 = arith.constant 0 : index
    %4 = vector.load %arg2[%c0_2, %c0_3] : memref<32x256xbf16, #tpu.memory_space<vmem>>, vector<32x256xbf16>
    %c0_4 = arith.constant 0 : index
    %c0_5 = arith.constant 0 : index
    %5 = vector.load %arg3[%c0_4, %c0_5] : memref<256x32xbf16, #tpu.memory_space<vmem>>, vector<256x32xbf16>
    %cst = arith.constant dense<0.000000e+00> : vector<32x32xf32>
    %6 = tpu.matmul %4, %5, %cst {dimension_numbers = #tpu.dot_dimension_numbers<[1], [0], [0], [1], [0, 0, 1, 1], [], []>} : vector<32x256xbf16>, vector<256x32xbf16>, vector<32x32xf32> -> vector<32x32xf32>
    %7 = arith.addf %3, %6 : vector<32x32xf32>
    %c0_6 = arith.constant 0 : index
    %c0_7 = arith.constant 0 : index
    %8 = vector.load %arg5[%c0_6, %c0_7] : memref<32x32xf32, #tpu.memory_space<vmem>>, vector<32x32xf32>
    tpu.vector_store %arg5[%c0_6, %c0_7], %7 {strides = array<i32>} : memref<32x32xf32, #tpu.memory_space<vmem>>, vector<32x32xf32>,
    %c0_i32_8 = arith.constant 0 : i32
    %9 = arith.cmpi eq, %arg1, %c0_i32_8 : i32
    %10 = arith.extui %9 : i1 to i32
    %c0_i32_9 = arith.constant 0 : i32
    %11 = arith.cmpi ne, %10, %c0_i32_9 : i32
    scf.if %11 {
      %c0_10 = arith.constant 0 : index
      %c0_11 = arith.constant 0 : index
      %12 = vector.load %arg5[%c0_10, %c0_11] : memref<32x32xf32, #tpu.memory_space<vmem>>, vector<32x32xf32>
      %c0_12 = arith.constant 0 : index
      %c0_13 = arith.constant 0 : index
      %13 = vector.load %arg4[%c0_12, %c0_13] : memref<1x32xf32, #tpu.memory_space<vmem>>, vector<1x32xf32>
      %14 = vector.broadcast %13 : vector<1x32xf32> to vector<32x32xf32>
      %15 = arith.addf %12, %14 : vector<32x32xf32>
      %c0_14 = arith.constant 0 : index
      %c0_15 = arith.constant 0 : index
      %16 = vector.load %arg5[%c0_14, %c0_15] : memref<32x32xf32, #tpu.memory_space<vmem>>, vector<32x32xf32>
      tpu.vector_store %arg5[%c0_14, %c0_15], %15 {strides = array<i32>} : memref<32x32xf32, #tpu.memory_space<vmem>>, vector<32x32xf32>,
      %c32_i32 = arith.constant 32 : i32
      %17 = arith.muli %arg0, %c32_i32 : i32
      %18 = tpu.iota {dimensions = array<i32: 0>} : vector<32x32xi32>
      %19 = vector.broadcast %17 : i32 to vector<32x32xi32>
      %20 = arith.addi %19, %18 : vector<32x32xi32>
      %c32_i32_16 = arith.constant 32 : i32
      %21 = vector.broadcast %c32_i32_16 : i32 to vector<32x32xi32>
      %22 = arith.cmpi slt, %20, %21 : vector<32x32xi32>
      %cst_17 = arith.constant 0.000000e+00 : f32
      %23 = vector.broadcast %cst_17 : f32 to vector<32x32xf32>
      %24 = arith.select %22, %15, %23 : vector<32x32xi1>, vector<32x32xf32>
      %cst_18 = arith.constant dense<0.000000e+00> : vector<32xf32>
      %25 = vector.multi_reduction <add>, %24, %cst_18 [0] : vector<32x32xf32> to vector<32xf32>
      %26 = vector.shape_cast %25 : vector<32xf32> to vector<1x32xf32>
      %c0_19 = arith.constant 0 : index
      %c0_20 = arith.constant 0 : index
      %27 = vector.load %arg6[%c0_19, %c0_20] : memref<8x32xf32, #tpu.memory_space<vmem>>, vector<1x32xf32>
      tpu.vector_store %arg6[%c0_19, %c0_20], %26 {strides = array<i32>} : memref<8x32xf32, #tpu.memory_space<vmem>>, vector<1x32xf32>,
      %28 = arith.mulf %24, %24 : vector<32x32xf32>
      %cst_21 = arith.constant dense<0.000000e+00> : vector<32xf32>
      %29 = vector.multi_reduction <add>, %28, %cst_21 [0] : vector<32x32xf32> to vector<32xf32>
      %30 = vector.shape_cast %29 : vector<32xf32> to vector<1x32xf32>
      %c1 = arith.constant 1 : index
      %c0_22 = arith.constant 0 : index
      %31 = vector.load %arg6[%c1, %c0_22] : memref<8x32xf32, #tpu.memory_space<vmem>>, vector<1x32xf32>
      tpu.vector_store %arg6[%c1, %c0_22], %30 {strides = array<i32>} : memref<8x32xf32, #tpu.memory_space<vmem>>, vector<1x32xf32>,
    } else {
    }
    return
  }
  func.func @transform_0(%arg0: i32, %arg1: i32) -> (i32, i32) {
    %c0_i32 = arith.constant 0 : i32
    return %arg0, %arg1 : i32, i32
  }
  func.func @transform_1(%arg0: i32, %arg1: i32) -> (i32, i32) {
    %c0_i32 = arith.constant 0 : i32
    %c0_i32_0 = arith.constant 0 : i32
    return %arg1, %c0_i32 : i32, i32
  }
  func.func @transform_2(%arg0: i32, %arg1: i32) -> (i32, i32) {
    %c0_i32 = arith.constant 0 : i32
    %c0_i32_0 = arith.constant 0 : i32
    %c0_i32_1 = arith.constant 0 : i32
    return %c0_i32, %c0_i32_0 : i32, i32
  }
  func.func @transform_3(%arg0: i32, %arg1: i32) -> (i32, i32) {
    %c0_i32 = arith.constant 0 : i32
    %c0_i32_0 = arith.constant 0 : i32
    return %arg0, %c0_i32 : i32, i32
  }
  func.func @transform_4(%arg0: i32, %arg1: i32) -> (i32, i32) {
    %c0_i32 = arith.constant 0 : i32
    %c0_i32_0 = arith.constant 0 : i32
    return %arg0, %c0_i32 : i32, i32
  }
}

module attributes {stable_mosaic.version = 11 : i64} {
  func.func @_scale_shift_lrelu_kernel(%arg0: i32, %arg1: memref<32x32xf32, #tpu.memory_space<vmem>>, %arg2: memref<1x32xf32, #tpu.memory_space<vmem>>, %arg3: memref<1x32xf32, #tpu.memory_space<vmem>>, %arg4: memref<32x32xbf16, #tpu.memory_space<vmem>>) attributes {dimension_semantics = [#tpu.dimension_semantics<parallel>], iteration_bounds = array<i64: 1>, scalar_prefetch = 0 : i64, scratch_operands = 0 : i64, tpu.core_type = #tpu.core_type<tc>, window_params = [{transform_indices = @transform_0, window_bounds = array<i64: 32, 32>}, {pipeline_mode = #tpu.pipeline_mode<synchronous>, transform_indices = @transform_1, window_bounds = array<i64: 1, 32>}, {pipeline_mode = #tpu.pipeline_mode<synchronous>, transform_indices = @transform_2, window_bounds = array<i64: 1, 32>}, {transform_indices = @transform_3, window_bounds = array<i64: 32, 32>}]} {
    %c0 = arith.constant 0 : index
    %c0_0 = arith.constant 0 : index
    %0 = vector.load %arg1[%c0, %c0_0] : memref<32x32xf32, #tpu.memory_space<vmem>>, vector<32x32xf32>
    %c0_1 = arith.constant 0 : index
    %c0_2 = arith.constant 0 : index
    %1 = vector.load %arg2[%c0_1, %c0_2] : memref<1x32xf32, #tpu.memory_space<vmem>>, vector<1x32xf32>
    %2 = vector.broadcast %1 : vector<1x32xf32> to vector<32x32xf32>
    %3 = arith.mulf %0, %2 : vector<32x32xf32>
    %c0_3 = arith.constant 0 : index
    %c0_4 = arith.constant 0 : index
    %4 = vector.load %arg3[%c0_3, %c0_4] : memref<1x32xf32, #tpu.memory_space<vmem>>, vector<1x32xf32>
    %5 = vector.broadcast %4 : vector<1x32xf32> to vector<32x32xf32>
    %6 = arith.addf %3, %5 : vector<32x32xf32>
    %cst = arith.constant 0.000000e+00 : f32
    %7 = vector.broadcast %cst : f32 to vector<32x32xf32>
    %8 = arith.cmpf oge, %6, %7 : vector<32x32xf32>
    %cst_5 = arith.constant 2.000000e-01 : f32
    %9 = vector.broadcast %cst_5 : f32 to vector<32x32xf32>
    %10 = arith.mulf %6, %9 : vector<32x32xf32>
    %11 = arith.select %8, %6, %10 : vector<32x32xi1>, vector<32x32xf32>
    %12 = arith.truncf %11 : vector<32x32xf32> to vector<32x32xbf16>
    %c0_6 = arith.constant 0 : index
    %c0_7 = arith.constant 0 : index
    %13 = vector.load %arg4[%c0_6, %c0_7] : memref<32x32xbf16, #tpu.memory_space<vmem>>, vector<32x32xbf16>
    tpu.vector_store %arg4[%c0_6, %c0_7], %12 {strides = array<i32>} : memref<32x32xbf16, #tpu.memory_space<vmem>>, vector<32x32xbf16>,
    return
  }
  func.func @transform_0(%arg0: i32) -> (i32, i32) {
    %c0_i32 = arith.constant 0 : i32
    %c0_i32_0 = arith.constant 0 : i32
    return %arg0, %c0_i32 : i32, i32
  }
  func.func @transform_1(%arg0: i32) -> (i32, i32) {
    %c0_i32 = arith.constant 0 : i32
    %c0_i32_0 = arith.constant 0 : i32
    %c0_i32_1 = arith.constant 0 : i32
    return %c0_i32, %c0_i32_0 : i32, i32
  }
  func.func @transform_2(%arg0: i32) -> (i32, i32) {
    %c0_i32 = arith.constant 0 : i32
    %c0_i32_0 = arith.constant 0 : i32
    %c0_i32_1 = arith.constant 0 : i32
    return %c0_i32, %c0_i32_0 : i32, i32
  }
  func.func @transform_3(%arg0: i32) -> (i32, i32) {
    %c0_i32 = arith.constant 0 : i32
    %c0_i32_0 = arith.constant 0 : i32
    return %arg0, %c0_i32 : i32, i32
  }
}

module attributes {stable_mosaic.version = 11 : i64} {
  func.func @_scale_shift_lrelu_kernel(%arg0: i32, %arg1: memref<32x64xf32, #tpu.memory_space<vmem>>, %arg2: memref<1x64xf32, #tpu.memory_space<vmem>>, %arg3: memref<1x64xf32, #tpu.memory_space<vmem>>, %arg4: memref<32x64xbf16, #tpu.memory_space<vmem>>) attributes {dimension_semantics = [#tpu.dimension_semantics<parallel>], iteration_bounds = array<i64: 1>, scalar_prefetch = 0 : i64, scratch_operands = 0 : i64, tpu.core_type = #tpu.core_type<tc>, window_params = [{transform_indices = @transform_0, window_bounds = array<i64: 32, 64>}, {pipeline_mode = #tpu.pipeline_mode<synchronous>, transform_indices = @transform_1, window_bounds = array<i64: 1, 64>}, {pipeline_mode = #tpu.pipeline_mode<synchronous>, transform_indices = @transform_2, window_bounds = array<i64: 1, 64>}, {transform_indices = @transform_3, window_bounds = array<i64: 32, 64>}]} {
    %c0 = arith.constant 0 : index
    %c0_0 = arith.constant 0 : index
    %0 = vector.load %arg1[%c0, %c0_0] : memref<32x64xf32, #tpu.memory_space<vmem>>, vector<32x64xf32>
    %c0_1 = arith.constant 0 : index
    %c0_2 = arith.constant 0 : index
    %1 = vector.load %arg2[%c0_1, %c0_2] : memref<1x64xf32, #tpu.memory_space<vmem>>, vector<1x64xf32>
    %2 = vector.broadcast %1 : vector<1x64xf32> to vector<32x64xf32>
    %3 = arith.mulf %0, %2 : vector<32x64xf32>
    %c0_3 = arith.constant 0 : index
    %c0_4 = arith.constant 0 : index
    %4 = vector.load %arg3[%c0_3, %c0_4] : memref<1x64xf32, #tpu.memory_space<vmem>>, vector<1x64xf32>
    %5 = vector.broadcast %4 : vector<1x64xf32> to vector<32x64xf32>
    %6 = arith.addf %3, %5 : vector<32x64xf32>
    %cst = arith.constant 0.000000e+00 : f32
    %7 = vector.broadcast %cst : f32 to vector<32x64xf32>
    %8 = arith.cmpf oge, %6, %7 : vector<32x64xf32>
    %cst_5 = arith.constant 2.000000e-01 : f32
    %9 = vector.broadcast %cst_5 : f32 to vector<32x64xf32>
    %10 = arith.mulf %6, %9 : vector<32x64xf32>
    %11 = arith.select %8, %6, %10 : vector<32x64xi1>, vector<32x64xf32>
    %12 = arith.truncf %11 : vector<32x64xf32> to vector<32x64xbf16>
    %c0_6 = arith.constant 0 : index
    %c0_7 = arith.constant 0 : index
    %13 = vector.load %arg4[%c0_6, %c0_7] : memref<32x64xbf16, #tpu.memory_space<vmem>>, vector<32x64xbf16>
    tpu.vector_store %arg4[%c0_6, %c0_7], %12 {strides = array<i32>} : memref<32x64xbf16, #tpu.memory_space<vmem>>, vector<32x64xbf16>,
    return
  }
  func.func @transform_0(%arg0: i32) -> (i32, i32) {
    %c0_i32 = arith.constant 0 : i32
    %c0_i32_0 = arith.constant 0 : i32
    return %arg0, %c0_i32 : i32, i32
  }
  func.func @transform_1(%arg0: i32) -> (i32, i32) {
    %c0_i32 = arith.constant 0 : i32
    %c0_i32_0 = arith.constant 0 : i32
    %c0_i32_1 = arith.constant 0 : i32
    return %c0_i32, %c0_i32_0 : i32, i32
  }
  func.func @transform_2(%arg0: i32) -> (i32, i32) {
    %c0_i32 = arith.constant 0 : i32
    %c0_i32_0 = arith.constant 0 : i32
    %c0_i32_1 = arith.constant 0 : i32
    return %c0_i32, %c0_i32_0 : i32, i32
  }
  func.func @transform_3(%arg0: i32) -> (i32, i32) {
    %c0_i32 = arith.constant 0 : i32
    %c0_i32_0 = arith.constant 0 : i32
    return %arg0, %c0_i32 : i32, i32
  }
}

module attributes {stable_mosaic.version = 11 : i64} {
  func.func @_gemm_bias_act_kernel(%arg0: i32, %arg1: i32, %arg2: memref<32x512xbf16, #tpu.memory_space<vmem>>, %arg3: memref<512x64xbf16, #tpu.memory_space<vmem>>, %arg4: memref<1x64xf32, #tpu.memory_space<vmem>>, %arg5: memref<32x64xf32, #tpu.memory_space<vmem>>, %arg6: memref<8x64xf32, #tpu.memory_space<vmem>>) attributes {dimension_semantics = [#tpu.dimension_semantics<parallel>, #tpu.dimension_semantics<arbitrary>], iteration_bounds = array<i64: 1, 1>, scalar_prefetch = 0 : i64, scratch_operands = 0 : i64, tpu.core_type = #tpu.core_type<tc>, window_params = [{transform_indices = @transform_0, window_bounds = array<i64: 32, 512>}, {transform_indices = @transform_1, window_bounds = array<i64: 512, 64>}, {pipeline_mode = #tpu.pipeline_mode<synchronous>, transform_indices = @transform_2, window_bounds = array<i64: 1, 64>}, {transform_indices = @transform_3, window_bounds = array<i64: 32, 64>}, {transform_indices = @transform_4, window_bounds = array<i64: 8, 64>}]} {
    %c0_i32 = arith.constant 0 : i32
    %0 = arith.cmpi eq, %arg1, %c0_i32 : i32
    %1 = arith.extui %0 : i1 to i32
    %c0_i32_0 = arith.constant 0 : i32
    %2 = arith.cmpi ne, %1, %c0_i32_0 : i32
    scf.if %2 {
      %cst_10 = arith.constant 0.000000e+00 : f32
      %12 = vector.broadcast %cst_10 : f32 to vector<32x64xf32>
      %c0_11 = arith.constant 0 : index
      %c0_12 = arith.constant 0 : index
      %13 = vector.load %arg5[%c0_11, %c0_12] : memref<32x64xf32, #tpu.memory_space<vmem>>, vector<32x64xf32>
      tpu.vector_store %arg5[%c0_11, %c0_12], %12 {strides = array<i32>} : memref<32x64xf32, #tpu.memory_space<vmem>>, vector<32x64xf32>,
    } else {
    }
    %c0 = arith.constant 0 : index
    %c0_1 = arith.constant 0 : index
    %3 = vector.load %arg5[%c0, %c0_1] : memref<32x64xf32, #tpu.memory_space<vmem>>, vector<32x64xf32>
    %c0_2 = arith.constant 0 : index
    %c0_3 = arith.constant 0 : index
    %4 = vector.load %arg2[%c0_2, %c0_3] : memref<32x512xbf16, #tpu.memory_space<vmem>>, vector<32x512xbf16>
    %c0_4 = arith.constant 0 : index
    %c0_5 = arith.constant 0 : index
    %5 = vector.load %arg3[%c0_4, %c0_5] : memref<512x64xbf16, #tpu.memory_space<vmem>>, vector<512x64xbf16>
    %cst = arith.constant dense<0.000000e+00> : vector<32x64xf32>
    %6 = tpu.matmul %4, %5, %cst {dimension_numbers = #tpu.dot_dimension_numbers<[1], [0], [0], [1], [0, 0, 1, 1], [], []>} : vector<32x512xbf16>, vector<512x64xbf16>, vector<32x64xf32> -> vector<32x64xf32>
    %7 = arith.addf %3, %6 : vector<32x64xf32>
    %c0_6 = arith.constant 0 : index
    %c0_7 = arith.constant 0 : index
    %8 = vector.load %arg5[%c0_6, %c0_7] : memref<32x64xf32, #tpu.memory_space<vmem>>, vector<32x64xf32>
    tpu.vector_store %arg5[%c0_6, %c0_7], %7 {strides = array<i32>} : memref<32x64xf32, #tpu.memory_space<vmem>>, vector<32x64xf32>,
    %c0_i32_8 = arith.constant 0 : i32
    %9 = arith.cmpi eq, %arg1, %c0_i32_8 : i32
    %10 = arith.extui %9 : i1 to i32
    %c0_i32_9 = arith.constant 0 : i32
    %11 = arith.cmpi ne, %10, %c0_i32_9 : i32
    scf.if %11 {
      %c0_10 = arith.constant 0 : index
      %c0_11 = arith.constant 0 : index
      %12 = vector.load %arg5[%c0_10, %c0_11] : memref<32x64xf32, #tpu.memory_space<vmem>>, vector<32x64xf32>
      %c0_12 = arith.constant 0 : index
      %c0_13 = arith.constant 0 : index
      %13 = vector.load %arg4[%c0_12, %c0_13] : memref<1x64xf32, #tpu.memory_space<vmem>>, vector<1x64xf32>
      %14 = vector.broadcast %13 : vector<1x64xf32> to vector<32x64xf32>
      %15 = arith.addf %12, %14 : vector<32x64xf32>
      %c0_14 = arith.constant 0 : index
      %c0_15 = arith.constant 0 : index
      %16 = vector.load %arg5[%c0_14, %c0_15] : memref<32x64xf32, #tpu.memory_space<vmem>>, vector<32x64xf32>
      tpu.vector_store %arg5[%c0_14, %c0_15], %15 {strides = array<i32>} : memref<32x64xf32, #tpu.memory_space<vmem>>, vector<32x64xf32>,
      %c32_i32 = arith.constant 32 : i32
      %17 = arith.muli %arg0, %c32_i32 : i32
      %18 = tpu.iota {dimensions = array<i32: 0>} : vector<32x64xi32>
      %19 = vector.broadcast %17 : i32 to vector<32x64xi32>
      %20 = arith.addi %19, %18 : vector<32x64xi32>
      %c18_i32 = arith.constant 18 : i32
      %21 = vector.broadcast %c18_i32 : i32 to vector<32x64xi32>
      %22 = arith.cmpi slt, %20, %21 : vector<32x64xi32>
      %cst_16 = arith.constant 0.000000e+00 : f32
      %23 = vector.broadcast %cst_16 : f32 to vector<32x64xf32>
      %24 = arith.select %22, %15, %23 : vector<32x64xi1>, vector<32x64xf32>
      %cst_17 = arith.constant dense<0.000000e+00> : vector<64xf32>
      %25 = vector.multi_reduction <add>, %24, %cst_17 [0] : vector<32x64xf32> to vector<64xf32>
      %26 = vector.shape_cast %25 : vector<64xf32> to vector<1x64xf32>
      %c0_18 = arith.constant 0 : index
      %c0_19 = arith.constant 0 : index
      %27 = vector.load %arg6[%c0_18, %c0_19] : memref<8x64xf32, #tpu.memory_space<vmem>>, vector<1x64xf32>
      tpu.vector_store %arg6[%c0_18, %c0_19], %26 {strides = array<i32>} : memref<8x64xf32, #tpu.memory_space<vmem>>, vector<1x64xf32>,
      %28 = arith.mulf %24, %24 : vector<32x64xf32>
      %cst_20 = arith.constant dense<0.000000e+00> : vector<64xf32>
      %29 = vector.multi_reduction <add>, %28, %cst_20 [0] : vector<32x64xf32> to vector<64xf32>
      %30 = vector.shape_cast %29 : vector<64xf32> to vector<1x64xf32>
      %c1 = arith.constant 1 : index
      %c0_21 = arith.constant 0 : index
      %31 = vector.load %arg6[%c1, %c0_21] : memref<8x64xf32, #tpu.memory_space<vmem>>, vector<1x64xf32>
      tpu.vector_store %arg6[%c1, %c0_21], %30 {strides = array<i32>} : memref<8x64xf32, #tpu.memory_space<vmem>>, vector<1x64xf32>,
    } else {
    }
    return
  }
  func.func @transform_0(%arg0: i32, %arg1: i32) -> (i32, i32) {
    %c0_i32 = arith.constant 0 : i32
    return %arg0, %arg1 : i32, i32
  }
  func.func @transform_1(%arg0: i32, %arg1: i32) -> (i32, i32) {
    %c0_i32 = arith.constant 0 : i32
    %c0_i32_0 = arith.constant 0 : i32
    return %arg1, %c0_i32 : i32, i32
  }
  func.func @transform_2(%arg0: i32, %arg1: i32) -> (i32, i32) {
    %c0_i32 = arith.constant 0 : i32
    %c0_i32_0 = arith.constant 0 : i32
    %c0_i32_1 = arith.constant 0 : i32
    return %c0_i32, %c0_i32_0 : i32, i32
  }
  func.func @transform_3(%arg0: i32, %arg1: i32) -> (i32, i32) {
    %c0_i32 = arith.constant 0 : i32
    %c0_i32_0 = arith.constant 0 : i32
    return %arg0, %c0_i32 : i32, i32
  }
  func.func @transform_4(%arg0: i32, %arg1: i32) -> (i32, i32) {
    %c0_i32 = arith.constant 0 : i32
    %c0_i32_0 = arith.constant 0 : i32
    return %arg0, %c0_i32 : i32, i32
  }
}

module attributes {stable_mosaic.version = 11 : i64} {
  func.func @_gemm_bias_act_kernel(%arg0: i32, %arg1: i32, %arg2: memref<16x512xbf16, #tpu.memory_space<vmem>>, %arg3: memref<512x1xbf16, #tpu.memory_space<vmem>>, %arg4: memref<1x1xf32, #tpu.memory_space<vmem>>, %arg5: memref<16x1xf32, #tpu.memory_space<vmem>>, %arg6: memref<8x1xf32, #tpu.memory_space<vmem>>) attributes {dimension_semantics = [#tpu.dimension_semantics<parallel>, #tpu.dimension_semantics<arbitrary>], iteration_bounds = array<i64: 1, 2>, scalar_prefetch = 0 : i64, scratch_operands = 0 : i64, tpu.core_type = #tpu.core_type<tc>, window_params = [{transform_indices = @transform_0, window_bounds = array<i64: 16, 512>}, {transform_indices = @transform_1, window_bounds = array<i64: 512, 1>}, {pipeline_mode = #tpu.pipeline_mode<synchronous>, transform_indices = @transform_2, window_bounds = array<i64: 1, 1>}, {transform_indices = @transform_3, window_bounds = array<i64: 16, 1>}, {transform_indices = @transform_4, window_bounds = array<i64: 8, 1>}]} {
    %c0_i32 = arith.constant 0 : i32
    %0 = arith.cmpi eq, %arg1, %c0_i32 : i32
    %1 = arith.extui %0 : i1 to i32
    %c0_i32_0 = arith.constant 0 : i32
    %2 = arith.cmpi ne, %1, %c0_i32_0 : i32
    scf.if %2 {
      %cst_9 = arith.constant 0.000000e+00 : f32
      %12 = vector.broadcast %cst_9 : f32 to vector<16x1xf32>
      %c0_10 = arith.constant 0 : index
      %c0_11 = arith.constant 0 : index
      %13 = vector.load %arg5[%c0_10, %c0_11] : memref<16x1xf32, #tpu.memory_space<vmem>>, vector<16x1xf32>
      tpu.vector_store %arg5[%c0_10, %c0_11], %12 {strides = array<i32>} : memref<16x1xf32, #tpu.memory_space<vmem>>, vector<16x1xf32>,
    } else {
    }
    %c0 = arith.constant 0 : index
    %c0_1 = arith.constant 0 : index
    %3 = vector.load %arg5[%c0, %c0_1] : memref<16x1xf32, #tpu.memory_space<vmem>>, vector<16x1xf32>
    %c0_2 = arith.constant 0 : index
    %c0_3 = arith.constant 0 : index
    %4 = vector.load %arg2[%c0_2, %c0_3] : memref<16x512xbf16, #tpu.memory_space<vmem>>, vector<16x512xbf16>
    %c0_4 = arith.constant 0 : index
    %c0_5 = arith.constant 0 : index
    %5 = vector.load %arg3[%c0_4, %c0_5] : memref<512x1xbf16, #tpu.memory_space<vmem>>, vector<512x1xbf16>
    %cst = arith.constant dense<0.000000e+00> : vector<16x1xf32>
    %6 = tpu.matmul %4, %5, %cst {dimension_numbers = #tpu.dot_dimension_numbers<[1], [0], [0], [1], [0, 0, 1, 1], [], []>} : vector<16x512xbf16>, vector<512x1xbf16>, vector<16x1xf32> -> vector<16x1xf32>
    %7 = arith.addf %3, %6 : vector<16x1xf32>
    %c0_6 = arith.constant 0 : index
    %c0_7 = arith.constant 0 : index
    %8 = vector.load %arg5[%c0_6, %c0_7] : memref<16x1xf32, #tpu.memory_space<vmem>>, vector<16x1xf32>
    tpu.vector_store %arg5[%c0_6, %c0_7], %7 {strides = array<i32>} : memref<16x1xf32, #tpu.memory_space<vmem>>, vector<16x1xf32>,
    %c1_i32 = arith.constant 1 : i32
    %9 = arith.cmpi eq, %arg1, %c1_i32 : i32
    %10 = arith.extui %9 : i1 to i32
    %c0_i32_8 = arith.constant 0 : i32
    %11 = arith.cmpi ne, %10, %c0_i32_8 : i32
    scf.if %11 {
      %c0_9 = arith.constant 0 : index
      %c0_10 = arith.constant 0 : index
      %12 = vector.load %arg5[%c0_9, %c0_10] : memref<16x1xf32, #tpu.memory_space<vmem>>, vector<16x1xf32>
      %c0_11 = arith.constant 0 : index
      %c0_12 = arith.constant 0 : index
      %13 = vector.load %arg4[%c0_11, %c0_12] : memref<1x1xf32, #tpu.memory_space<vmem>>, vector<1x1xf32>
      %14 = vector.broadcast %13 : vector<1x1xf32> to vector<16x1xf32>
      %15 = arith.addf %12, %14 : vector<16x1xf32>
      %c0_13 = arith.constant 0 : index
      %c0_14 = arith.constant 0 : index
      %16 = vector.load %arg5[%c0_13, %c0_14] : memref<16x1xf32, #tpu.memory_space<vmem>>, vector<16x1xf32>
      tpu.vector_store %arg5[%c0_13, %c0_14], %15 {strides = array<i32>} : memref<16x1xf32, #tpu.memory_space<vmem>>, vector<16x1xf32>,
    } else {
    }
    return
  }
  func.func @transform_0(%arg0: i32, %arg1: i32) -> (i32, i32) {
    %c0_i32 = arith.constant 0 : i32
    return %arg0, %arg1 : i32, i32
  }
  func.func @transform_1(%arg0: i32, %arg1: i32) -> (i32, i32) {
    %c0_i32 = arith.constant 0 : i32
    %c0_i32_0 = arith.constant 0 : i32
    return %arg1, %c0_i32 : i32, i32
  }
  func.func @transform_2(%arg0: i32, %arg1: i32) -> (i32, i32) {
    %c0_i32 = arith.constant 0 : i32
    %c0_i32_0 = arith.constant 0 : i32
    %c0_i32_1 = arith.constant 0 : i32
    return %c0_i32, %c0_i32_0 : i32, i32
  }
  func.func @transform_3(%arg0: i32, %arg1: i32) -> (i32, i32) {
    %c0_i32 = arith.constant 0 : i32
    %c0_i32_0 = arith.constant 0 : i32
    return %arg0, %c0_i32 : i32, i32
  }
  func.func @transform_4(%arg0: i32, %arg1: i32) -> (i32, i32) {
    %c0_i32 = arith.constant 0 : i32
    %c0_i32_0 = arith.constant 0 : i32
    return %arg0, %c0_i32 : i32, i32
  }
}

</mosaic_0001>

<llo_original>
// kernel: _lambda_.8
$region0: #{_lambda_.8}
  #allocation0 [shape = 'u32[]', space=smem, size = 0x4, offset = 0x4, fixed_abs, tag = 'smem constant byte address 0x4 - core index']
  #allocation1 [shape = 'u32[72,128]{1,0:T(1,128)}', space=vmem, size = 0x9000, scoped, tag = 'internal scratch']
  %s0 = inlined_call_operand.vmem [shape: bf16[512,128], index: 0, kind: input, shape index: {}]
  %s1 = inlined_call_operand.vmem [shape: bf16[128,8], index: 1, kind: input, shape index: {}]
  %s2 = inlined_call_operand.vmem [shape: f32[1,8], index: 2, kind: input, shape index: {}]
  %s3 = inlined_call_operand.vmem [shape: f32[512,8], index: 3, kind: output, shape index: {0}]
  %s4 = inlined_call_operand.hbm [shape: f32[8,8], index: 4, kind: output, shape index: {1}]
  %5 = xla_tuple %s3, %s4
  %s6 = sld [smem:[#allocation0]]
  $region38: #{_lambda_.8} parent=0
    _
  %s8 = ssub.s32 1, %s6
  %s9 = scalar_select 0, %s8, %s6
  $region1: #{_lambda_.8} parent=0
    #allocation2 [shape = 'u8[4096]{0}', space=vmem, size = 0x1000, scoped, tag = 'output window, operand 1, single buffered']
    #allocation3 [shape = 's32[1]{0}', space=sflag, size = 0x4, scoped, tag = 'scoped memory for _lambda_.8']
    %10 = vsyncpa [#allocation3], 0
    // Predicated region
    $region2: #{_lambda_.8} parent=1 // pred_check
      _
    $region3: #{_lambda_.8} parent=1 // pred_check_branch
      %12 = sbr.rel (0) target = $region5
    $region4: #{_lambda_.8} parent=1 // pred_region
      _
    $region5: #{_lambda_.8} parent=1 // pred_fallthru
      _
    // Predicated region
    $region6: #{_lambda_.8} parent=1 // pred_check
      _
    $region7: #{_lambda_.8} parent=1 // pred_check_branch
      %14 = sbr.rel (0) target = $region9
    $region8: #{_lambda_.8} parent=1 // pred_region
      _
    $region9: #{_lambda_.8} parent=1 // pred_fallthru
      _
    // Predicated region
    $region10: #{_lambda_.8} parent=1 // pred_check
      _
    $region11: #{_lambda_.8} parent=1 // pred_check_branch
      %16 = sbr.rel (0) target = $region13
    $region12: #{_lambda_.8} parent=1 // pred_region
      _
    $region13: #{_lambda_.8} parent=1 // pred_fallthru
      _
    %p17 = scmp.eq.s32.totalorder 0, 0
    // Predicated region
    $region14: #{_lambda_.8} parent=1 // pred_check
      %p18 = pneg %p17
    $region15: #{_lambda_.8} parent=1 // pred_check_branch
      %20 = sbr.rel (%p18) target = $region17
    $region16: #{_lambda_.8} parent=1 // pred_region
      %vm21 = vcmask 64512
      %22 = vst.msk [vmem:[%s3] sm:$0xff] %vm21, 0.0
      %23 = vst.msk [vmem:[%s3 + $0x8] sm:$0xff] %vm21, 0.0
      %24 = vst.msk [vmem:[%s3 + $0x10] sm:$0xff] %vm21, 0.0
      %25 = vst.msk [vmem:[%s3 + $0x18] sm:$0xff] %vm21, 0.0
      %26 = vst.msk [vmem:[%s3 + $0x20] sm:$0xff] %vm21, 0.0
      %27 = vst.msk [vmem:[%s3 + $0x28] sm:$0xff] %vm21, 0.0
      %28 = vst.msk [vmem:[%s3 + $0x30] sm:$0xff] %vm21, 0.0
      %29 = vst.msk [vmem:[%s3 + $0x38] sm:$0xff] %vm21, 0.0
      %30 = vst.msk [vmem:[%s3 + $0x40] sm:$0xff] %vm21, 0.0
      %31 = vst.msk [vmem:[%s3 + $0x48] sm:$0xff] %vm21, 0.0
      %32 = vst.msk [vmem:[%s3 + $0x50] sm:$0xff] %vm21, 0.0
      %33 = vst.msk [vmem:[%s3 + $0x58] sm:$0xff] %vm21, 0.0
      %34 = vst.msk [vmem:[%s3 + $0x60] sm:$0xff] %vm21, 0.0
      %35 = vst.msk [vmem:[%s3 + $0x68] sm:$0xff] %vm21, 0.0
      %36 = vst.msk [vmem:[%s3 + $0x70] sm:$0xff] %vm21, 0.0
      %37 = vst.msk [vmem:[%s3 + $0x78] sm:$0xff] %vm21, 0.0
      %38 = vst.msk [vmem:[%s3 + $0x80] sm:$0xff] %vm21, 0.0
      %39 = vst.msk [vmem:[%s3 + $0x88] sm:$0xff] %vm21, 0.0
      %40 = vst.msk [vmem:[%s3 + $0x90] sm:$0xff] %vm21, 0.0
      %41 = vst.msk [vmem:[%s3 + $0x98] sm:$0xff] %vm21, 0.0
      %42 = vst.msk [vmem:[%s3 + $0xa0] sm:$0xff] %vm21, 0.0
      %43 = vst.msk [vmem:[%s3 + $0xa8] sm:$0xff] %vm21, 0.0
      %44 = vst.msk [vmem:[%s3 + $0xb0] sm:$0xff] %vm21, 0.0
      %45 = vst.msk [vmem:[%s3 + $0xb8] sm:$0xff] %vm21, 0.0
      %46 = vst.msk [vmem:[%s3 + $0xc0] sm:$0xff] %vm21, 0.0
      %47 = vst.msk [vmem:[%s3 + $0xc8] sm:$0xff] %vm21, 0.0
      %48 = vst.msk [vmem:[%s3 + $0xd0] sm:$0xff] %vm21, 0.0
      %49 = vst.msk [vmem:[%s3 + $0xd8] sm:$0xff] %vm21, 0.0
      %50 = vst.msk [vmem:[%s3 + $0xe0] sm:$0xff] %vm21, 0.0
      %51 = vst.msk [vmem:[%s3 + $0xe8] sm:$0xff] %vm21, 0.0
      %52 = vst.msk [vmem:[%s3 + $0xf0] sm:$0xff] %vm21, 0.0
      %53 = vst.msk [vmem:[%s3 + $0xf8] sm:$0xff] %vm21, 0.0
      %54 = vst.msk [vmem:[%s3 + $0x100] sm:$0xff] %vm21, 0.0
      %55 = vst.msk [vmem:[%s3 + $0x108] sm:$0xff] %vm21, 0.0
      %56 = vst.msk [vmem:[%s3 + $0x110] sm:$0xff] %vm21, 0.0
      %57 = vst.msk [vmem:[%s3 + $0x118] sm:$0xff] %vm21, 0.0
      %58 = vst.msk [vmem:[%s3 + $0x120] sm:$0xff] %vm21, 0.0
      %59 = vst.msk [vmem:[%s3 + $0x128] sm:$0xff] %vm21, 0.0
      %60 = vst.msk [vmem:[%s3 + $0x130] sm:$0xff] %vm21, 0.0
      %61 = vst.msk [vmem:[%s3 + $0x138] sm:$0xff] %vm21, 0.0
      %62 = vst.msk [vmem:[%s3 + $0x140] sm:$0xff] %vm21, 0.0
      %63 = vst.msk [vmem:[%s3 + $0x148] sm:$0xff] %vm21, 0.0
      %64 = vst.msk [vmem:[%s3 + $0x150] sm:$0xff] %vm21, 0.0
      %65 = vst.msk [vmem:[%s3 + $0x158] sm:$0xff] %vm21, 0.0
      %66 = vst.msk [vmem:[%s3 + $0x160] sm:$0xff] %vm21, 0.0
      %67 = vst.msk [vmem:[%s3 + $0x168] sm:$0xff] %vm21, 0.0
      %68 = vst.msk [vmem:[%s3 + $0x170] sm:$0xff] %vm21, 0.0
      %69 = vst.msk [vmem:[%s3 + $0x178] sm:$0xff] %vm21, 0.0
      %70 = vst.msk [vmem:[%s3 + $0x180] sm:$0xff] %vm21, 0.0
      %71 = vst.msk [vmem:[%s3 + $0x188] sm:$0xff] %vm21, 0.0
      %72 = vst.msk [vmem:[%s3 + $0x190] sm:$0xff] %vm21, 0.0
      %73 = vst.msk [vmem:[%s3 + $0x198] sm:$0xff] %vm21, 0.0
      %74 = vst.msk [vmem:[%s3 + $0x1a0] sm:$0xff] %vm21, 0.0
      %75 = vst.msk [vmem:[%s3 + $0x1a8] sm:$0xff] %vm21, 0.0
      %76 = vst.msk [vmem:[%s3 + $0x1b0] sm:$0xff] %vm21, 0.0
      %77 = vst.msk [vmem:[%s3 + $0x1b8] sm:$0xff] %vm21, 0.0
      %78 = vst.msk [vmem:[%s3 + $0x1c0] sm:$0xff] %vm21, 0.0
      %79 = vst.msk [vmem:[%s3 + $0x1c8] sm:$0xff] %vm21, 0.0
      %80 = vst.msk [vmem:[%s3 + $0x1d0] sm:$0xff] %vm21, 0.0
      %81 = vst.msk [vmem:[%s3 + $0x1d8] sm:$0xff] %vm21, 0.0
      %82 = vst.msk [vmem:[%s3 + $0x1e0] sm:$0xff] %vm21, 0.0
      %83 = vst.msk [vmem:[%s3 + $0x1e8] sm:$0xff] %vm21, 0.0
      %84 = vst.msk [vmem:[%s3 + $0x1f0] sm:$0xff] %vm21, 0.0
      %85 = vst.msk [vmem:[%s3 + $0x1f8] sm:$0xff] %vm21, 0.0
    $region17: #{_lambda_.8} parent=1 // pred_fallthru
      _
    %v86 = vld [vmem:[%s3] sm:$0xff]
    %v87 = vld [vmem:[%s3 + $0x8] sm:$0xff]
    %v88 = vld [vmem:[%s3 + $0x10] sm:$0xff]
    %v89 = vld [vmem:[%s3 + $0x18] sm:$0xff]
    %v90 = vld [vmem:[%s3 + $0x20] sm:$0xff]
    %v91 = vld [vmem:[%s3 + $0x28] sm:$0xff]
    %v92 = vld [vmem:[%s3 + $0x30] sm:$0xff]
    %v93 = vld [vmem:[%s3 + $0x38] sm:$0xff]
    %v94 = vld [vmem:[%s3 + $0x40] sm:$0xff]
    %v95 = vld [vmem:[%s3 + $0x48] sm:$0xff]
    %v96 = vld [vmem:[%s3 + $0x50] sm:$0xff]
    %v97 = vld [vmem:[%s3 + $0x58] sm:$0xff]
    %v98 = vld [vmem:[%s3 + $0x60] sm:$0xff]
    %v99 = vld [vmem:[%s3 + $0x68] sm:$0xff]
    %v100 = vld [vmem:[%s3 + $0x70] sm:$0xff]
    %v101 = vld [vmem:[%s3 + $0x78] sm:$0xff]
    %v102 = vld [vmem:[%s3 + $0x80] sm:$0xff]
    %v103 = vld [vmem:[%s3 + $0x88] sm:$0xff]
    %v104 = vld [vmem:[%s3 + $0x90] sm:$0xff]
    %v105 = vld [vmem:[%s3 + $0x98] sm:$0xff]
    %v106 = vld [vmem:[%s3 + $0xa0] sm:$0xff]
    %v107 = vld [vmem:[%s3 + $0xa8] sm:$0xff]
    %v108 = vld [vmem:[%s3 + $0xb0] sm:$0xff]
    %v109 = vld [vmem:[%s3 + $0xb8] sm:$0xff]
    %v110 = vld [vmem:[%s3 + $0xc0] sm:$0xff]
    %v111 = vld [vmem:[%s3 + $0xc8] sm:$0xff]
    %v112 = vld [vmem:[%s3 + $0xd0] sm:$0xff]
    %v113 = vld [vmem:[%s3 + $0xd8] sm:$0xff]
    %v114 = vld [vmem:[%s3 + $0xe0] sm:$0xff]
    %v115 = vld [vmem:[%s3 + $0xe8] sm:$0xff]
    %v116 = vld [vmem:[%s3 + $0xf0] sm:$0xff]
    %v117 = vld [vmem:[%s3 + $0xf8] sm:$0xff]
    %v118 = vld [vmem:[%s3 + $0x100] sm:$0xff]
    %v119 = vld [vmem:[%s3 + $0x108] sm:$0xff]
    %v120 = vld [vmem:[%s3 + $0x110] sm:$0xff]
    %v121 = vld [vmem:[%s3 + $0x118] sm:$0xff]
    %v122 = vld [vmem:[%s3 + $0x120] sm:$0xff]
    %v123 = vld [vmem:[%s3 + $0x128] sm:$0xff]
    %v124 = vld [vmem:[%s3 + $0x130] sm:$0xff]
    %v125 = vld [vmem:[%s3 + $0x138] sm:$0xff]
    %v126 = vld [vmem:[%s3 + $0x140] sm:$0xff]
    %v127 = vld [vmem:[%s3 + $0x148] sm:$0xff]
    %v128 = vld [vmem:[%s3 + $0x150] sm:$0xff]
    %v129 = vld [vmem:[%s3 + $0x158] sm:$0xff]
    %v130 = vld [vmem:[%s3 + $0x160] sm:$0xff]
    %v131 = vld [vmem:[%s3 + $0x168] sm:$0xff]
    %v132 = vld [vmem:[%s3 + $0x170] sm:$0xff]
    %v133 = vld [vmem:[%s3 + $0x178] sm:$0xff]
    %v134 = vld [vmem:[%s3 + $0x180] sm:$0xff]
    %v135 = vld [vmem:[%s3 + $0x188] sm:$0xff]
    %v136 = vld [vmem:[%s3 + $0x190] sm:$0xff]
    %v137 = vld [vmem:[%s3 + $0x198] sm:$0xff]
    %v138 = vld [vmem:[%s3 + $0x1a0] sm:$0xff]
    %v139 = vld [vmem:[%s3 + $0x1a8] sm:$0xff]
    %v140 = vld [vmem:[%s3 + $0x1b0] sm:$0xff]
    %v141 = vld [vmem:[%s3 + $0x1b8] sm:$0xff]
    %v142 = vld [vmem:[%s3 + $0x1c0] sm:$0xff]
    %v143 = vld [vmem:[%s3 + $0x1c8] sm:$0xff]
    %v144 = vld [vmem:[%s3 + $0x1d0] sm:$0xff]
    %v145 = vld [vmem:[%s3 + $0x1d8] sm:$0xff]
    %v146 = vld [vmem:[%s3 + $0x1e0] sm:$0xff]
    %v147 = vld [vmem:[%s3 + $0x1e8] sm:$0xff]
    %v148 = vld [vmem:[%s3 + $0x1f0] sm:$0xff]
    %v149 = vld [vmem:[%s3 + $0x1f8] sm:$0xff]
    %v150 = vld [vmem:[%s0] sm:$0xf]
    %v151 = vld [vmem:[%s0 + $0x4] sm:$0xf]
    %v152 = vld [vmem:[%s0 + $0x8] sm:$0xf]
    %v153 = vld [vmem:[%s0 + $0xc] sm:$0xf]
    %v154 = vld [vmem:[%s0 + $0x10] sm:$0xf]
    %v155 = vld [vmem:[%s0 + $0x14] sm:$0xf]
    %v156 = vld [vmem:[%s0 + $0x18] sm:$0xf]
    %v157 = vld [vmem:[%s0 + $0x1c] sm:$0xf]
    %v158 = vld [vmem:[%s0 + $0x20] sm:$0xf]
    %v159 = vld [vmem:[%s0 + $0x24] sm:$0xf]
    %v160 = vld [vmem:[%s0 + $0x28] sm:$0xf]
    %v161 = vld [vmem:[%s0 + $0x2c] sm:$0xf]
    %v162 = vld [vmem:[%s0 + $0x30] sm:$0xf]
    %v163 = vld [vmem:[%s0 + $0x34] sm:$0xf]
    %v164 = vld [vmem:[%s0 + $0x38] sm:$0xf]
    %v165 = vld [vmem:[%s0 + $0x3c] sm:$0xf]
    %v166 = vld [vmem:[%s0 + $0x40] sm:$0xf]
    %v167 = vld [vmem:[%s0 + $0x44] sm:$0xf]
    %v168 = vld [vmem:[%s0 + $0x48] sm:$0xf]
    %v169 = vld [vmem:[%s0 + $0x4c] sm:$0xf]
    %v170 = vld [vmem:[%s0 + $0x50] sm:$0xf]
    %v171 = vld [vmem:[%s0 + $0x54] sm:$0xf]
    %v172 = vld [vmem:[%s0 + $0x58] sm:$0xf]
    %v173 = vld [vmem:[%s0 + $0x5c] sm:$0xf]
    %v174 = vld [vmem:[%s0 + $0x60] sm:$0xf]
    %v175 = vld [vmem:[%s0 + $0x64] sm:$0xf]
    %v176 = vld [vmem:[%s0 + $0x68] sm:$0xf]
    %v177 = vld [vmem:[%s0 + $0x6c] sm:$0xf]
    %v178 = vld [vmem:[%s0 + $0x70] sm:$0xf]
    %v179 = vld [vmem:[%s0 + $0x74] sm:$0xf]
    %v180 = vld [vmem:[%s0 + $0x78] sm:$0xf]
    %v181 = vld [vmem:[%s0 + $0x7c] sm:$0xf]
    %v182 = vld [vmem:[%s0 + $0x80] sm:$0xf]
    %v183 = vld [vmem:[%s0 + $0x84] sm:$0xf]
    %v184 = vld [vmem:[%s0 + $0x88] sm:$0xf]
    %v185 = vld [vmem:[%s0 + $0x8c] sm:$0xf]
    %v186 = vld [vmem:[%s0 + $0x90] sm:$0xf]
    %v187 = vld [vmem:[%s0 + $0x94] sm:$0xf]
    %v188 = vld [vmem:[%s0 + $0x98] sm:$0xf]
    %v189 = vld [vmem:[%s0 + $0x9c] sm:$0xf]
    %v190 = vld [vmem:[%s0 + $0xa0] sm:$0xf]
    %v191 = vld [vmem:[%s0 + $0xa4] sm:$0xf]
    %v192 = vld [vmem:[%s0 + $0xa8] sm:$0xf]
    %v193 = vld [vmem:[%s0 + $0xac] sm:$0xf]
    %v194 = vld [vmem:[%s0 + $0xb0] sm:$0xf]
    %v195 = vld [vmem:[%s0 + $0xb4] sm:$0xf]
    %v196 = vld [vmem:[%s0 + $0xb8] sm:$0xf]
    %v197 = vld [vmem:[%s0 + $0xbc] sm:$0xf]
    %v198 = vld [vmem:[%s0 + $0xc0] sm:$0xf]
    %v199 = vld [vmem:[%s0 + $0xc4] sm:$0xf]
    %v200 = vld [vmem:[%s0 + $0xc8] sm:$0xf]
    %v201 = vld [vmem:[%s0 + $0xcc] sm:$0xf]
    %v202 = vld [vmem:[%s0 + $0xd0] sm:$0xf]
    %v203 = vld [vmem:[%s0 + $0xd4] sm:$0xf]
    %v204 = vld [vmem:[%s0 + $0xd8] sm:$0xf]
    %v205 = vld [vmem:[%s0 + $0xdc] sm:$0xf]
    %v206 = vld [vmem:[%s0 + $0xe0] sm:$0xf]
    %v207 = vld [vmem:[%s0 + $0xe4] sm:$0xf]
    %v208 = vld [vmem:[%s0 + $0xe8] sm:$0xf]
    %v209 = vld [vmem:[%s0 + $0xec] sm:$0xf]
    %v210 = vld [vmem:[%s0 + $0xf0] sm:$0xf]
    %v211 = vld [vmem:[%s0 + $0xf4] sm:$0xf]
    %v212 = vld [vmem:[%s0 + $0xf8] sm:$0xf]
    %v213 = vld [vmem:[%s0 + $0xfc] sm:$0xf]
    %v214 = vld [vmem:[%s1] sm:$0xf]
    %v215 = vld [vmem:[%s1 + $0x4] sm:$0xf]
    %v216 = vld [vmem:[%s1 + $0x8] sm:$0xf]
    %v217 = vld [vmem:[%s1 + $0xc] sm:$0xf]
    %v218 = vld [vmem:[%s1 + $0x10] sm:$0xf]
    %v219 = vld [vmem:[%s1 + $0x14] sm:$0xf]
    %v220 = vld [vmem:[%s1 + $0x18] sm:$0xf]
    %v221 = vld [vmem:[%s1 + $0x1c] sm:$0xf]
    %v222 = vld [vmem:[%s1 + $0x20] sm:$0xf]
    %v223 = vld [vmem:[%s1 + $0x24] sm:$0xf]
    %v224 = vld [vmem:[%s1 + $0x28] sm:$0xf]
    %v225 = vld [vmem:[%s1 + $0x2c] sm:$0xf]
    %v226 = vld [vmem:[%s1 + $0x30] sm:$0xf]
    %v227 = vld [vmem:[%s1 + $0x34] sm:$0xf]
    %v228 = vld [vmem:[%s1 + $0x38] sm:$0xf]
    %v229 = vld [vmem:[%s1 + $0x3c] sm:$0xf]
    %v294 = vunpack.c.l.b16 %v150
    %v295 = vunpack.c.l.b16 %v151
    %v296 = vunpack.c.l.b16 %v152
    %v297 = vunpack.c.l.b16 %v153
    %v298 = vunpack.c.l.b16 %v154
    %v299 = vunpack.c.l.b16 %v155
    %v300 = vunpack.c.l.b16 %v156
    %v301 = vunpack.c.l.b16 %v157
    %v302 = vunpack.c.l.b16 %v158
    %v303 = vunpack.c.l.b16 %v159
    %v304 = vunpack.c.l.b16 %v160
    %v305 = vunpack.c.l.b16 %v161
    %v306 = vunpack.c.l.b16 %v162
    %v307 = vunpack.c.l.b16 %v163
    %v308 = vunpack.c.l.b16 %v164
    %v309 = vunpack.c.l.b16 %v165
    %v310 = vunpack.c.l.b16 %v166
    %v311 = vunpack.c.l.b16 %v167
    %v312 = vunpack.c.l.b16 %v168
    %v313 = vunpack.c.l.b16 %v169
    %v314 = vunpack.c.l.b16 %v170
    %v315 = vunpack.c.l.b16 %v171
    %v316 = vunpack.c.l.b16 %v172
    %v317 = vunpack.c.l.b16 %v173
    %v318 = vunpack.c.l.b16 %v174
    %v319 = vunpack.c.l.b16 %v175
    %v320 = vunpack.c.l.b16 %v176
    %v321 = vunpack.c.l.b16 %v177
    %v322 = vunpack.c.l.b16 %v178
    %v323 = vunpack.c.l.b16 %v179
    %v324 = vunpack.c.l.b16 %v180
    %v325 = vunpack.c.l.b16 %v181
    %v326 = vunpack.c.l.b16 %v182
    %v327 = vunpack.c.l.b16 %v183
    %v328 = vunpack.c.l.b16 %v184
    %v329 = vunpack.c.l.b16 %v185
    %v330 = vunpack.c.l.b16 %v186
    %v331 = vunpack.c.l.b16 %v187
    %v332 = vunpack.c.l.b16 %v188
    %v333 = vunpack.c.l.b16 %v189
    %v334 = vunpack.c.l.b16 %v190
    %v335 = vunpack.c.l.b16 %v191
    %v336 = vunpack.c.l.b16 %v192
    %v337 = vunpack.c.l.b16 %v193
    %v338 = vunpack.c.l.b16 %v194
    %v339 = vunpack.c.l.b16 %v195
    %v340 = vunpack.c.l.b16 %v196
    %v341 = vunpack.c.l.b16 %v197
    %v342 = vunpack.c.l.b16 %v198
    %v343 = vunpack.c.l.b16 %v199
    %v344 = vunpack.c.l.b16 %v200
    %v345 = vunpack.c.l.b16 %v201
    %v346 = vunpack.c.l.b16 %v202
    %v347 = vunpack.c.l.b16 %v203
    %v348 = vunpack.c.l.b16 %v204
    %v349 = vunpack.c.l.b16 %v205
    %v350 = vunpack.c.l.b16 %v206
    %v351 = vunpack.c.l.b16 %v207
    %v352 = vunpack.c.l.b16 %v208
    %v353 = vunpack.c.l.b16 %v209
    %v354 = vunpack.c.l.b16 %v210
    %v355 = vunpack.c.l.b16 %v211
    %v356 = vunpack.c.l.b16 %v212
    %v357 = vunpack.c.l.b16 %v213
    %v358 = vpack.c.b16 %v295, %v294
    %v359 = vpack.c.b16 %v297, %v296
    %v360 = vpack.c.b16 %v299, %v298
    %v361 = vpack.c.b16 %v301, %v300
    %v362 = vpack.c.b16 %v303, %v302
    %v363 = vpack.c.b16 %v305, %v304
    %v364 = vpack.c.b16 %v307, %v306
    %v365 = vpack.c.b16 %v309, %v308
    %v366 = vpack.c.b16 %v311, %v310
    %v367 = vpack.c.b16 %v313, %v312
    %v368 = vpack.c.b16 %v315, %v314
    %v369 = vpack.c.b16 %v317, %v316
    %v370 = vpack.c.b16 %v319, %v318
    %v371 = vpack.c.b16 %v321, %v320
    %v372 = vpack.c.b16 %v323, %v322
    %v373 = vpack.c.b16 %v325, %v324
    %v374 = vpack.c.b16 %v327, %v326
    %v375 = vpack.c.b16 %v329, %v328
    %v376 = vpack.c.b16 %v331, %v330
    %v377 = vpack.c.b16 %v333, %v332
    %v378 = vpack.c.b16 %v335, %v334
    %v379 = vpack.c.b16 %v337, %v336
    %v380 = vpack.c.b16 %v339, %v338
    %v381 = vpack.c.b16 %v341, %v340
    %v382 = vpack.c.b16 %v343, %v342
    %v383 = vpack.c.b16 %v345, %v344
    %v384 = vpack.c.b16 %v347, %v346
    %v385 = vpack.c.b16 %v349, %v348
    %v386 = vpack.c.b16 %v351, %v350
    %v387 = vpack.c.b16 %v353, %v352
    %v388 = vpack.c.b16 %v355, %v354
    %v389 = vpack.c.b16 %v357, %v356
    %v438 = vunpack.c.l.b16 %v214
    %v439 = vunpack.c.l.b16 %v215
    %v440 = vunpack.c.l.b16 %v216
    %v441 = vunpack.c.l.b16 %v217
    %v442 = vunpack.c.l.b16 %v218
    %v443 = vunpack.c.l.b16 %v219
    %v444 = vunpack.c.l.b16 %v220
    %v445 = vunpack.c.l.b16 %v221
    %v446 = vunpack.c.l.b16 %v222
    %v447 = vunpack.c.l.b16 %v223
    %v448 = vunpack.c.l.b16 %v224
    %v449 = vunpack.c.l.b16 %v225
    %v450 = vunpack.c.l.b16 %v226
    %v451 = vunpack.c.l.b16 %v227
    %v452 = vunpack.c.l.b16 %v228
    %v453 = vunpack.c.l.b16 %v229
    %v454 = vpack.c.b16 %v439, %v438
    %v455 = vpack.c.b16 %v441, %v440
    %v456 = vpack.c.b16 %v443, %v442
    %v457 = vpack.c.b16 %v445, %v444
    %v458 = vpack.c.b16 %v447, %v446
    %v459 = vpack.c.b16 %v449, %v448
    %v460 = vpack.c.b16 %v451, %v450
    %v461 = vpack.c.b16 %v453, %v452
    %470 = vmatpush.bf16.msra.mxu0 %v461
    %471 = vmatpush.bf16.msra.mxu0 %v460
    %472 = vmatpush.bf16.msra.mxu0 %v459
    %473 = vmatpush.bf16.msra.mxu0 %v458
    %474 = vmatpush.bf16.msra.mxu0 %v457
    %475 = vmatpush.bf16.msra.mxu0 %v456
    %476 = vmatpush.bf16.msra.mxu0 %v455
    %477 = vmatpush.bf16.msra.mxu0 %v454
    %478 = vmatmul.bf16.gmra.mxu0 %v358
    %v479 = vpop.f32.mrf.mxu0
    %v480 = vadd.f32 0.0, %v479
    %v481 = vpop.f32.mrf.mxu0
    %v482 = vadd.f32 0.0, %v481
    %483 = vmatmul.bf16.gmra.mxu0 %v359
    %v484 = vpop.f32.mrf.mxu0
    %v485 = vadd.f32 0.0, %v484
    %v486 = vpop.f32.mrf.mxu0
    %v487 = vadd.f32 0.0, %v486
    %488 = vmatmul.bf16.gmra.mxu0 %v360
    %v489 = vpop.f32.mrf.mxu0
    %v490 = vadd.f32 0.0, %v489
    %v491 = vpop.f32.mrf.mxu0
    %v492 = vadd.f32 0.0, %v491
    %493 = vmatmul.bf16.gmra.mxu0 %v361
    %v494 = vpop.f32.mrf.mxu0
    %v495 = vadd.f32 0.0, %v494
    %v496 = vpop.f32.mrf.mxu0
    %v497 = vadd.f32 0.0, %v496
    %498 = vmatmul.bf16.gmra.mxu0 %v362
    %v499 = vpop.f32.mrf.mxu0
    %v500 = vadd.f32 0.0, %v499
    %v501 = vpop.f32.mrf.mxu0
    %v502 = vadd.f32 0.0, %v501
    %503 = vmatmul.bf16.gmra.mxu0 %v363
    %v504 = vpop.f32.mrf.mxu0
    %v505 = vadd.f32 0.0, %v504
    %v506 = vpop.f32.mrf.mxu0
    %v507 = vadd.f32 0.0, %v506
    %508 = vmatmul.bf16.gmra.mxu0 %v364
    %v509 = vpop.f32.mrf.mxu0
    %v510 = vadd.f32 0.0, %v509
    %v511 = vpop.f32.mrf.mxu0
    %v512 = vadd.f32 0.0, %v511
    %513 = vmatmul.bf16.gmra.mxu0 %v365
    %v514 = vpop.f32.mrf.mxu0
    %v515 = vadd.f32 0.0, %v514
    %v516 = vpop.f32.mrf.mxu0
    %v517 = vadd.f32 0.0, %v516
    %518 = vmatmul.bf16.gmra.mxu0 %v366
    %v519 = vpop.f32.mrf.mxu0
    %v520 = vadd.f32 0.0, %v519
    %v521 = vpop.f32.mrf.mxu0
    %v522 = vadd.f32 0.0, %v521
    %523 = vmatmul.bf16.gmra.mxu0 %v367
    %v524 = vpop.f32.mrf.mxu0
    %v525 = vadd.f32 0.0, %v524
    %v526 = vpop.f32.mrf.mxu0
    %v527 = vadd.f32 0.0, %v526
    %528 = vmatmul.bf16.gmra.mxu0 %v368
    %v529 = vpop.f32.mrf.mxu0
    %v530 = vadd.f32 0.0, %v529
    %v531 = vpop.f32.mrf.mxu0
    %v532 = vadd.f32 0.0, %v531
    %533 = vmatmul.bf16.gmra.mxu0 %v369
    %v534 = vpop.f32.mrf.mxu0
    %v535 = vadd.f32 0.0, %v534
    %v536 = vpop.f32.mrf.mxu0
    %v537 = vadd.f32 0.0, %v536
    %538 = vmatmul.bf16.gmra.mxu0 %v370
    %v539 = vpop.f32.mrf.mxu0
    %v540 = vadd.f32 0.0, %v539
    %v541 = vpop.f32.mrf.mxu0
    %v542 = vadd.f32 0.0, %v541
    %543 = vmatmul.bf16.gmra.mxu0 %v371
    %v544 = vpop.f32.mrf.mxu0
    %v545 = vadd.f32 0.0, %v544
    %v546 = vpop.f32.mrf.mxu0
    %v547 = vadd.f32 0.0, %v546
    %548 = vmatmul.bf16.gmra.mxu0 %v372
    %v549 = vpop.f32.mrf.mxu0
    %v550 = vadd.f32 0.0, %v549
    %v551 = vpop.f32.mrf.mxu0
    %v552 = vadd.f32 0.0, %v551
    %553 = vmatmul.bf16.gmra.mxu0 %v373
    %v554 = vpop.f32.mrf.mxu0
    %v555 = vadd.f32 0.0, %v554
    %v556 = vpop.f32.mrf.mxu0
    %v557 = vadd.f32 0.0, %v556
    %558 = vmatmul.bf16.gmra.mxu0 %v374
    %v559 = vpop.f32.mrf.mxu0
    %v560 = vadd.f32 0.0, %v559
    %v561 = vpop.f32.mrf.mxu0
    %v562 = vadd.f32 0.0, %v561
    %563 = vmatmul.bf16.gmra.mxu0 %v375
    %v564 = vpop.f32.mrf.mxu0
    %v565 = vadd.f32 0.0, %v564
    %v566 = vpop.f32.mrf.mxu0
    %v567 = vadd.f32 0.0, %v566
    %568 = vmatmul.bf16.gmra.mxu0 %v376
    %v569 = vpop.f32.mrf.mxu0
    %v570 = vadd.f32 0.0, %v569
    %v571 = vpop.f32.mrf.mxu0
    %v572 = vadd.f32 0.0, %v571
    %573 = vmatmul.bf16.gmra.mxu0 %v377
    %v574 = vpop.f32.mrf.mxu0
    %v575 = vadd.f32 0.0, %v574
    %v576 = vpop.f32.mrf.mxu0
    %v577 = vadd.f32 0.0, %v576
    %578 = vmatmul.bf16.gmra.mxu0 %v378
    %v579 = vpop.f32.mrf.mxu0
    %v580 = vadd.f32 0.0, %v579
    %v581 = vpop.f32.mrf.mxu0
    %v582 = vadd.f32 0.0, %v581
    %583 = vmatmul.bf16.gmra.mxu0 %v379
    %v584 = vpop.f32.mrf.mxu0
    %v585 = vadd.f32 0.0, %v584
    %v586 = vpop.f32.mrf.mxu0
    %v587 = vadd.f32 0.0, %v586
    %588 = vmatmul.bf16.gmra.mxu0 %v380
    %v589 = vpop.f32.mrf.mxu0
    %v590 = vadd.f32 0.0, %v589
    %v591 = vpop.f32.mrf.mxu0
    %v592 = vadd.f32 0.0, %v591
    %593 = vmatmul.bf16.gmra.mxu0 %v381
    %v594 = vpop.f32.mrf.mxu0
    %v595 = vadd.f32 0.0, %v594
    %v596 = vpop.f32.mrf.mxu0
    %v597 = vadd.f32 0.0, %v596
    %598 = vmatmul.bf16.gmra.mxu0 %v382
    %v599 = vpop.f32.mrf.mxu0
    %v600 = vadd.f32 0.0, %v599
    %v601 = vpop.f32.mrf.mxu0
    %v602 = vadd.f32 0.0, %v601
    %603 = vmatmul.bf16.gmra.mxu0 %v383
    %v604 = vpop.f32.mrf.mxu0
    %v605 = vadd.f32 0.0, %v604
    %v606 = vpop.f32.mrf.mxu0
    %v607 = vadd.f32 0.0, %v606
    %608 = vmatmul.bf16.gmra.mxu0 %v384
    %v609 = vpop.f32.mrf.mxu0
    %v610 = vadd.f32 0.0, %v609
    %v611 = vpop.f32.mrf.mxu0
    %v612 = vadd.f32 0.0, %v611
    %613 = vmatmul.bf16.gmra.mxu0 %v385
    %v614 = vpop.f32.mrf.mxu0
    %v615 = vadd.f32 0.0, %v614
    %v616 = vpop.f32.mrf.mxu0
    %v617 = vadd.f32 0.0, %v616
    %618 = vmatmul.bf16.gmra.mxu0 %v386
    %v619 = vpop.f32.mrf.mxu0
    %v620 = vadd.f32 0.0, %v619
    %v621 = vpop.f32.mrf.mxu0
    %v622 = vadd.f32 0.0, %v621
    %623 = vmatmul.bf16.gmra.mxu0 %v387
    %v624 = vpop.f32.mrf.mxu0
    %v625 = vadd.f32 0.0, %v624
    %v626 = vpop.f32.mrf.mxu0
    %v627 = vadd.f32 0.0, %v626
    %628 = vmatmul.bf16.gmra.mxu0 %v388
    %v629 = vpop.f32.mrf.mxu0
    %v630 = vadd.f32 0.0, %v629
    %v631 = vpop.f32.mrf.mxu0
    %v632 = vadd.f32 0.0, %v631
    %633 = vmatmul.bf16.gmra.mxu0 %v389
    %v634 = vpop.f32.mrf.mxu0
    %v635 = vadd.f32 0.0, %v634
    %v636 = vpop.f32.mrf.mxu0
    %v637 = vadd.f32 0.0, %v636
    %638 = vdwg.mxu0
    %v639 = vadd.f32 %v86, %v480
    %v640 = vadd.f32 %v87, %v482
    %v641 = vadd.f32 %v88, %v485
    %v642 = vadd.f32 %v89, %v487
    %v643 = vadd.f32 %v90, %v490
    %v644 = vadd.f32 %v91, %v492
    %v645 = vadd.f32 %v92, %v495
    %v646 = vadd.f32 %v93, %v497
    %v647 = vadd.f32 %v94, %v500
    %v648 = vadd.f32 %v95, %v502
    %v649 = vadd.f32 %v96, %v505
    %v650 = vadd.f32 %v97, %v507
    %v651 = vadd.f32 %v98, %v510
    %v652 = vadd.f32 %v99, %v512
    %v653 = vadd.f32 %v100, %v515
    %v654 = vadd.f32 %v101, %v517
    %v655 = vadd.f32 %v102, %v520
    %v656 = vadd.f32 %v103, %v522
    %v657 = vadd.f32 %v104, %v525
    %v658 = vadd.f32 %v105, %v527
    %v659 = vadd.f32 %v106, %v530
    %v660 = vadd.f32 %v107, %v532
    %v661 = vadd.f32 %v108, %v535
    %v662 = vadd.f32 %v109, %v537
    %v663 = vadd.f32 %v110, %v540
    %v664 = vadd.f32 %v111, %v542
    %v665 = vadd.f32 %v112, %v545
    %v666 = vadd.f32 %v113, %v547
    %v667 = vadd.f32 %v114, %v550
    %v668 = vadd.f32 %v115, %v552
    %v669 = vadd.f32 %v116, %v555
    %v670 = vadd.f32 %v117, %v557
    %v671 = vadd.f32 %v118, %v560
    %v672 = vadd.f32 %v119, %v562
    %v673 = vadd.f32 %v120, %v565
    %v674 = vadd.f32 %v121, %v567
    %v675 = vadd.f32 %v122, %v570
    %v676 = vadd.f32 %v123, %v572
    %v677 = vadd.f32 %v124, %v575
    %v678 = vadd.f32 %v125, %v577
    %v679 = vadd.f32 %v126, %v580
    %v680 = vadd.f32 %v127, %v582
    %v681 = vadd.f32 %v128, %v585
    %v682 = vadd.f32 %v129, %v587
    %v683 = vadd.f32 %v130, %v590
    %v684 = vadd.f32 %v131, %v592
    %v685 = vadd.f32 %v132, %v595
    %v686 = vadd.f32 %v133, %v597
    %v687 = vadd.f32 %v134, %v600
    %v688 = vadd.f32 %v135, %v602
    %v689 = vadd.f32 %v136, %v605
    %v690 = vadd.f32 %v137, %v607
    %v691 = vadd.f32 %v138, %v610
    %v692 = vadd.f32 %v139, %v612
    %v693 = vadd.f32 %v140, %v615
    %v694 = vadd.f32 %v141, %v617
    %v695 = vadd.f32 %v142, %v620
    %v696 = vadd.f32 %v143, %v622
    %v697 = vadd.f32 %v144, %v625
    %v698 = vadd.f32 %v145, %v627
    %v699 = vadd.f32 %v146, %v630
    %v700 = vadd.f32 %v147, %v632
    %v701 = vadd.f32 %v148, %v635
    %v702 = vadd.f32 %v149, %v637
    %vm703 = vcmask 64512
    %704 = vst.msk [vmem:[%s3] sm:$0xff] %vm703, %v639
    %705 = vst.msk [vmem:[%s3 + $0x8] sm:$0xff] %vm703, %v640
    %706 = vst.msk [vmem:[%s3 + $0x10] sm:$0xff] %vm703, %v641
    %707 = vst.msk [vmem:[%s3 + $0x18] sm:$0xff] %vm703, %v642
    %708 = vst.msk [vmem:[%s3 + $0x20] sm:$0xff] %vm703, %v643
    %709 = vst.msk [vmem:[%s3 + $0x28] sm:$0xff] %vm703, %v644
    %710 = vst.msk [vmem:[%s3 + $0x30] sm:$0xff] %vm703, %v645
    %711 = vst.msk [vmem:[%s3 + $0x38] sm:$0xff] %vm703, %v646
    %712 = vst.msk [vmem:[%s3 + $0x40] sm:$0xff] %vm703, %v647
    %713 = vst.msk [vmem:[%s3 + $0x48] sm:$0xff] %vm703, %v648
    %714 = vst.msk [vmem:[%s3 + $0x50] sm:$0xff] %vm703, %v649
    %715 = vst.msk [vmem:[%s3 + $0x58] sm:$0xff] %vm703, %v650
    %716 = vst.msk [vmem:[%s3 + $0x60] sm:$0xff] %vm703, %v651
    %717 = vst.msk [vmem:[%s3 + $0x68] sm:$0xff] %vm703, %v652
    %718 = vst.msk [vmem:[%s3 + $0x70] sm:$0xff] %vm703, %v653
    %719 = vst.msk [vmem:[%s3 + $0x78] sm:$0xff] %vm703, %v654
    %720 = vst.msk [vmem:[%s3 + $0x80] sm:$0xff] %vm703, %v655
    %721 = vst.msk [vmem:[%s3 + $0x88] sm:$0xff] %vm703, %v656
    %722 = vst.msk [vmem:[%s3 + $0x90] sm:$0xff] %vm703, %v657
    %723 = vst.msk [vmem:[%s3 + $0x98] sm:$0xff] %vm703, %v658
    %724 = vst.msk [vmem:[%s3 + $0xa0] sm:$0xff] %vm703, %v659
    %725 = vst.msk [vmem:[%s3 + $0xa8] sm:$0xff] %vm703, %v660
    %726 = vst.msk [vmem:[%s3 + $0xb0] sm:$0xff] %vm703, %v661
    %727 = vst.msk [vmem:[%s3 + $0xb8] sm:$0xff] %vm703, %v662
    %728 = vst.msk [vmem:[%s3 + $0xc0] sm:$0xff] %vm703, %v663
    %729 = vst.msk [vmem:[%s3 + $0xc8] sm:$0xff] %vm703, %v664
    %730 = vst.msk [vmem:[%s3 + $0xd0] sm:$0xff] %vm703, %v665
    %731 = vst.msk [vmem:[%s3 + $0xd8] sm:$0xff] %vm703, %v666
    %732 = vst.msk [vmem:[%s3 + $0xe0] sm:$0xff] %vm703, %v667
    %733 = vst.msk [vmem:[%s3 + $0xe8] sm:$0xff] %vm703, %v668
    %734 = vst.msk [vmem:[%s3 + $0xf0] sm:$0xff] %vm703, %v669
    %735 = vst.msk [vmem:[%s3 + $0xf8] sm:$0xff] %vm703, %v670
    %736 = vst.msk [vmem:[%s3 + $0x100] sm:$0xff] %vm703, %v671
    %737 = vst.msk [vmem:[%s3 + $0x108] sm:$0xff] %vm703, %v672
    %738 = vst.msk [vmem:[%s3 + $0x110] sm:$0xff] %vm703, %v673
    %739 = vst.msk [vmem:[%s3 + $0x118] sm:$0xff] %vm703, %v674
    %740 = vst.msk [vmem:[%s3 + $0x120] sm:$0xff] %vm703, %v675
    %741 = vst.msk [vmem:[%s3 + $0x128] sm:$0xff] %vm703, %v676
    %742 = vst.msk [vmem:[%s3 + $0x130] sm:$0xff] %vm703, %v677
    %743 = vst.msk [vmem:[%s3 + $0x138] sm:$0xff] %vm703, %v678
    %744 = vst.msk [vmem:[%s3 + $0x140] sm:$0xff] %vm703, %v679
    %745 = vst.msk [vmem:[%s3 + $0x148] sm:$0xff] %vm703, %v680
    %746 = vst.msk [vmem:[%s3 + $0x150] sm:$0xff] %vm703, %v681
    %747 = vst.msk [vmem:[%s3 + $0x158] sm:$0xff] %vm703, %v682
    %748 = vst.msk [vmem:[%s3 + $0x160] sm:$0xff] %vm703, %v683
    %749 = vst.msk [vmem:[%s3 + $0x168] sm:$0xff] %vm703, %v684
    %750 = vst.msk [vmem:[%s3 + $0x170] sm:$0xff] %vm703, %v685
    %751 = vst.msk [vmem:[%s3 + $0x178] sm:$0xff] %vm703, %v686
    %752 = vst.msk [vmem:[%s3 + $0x180] sm:$0xff] %vm703, %v687
    %753 = vst.msk [vmem:[%s3 + $0x188] sm:$0xff] %vm703, %v688
    %754 = vst.msk [vmem:[%s3 + $0x190] sm:$0xff] %vm703, %v689
    %755 = vst.msk [vmem:[%s3 + $0x198] sm:$0xff] %vm703, %v690
    %756 = vst.msk [vmem:[%s3 + $0x1a0] sm:$0xff] %vm703, %v691
    %757 = vst.msk [vmem:[%s3 + $0x1a8] sm:$0xff] %vm703, %v692
    %758 = vst.msk [vmem:[%s3 + $0x1b0] sm:$0xff] %vm703, %v693
    %759 = vst.msk [vmem:[%s3 + $0x1b8] sm:$0xff] %vm703, %v694
    %760 = vst.msk [vmem:[%s3 + $0x1c0] sm:$0xff] %vm703, %v695
    %761 = vst.msk [vmem:[%s3 + $0x1c8] sm:$0xff] %vm703, %v696
    %762 = vst.msk [vmem:[%s3 + $0x1d0] sm:$0xff] %vm703, %v697
    %763 = vst.msk [vmem:[%s3 + $0x1d8] sm:$0xff] %vm703, %v698
    %764 = vst.msk [vmem:[%s3 + $0x1e0] sm:$0xff] %vm703, %v699
    %765 = vst.msk [vmem:[%s3 + $0x1e8] sm:$0xff] %vm703, %v700
    %766 = vst.msk [vmem:[%s3 + $0x1f0] sm:$0xff] %vm703, %v701
    %767 = vst.msk [vmem:[%s3 + $0x1f8] sm:$0xff] %vm703, %v702
    // Predicated region
    $region18: #{_lambda_.8} parent=1 // pred_check
      %p768 = pneg %p17
    $region19: #{_lambda_.8} parent=1 // pred_check_branch
      %770 = sbr.rel (%p768) target = $region21
    $region20: #{_lambda_.8} parent=1 // pred_region
      %v771 = vld [vmem:[%s3] sm:$0xff]
      %v772 = vld [vmem:[%s3 + $0x8] sm:$0xff]
      %v773 = vld [vmem:[%s3 + $0x10] sm:$0xff]
      %v774 = vld [vmem:[%s3 + $0x18] sm:$0xff]
      %v775 = vld [vmem:[%s3 + $0x20] sm:$0xff]
      %v776 = vld [vmem:[%s3 + $0x28] sm:$0xff]
      %v777 = vld [vmem:[%s3 + $0x30] sm:$0xff]
      %v778 = vld [vmem:[%s3 + $0x38] sm:$0xff]
      %v779 = vld [vmem:[%s3 + $0x40] sm:$0xff]
      %v780 = vld [vmem:[%s3 + $0x48] sm:$0xff]
      %v781 = vld [vmem:[%s3 + $0x50] sm:$0xff]
      %v782 = vld [vmem:[%s3 + $0x58] sm:$0xff]
      %v783 = vld [vmem:[%s3 + $0x60] sm:$0xff]
      %v784 = vld [vmem:[%s3 + $0x68] sm:$0xff]
      %v785 = vld [vmem:[%s3 + $0x70] sm:$0xff]
      %v786 = vld [vmem:[%s3 + $0x78] sm:$0xff]
      %v787 = vld [vmem:[%s3 + $0x80] sm:$0xff]
      %v788 = vld [vmem:[%s3 + $0x88] sm:$0xff]
      %v789 = vld [vmem:[%s3 + $0x90] sm:$0xff]
      %v790 = vld [vmem:[%s3 + $0x98] sm:$0xff]
      %v791 = vld [vmem:[%s3 + $0xa0] sm:$0xff]
      %v792 = vld [vmem:[%s3 + $0xa8] sm:$0xff]
      %v793 = vld [vmem:[%s3 + $0xb0] sm:$0xff]
      %v794 = vld [vmem:[%s3 + $0xb8] sm:$0xff]
      %v795 = vld [vmem:[%s3 + $0xc0] sm:$0xff]
      %v796 = vld [vmem:[%s3 + $0xc8] sm:$0xff]
      %v797 = vld [vmem:[%s3 + $0xd0] sm:$0xff]
      %v798 = vld [vmem:[%s3 + $0xd8] sm:$0xff]
      %v799 = vld [vmem:[%s3 + $0xe0] sm:$0xff]
      %v800 = vld [vmem:[%s3 + $0xe8] sm:$0xff]
      %v801 = vld [vmem:[%s3 + $0xf0] sm:$0xff]
      %v802 = vld [vmem:[%s3 + $0xf8] sm:$0xff]
      %v803 = vld [vmem:[%s3 + $0x100] sm:$0xff]
      %v804 = vld [vmem:[%s3 + $0x108] sm:$0xff]
      %v805 = vld [vmem:[%s3 + $0x110] sm:$0xff]
      %v806 = vld [vmem:[%s3 + $0x118] sm:$0xff]
      %v807 = vld [vmem:[%s3 + $0x120] sm:$0xff]
      %v808 = vld [vmem:[%s3 + $0x128] sm:$0xff]
      %v809 = vld [vmem:[%s3 + $0x130] sm:$0xff]
      %v810 = vld [vmem:[%s3 + $0x138] sm:$0xff]
      %v811 = vld [vmem:[%s3 + $0x140] sm:$0xff]
      %v812 = vld [vmem:[%s3 + $0x148] sm:$0xff]
      %v813 = vld [vmem:[%s3 + $0x150] sm:$0xff]
      %v814 = vld [vmem:[%s3 + $0x158] sm:$0xff]
      %v815 = vld [vmem:[%s3 + $0x160] sm:$0xff]
      %v816 = vld [vmem:[%s3 + $0x168] sm:$0xff]
      %v817 = vld [vmem:[%s3 + $0x170] sm:$0xff]
      %v818 = vld [vmem:[%s3 + $0x178] sm:$0xff]
      %v819 = vld [vmem:[%s3 + $0x180] sm:$0xff]
      %v820 = vld [vmem:[%s3 + $0x188] sm:$0xff]
      %v821 = vld [vmem:[%s3 + $0x190] sm:$0xff]
      %v822 = vld [vmem:[%s3 + $0x198] sm:$0xff]
      %v823 = vld [vmem:[%s3 + $0x1a0] sm:$0xff]
      %v824 = vld [vmem:[%s3 + $0x1a8] sm:$0xff]
      %v825 = vld [vmem:[%s3 + $0x1b0] sm:$0xff]
      %v826 = vld [vmem:[%s3 + $0x1b8] sm:$0xff]
      %v827 = vld [vmem:[%s3 + $0x1c0] sm:$0xff]
      %v828 = vld [vmem:[%s3 + $0x1c8] sm:$0xff]
      %v829 = vld [vmem:[%s3 + $0x1d0] sm:$0xff]
      %v830 = vld [vmem:[%s3 + $0x1d8] sm:$0xff]
      %v831 = vld [vmem:[%s3 + $0x1e0] sm:$0xff]
      %v832 = vld [vmem:[%s3 + $0x1e8] sm:$0xff]
      %v833 = vld [vmem:[%s3 + $0x1f0] sm:$0xff]
      %v834 = vld [vmem:[%s3 + $0x1f8] sm:$0xff]
      %v835 = vld [vmem:[%s2] sm:$0x1]
      %v837 = vperm.slane %v835, 0
      %v839 = vadd.f32 %v771, %v837
      %v840 = vadd.f32 %v772, %v837
      %v841 = vadd.f32 %v773, %v837
      %v842 = vadd.f32 %v774, %v837
      %v843 = vadd.f32 %v775, %v837
      %v844 = vadd.f32 %v776, %v837
      %v845 = vadd.f32 %v777, %v837
      %v846 = vadd.f32 %v778, %v837
      %v847 = vadd.f32 %v779, %v837
      %v848 = vadd.f32 %v780, %v837
      %v849 = vadd.f32 %v781, %v837
      %v850 = vadd.f32 %v782, %v837
      %v851 = vadd.f32 %v783, %v837
      %v852 = vadd.f32 %v784, %v837
      %v853 = vadd.f32 %v785, %v837
      %v854 = vadd.f32 %v786, %v837
      %v855 = vadd.f32 %v787, %v837
      %v856 = vadd.f32 %v788, %v837
      %v857 = vadd.f32 %v789, %v837
      %v858 = vadd.f32 %v790, %v837
      %v859 = vadd.f32 %v791, %v837
      %v860 = vadd.f32 %v792, %v837
      %v861 = vadd.f32 %v793, %v837
      %v862 = vadd.f32 %v794, %v837
      %v863 = vadd.f32 %v795, %v837
      %v864 = vadd.f32 %v796, %v837
      %v865 = vadd.f32 %v797, %v837
      %v866 = vadd.f32 %v798, %v837
      %v867 = vadd.f32 %v799, %v837
      %v868 = vadd.f32 %v800, %v837
      %v869 = vadd.f32 %v801, %v837
      %v870 = vadd.f32 %v802, %v837
      %v871 = vadd.f32 %v803, %v837
      %v872 = vadd.f32 %v804, %v837
      %v873 = vadd.f32 %v805, %v837
      %v874 = vadd.f32 %v806, %v837
      %v875 = vadd.f32 %v807, %v837
      %v876 = vadd.f32 %v808, %v837
      %v877 = vadd.f32 %v809, %v837
      %v878 = vadd.f32 %v810, %v837
      %v879 = vadd.f32 %v811, %v837
      %v880 = vadd.f32 %v812, %v837
      %v881 = vadd.f32 %v813, %v837
      %v882 = vadd.f32 %v814, %v837
      %v883 = vadd.f32 %v815, %v837
      %v884 = vadd.f32 %v816, %v837
      %v885 = vadd.f32 %v817, %v837
      %v886 = vadd.f32 %v818, %v837
      %v887 = vadd.f32 %v819, %v837
      %v888 = vadd.f32 %v820, %v837
      %v889 = vadd.f32 %v821, %v837
      %v890 = vadd.f32 %v822, %v837
      %v891 = vadd.f32 %v823, %v837
      %v892 = vadd.f32 %v824, %v837
      %v893 = vadd.f32 %v825, %v837
      %v894 = vadd.f32 %v826, %v837
      %v895 = vadd.f32 %v827, %v837
      %v896 = vadd.f32 %v828, %v837
      %v897 = vadd.f32 %v829, %v837
      %v898 = vadd.f32 %v830, %v837
      %v899 = vadd.f32 %v831, %v837
      %v900 = vadd.f32 %v832, %v837
      %v901 = vadd.f32 %v833, %v837
      %v902 = vadd.f32 %v834, %v837
      %vm903 = vcmp.ge.f32.partialorder %v839, 0.0
      %vm904 = vcmp.ge.f32.partialorder %v840, 0.0
      %vm905 = vcmp.ge.f32.partialorder %v841, 0.0
      %vm906 = vcmp.ge.f32.partialorder %v842, 0.0
      %vm907 = vcmp.ge.f32.partialorder %v843, 0.0
      %vm908 = vcmp.ge.f32.partialorder %v844, 0.0
      %vm909 = vcmp.ge.f32.partialorder %v845, 0.0
      %vm910 = vcmp.ge.f32.partialorder %v846, 0.0
      %vm911 = vcmp.ge.f32.partialorder %v847, 0.0
      %vm912 = vcmp.ge.f32.partialorder %v848, 0.0
      %vm913 = vcmp.ge.f32.partialorder %v849, 0.0
      %vm914 = vcmp.ge.f32.partialorder %v850, 0.0
      %vm915 = vcmp.ge.f32.partialorder %v851, 0.0
      %vm916 = vcmp.ge.f32.partialorder %v852, 0.0
      %vm917 = vcmp.ge.f32.partialorder %v853, 0.0
      %vm918 = vcmp.ge.f32.partialorder %v854, 0.0
      %vm919 = vcmp.ge.f32.partialorder %v855, 0.0
      %vm920 = vcmp.ge.f32.partialorder %v856, 0.0
      %vm921 = vcmp.ge.f32.partialorder %v857, 0.0
      %vm922 = vcmp.ge.f32.partialorder %v858, 0.0
      %vm923 = vcmp.ge.f32.partialorder %v859, 0.0
      %vm924 = vcmp.ge.f32.partialorder %v860, 0.0
      %vm925 = vcmp.ge.f32.partialorder %v861, 0.0
      %vm926 = vcmp.ge.f32.partialorder %v862, 0.0
      %vm927 = vcmp.ge.f32.partialorder %v863, 0.0
      %vm928 = vcmp.ge.f32.partialorder %v864, 0.0
      %vm929 = vcmp.ge.f32.partialorder %v865, 0.0
      %vm930 = vcmp.ge.f32.partialorder %v866, 0.0
      %vm931 = vcmp.ge.f32.partialorder %v867, 0.0
      %vm932 = vcmp.ge.f32.partialorder %v868, 0.0
      %vm933 = vcmp.ge.f32.partialorder %v869, 0.0
      %vm934 = vcmp.ge.f32.partialorder %v870, 0.0
      %vm935 = vcmp.ge.f32.partialorder %v871, 0.0
      %vm936 = vcmp.ge.f32.partialorder %v872, 0.0
      %vm937 = vcmp.ge.f32.partialorder %v873, 0.0
      %vm938 = vcmp.ge.f32.partialorder %v874, 0.0
      %vm939 = vcmp.ge.f32.partialorder %v875, 0.0
      %vm940 = vcmp.ge.f32.partialorder %v876, 0.0
      %vm941 = vcmp.ge.f32.partialorder %v877, 0.0
      %vm942 = vcmp.ge.f32.partialorder %v878, 0.0
      %vm943 = vcmp.ge.f32.partialorder %v879, 0.0
      %vm944 = vcmp.ge.f32.partialorder %v880, 0.0
      %vm945 = vcmp.ge.f32.partialorder %v881, 0.0
      %vm946 = vcmp.ge.f32.partialorder %v882, 0.0
      %vm947 = vcmp.ge.f32.partialorder %v883, 0.0
      %vm948 = vcmp.ge.f32.partialorder %v884, 0.0
      %vm949 = vcmp.ge.f32.partialorder %v885, 0.0
      %vm950 = vcmp.ge.f32.partialorder %v886, 0.0
      %vm951 = vcmp.ge.f32.partialorder %v887, 0.0
      %vm952 = vcmp.ge.f32.partialorder %v888, 0.0
      %vm953 = vcmp.ge.f32.partialorder %v889, 0.0
      %vm954 = vcmp.ge.f32.partialorder %v890, 0.0
      %vm955 = vcmp.ge.f32.partialorder %v891, 0.0
      %vm956 = vcmp.ge.f32.partialorder %v892, 0.0
      %vm957 = vcmp.ge.f32.partialorder %v893, 0.0
      %vm958 = vcmp.ge.f32.partialorder %v894, 0.0
      %vm959 = vcmp.ge.f32.partialorder %v895, 0.0
      %vm960 = vcmp.ge.f32.partialorder %v896, 0.0
      %vm961 = vcmp.ge.f32.partialorder %v897, 0.0
      %vm962 = vcmp.ge.f32.partialorder %v898, 0.0
      %vm963 = vcmp.ge.f32.partialorder %v899, 0.0
      %vm964 = vcmp.ge.f32.partialorder %v900, 0.0
      %vm965 = vcmp.ge.f32.partialorder %v901, 0.0
      %vm966 = vcmp.ge.f32.partialorder %v902, 0.0
      %v967 = vmul.f32 %v839, 0.2
      %v968 = vmul.f32 %v840, 0.2
      %v969 = vmul.f32 %v841, 0.2
      %v970 = vmul.f32 %v842, 0.2
      %v971 = vmul.f32 %v843, 0.2
      %v972 = vmul.f32 %v844, 0.2
      %v973 = vmul.f32 %v845, 0.2
      %v974 = vmul.f32 %v846, 0.2
      %v975 = vmul.f32 %v847, 0.2
      %v976 = vmul.f32 %v848, 0.2
      %v977 = vmul.f32 %v849, 0.2
      %v978 = vmul.f32 %v850, 0.2
      %v979 = vmul.f32 %v851, 0.2
      %v980 = vmul.f32 %v852, 0.2
      %v981 = vmul.f32 %v853, 0.2
      %v982 = vmul.f32 %v854, 0.2
      %v983 = vmul.f32 %v855, 0.2
      %v984 = vmul.f32 %v856, 0.2
      %v985 = vmul.f32 %v857, 0.2
      %v986 = vmul.f32 %v858, 0.2
      %v987 = vmul.f32 %v859, 0.2
      %v988 = vmul.f32 %v860, 0.2
      %v989 = vmul.f32 %v861, 0.2
      %v990 = vmul.f32 %v862, 0.2
      %v991 = vmul.f32 %v863, 0.2
      %v992 = vmul.f32 %v864, 0.2
      %v993 = vmul.f32 %v865, 0.2
      %v994 = vmul.f32 %v866, 0.2
      %v995 = vmul.f32 %v867, 0.2
      %v996 = vmul.f32 %v868, 0.2
      %v997 = vmul.f32 %v869, 0.2
      %v998 = vmul.f32 %v870, 0.2
      %v999 = vmul.f32 %v871, 0.2
      %v1000 = vmul.f32 %v872, 0.2
      %v1001 = vmul.f32 %v873, 0.2
      %v1002 = vmul.f32 %v874, 0.2
      %v1003 = vmul.f32 %v875, 0.2
      %v1004 = vmul.f32 %v876, 0.2
      %v1005 = vmul.f32 %v877, 0.2
      %v1006 = vmul.f32 %v878, 0.2
      %v1007 = vmul.f32 %v879, 0.2
      %v1008 = vmul.f32 %v880, 0.2
      %v1009 = vmul.f32 %v881, 0.2
      %v1010 = vmul.f32 %v882, 0.2
      %v1011 = vmul.f32 %v883, 0.2
      %v1012 = vmul.f32 %v884, 0.2
      %v1013 = vmul.f32 %v885, 0.2
      %v1014 = vmul.f32 %v886, 0.2
      %v1015 = vmul.f32 %v887, 0.2
      %v1016 = vmul.f32 %v888, 0.2
      %v1017 = vmul.f32 %v889, 0.2
      %v1018 = vmul.f32 %v890, 0.2
      %v1019 = vmul.f32 %v891, 0.2
      %v1020 = vmul.f32 %v892, 0.2
      %v1021 = vmul.f32 %v893, 0.2
      %v1022 = vmul.f32 %v894, 0.2
      %v1023 = vmul.f32 %v895, 0.2
      %v1024 = vmul.f32 %v896, 0.2
      %v1025 = vmul.f32 %v897, 0.2
      %v1026 = vmul.f32 %v898, 0.2
      %v1027 = vmul.f32 %v899, 0.2
      %v1028 = vmul.f32 %v900, 0.2
      %v1029 = vmul.f32 %v901, 0.2
      %v1030 = vmul.f32 %v902, 0.2
      %v1031 = vsel %vm903, %v839, %v967
      %v1032 = vsel %vm904, %v840, %v968
      %v1033 = vsel %vm905, %v841, %v969
      %v1034 = vsel %vm906, %v842, %v970
      %v1035 = vsel %vm907, %v843, %v971
      %v1036 = vsel %vm908, %v844, %v972
      %v1037 = vsel %vm909, %v845, %v973
      %v1038 = vsel %vm910, %v846, %v974
      %v1039 = vsel %vm911, %v847, %v975
      %v1040 = vsel %vm912, %v848, %v976
      %v1041 = vsel %vm913, %v849, %v977
      %v1042 = vsel %vm914, %v850, %v978
      %v1043 = vsel %vm915, %v851, %v979
      %v1044 = vsel %vm916, %v852, %v980
      %v1045 = vsel %vm917, %v853, %v981
      %v1046 = vsel %vm918, %v854, %v982
      %v1047 = vsel %vm919, %v855, %v983
      %v1048 = vsel %vm920, %v856, %v984
      %v1049 = vsel %vm921, %v857, %v985
      %v1050 = vsel %vm922, %v858, %v986
      %v1051 = vsel %vm923, %v859, %v987
      %v1052 = vsel %vm924, %v860, %v988
      %v1053 = vsel %vm925, %v861, %v989
      %v1054 = vsel %vm926, %v862, %v990
      %v1055 = vsel %vm927, %v863, %v991
      %v1056 = vsel %vm928, %v864, %v992
      %v1057 = vsel %vm929, %v865, %v993
      %v1058 = vsel %vm930, %v866, %v994
      %v1059 = vsel %vm931, %v867, %v995
      %v1060 = vsel %vm932, %v868, %v996
      %v1061 = vsel %vm933, %v869, %v997
      %v1062 = vsel %vm934, %v870, %v998
      %v1063 = vsel %vm935, %v871, %v999
      %v1064 = vsel %vm936, %v872, %v1000
      %v1065 = vsel %vm937, %v873, %v1001
      %v1066 = vsel %vm938, %v874, %v1002
      %v1067 = vsel %vm939, %v875, %v1003
      %v1068 = vsel %vm940, %v876, %v1004
      %v1069 = vsel %vm941, %v877, %v1005
      %v1070 = vsel %vm942, %v878, %v1006
      %v1071 = vsel %vm943, %v879, %v1007
      %v1072 = vsel %vm944, %v880, %v1008
      %v1073 = vsel %vm945, %v881, %v1009
      %v1074 = vsel %vm946, %v882, %v1010
      %v1075 = vsel %vm947, %v883, %v1011
      %v1076 = vsel %vm948, %v884, %v1012
      %v1077 = vsel %vm949, %v885, %v1013
      %v1078 = vsel %vm950, %v886, %v1014
      %v1079 = vsel %vm951, %v887, %v1015
      %v1080 = vsel %vm952, %v888, %v1016
      %v1081 = vsel %vm953, %v889, %v1017
      %v1082 = vsel %vm954, %v890, %v1018
      %v1083 = vsel %vm955, %v891, %v1019
      %v1084 = vsel %vm956, %v892, %v1020
      %v1085 = vsel %vm957, %v893, %v1021
      %v1086 = vsel %vm958, %v894, %v1022
      %v1087 = vsel %vm959, %v895, %v1023
      %v1088 = vsel %vm960, %v896, %v1024
      %v1089 = vsel %vm961, %v897, %v1025
      %v1090 = vsel %vm962, %v898, %v1026
      %v1091 = vsel %vm963, %v899, %v1027
      %v1092 = vsel %vm964, %v900, %v1028
      %v1093 = vsel %vm965, %v901, %v1029
      %v1094 = vsel %vm966, %v902, %v1030
      %1095 = vst.msk [vmem:[%s3] sm:$0xff] %vm703, %v1031
      %1096 = vst.msk [vmem:[%s3 + $0x8] sm:$0xff] %vm703, %v1032
      %1097 = vst.msk [vmem:[%s3 + $0x10] sm:$0xff] %vm703, %v1033
      %1098 = vst.msk [vmem:[%s3 + $0x18] sm:$0xff] %vm703, %v1034
      %1099 = vst.msk [vmem:[%s3 + $0x20] sm:$0xff] %vm703, %v1035
      %1100 = vst.msk [vmem:[%s3 + $0x28] sm:$0xff] %vm703, %v1036
      %1101 = vst.msk [vmem:[%s3 + $0x30] sm:$0xff] %vm703, %v1037
      %1102 = vst.msk [vmem:[%s3 + $0x38] sm:$0xff] %vm703, %v1038
      %1103 = vst.msk [vmem:[%s3 + $0x40] sm:$0xff] %vm703, %v1039
      %1104 = vst.msk [vmem:[%s3 + $0x48] sm:$0xff] %vm703, %v1040
      %1105 = vst.msk [vmem:[%s3 + $0x50] sm:$0xff] %vm703, %v1041
      %1106 = vst.msk [vmem:[%s3 + $0x58] sm:$0xff] %vm703, %v1042
      %1107 = vst.msk [vmem:[%s3 + $0x60] sm:$0xff] %vm703, %v1043
      %1108 = vst.msk [vmem:[%s3 + $0x68] sm:$0xff] %vm703, %v1044
      %1109 = vst.msk [vmem:[%s3 + $0x70] sm:$0xff] %vm703, %v1045
      %1110 = vst.msk [vmem:[%s3 + $0x78] sm:$0xff] %vm703, %v1046
      %1111 = vst.msk [vmem:[%s3 + $0x80] sm:$0xff] %vm703, %v1047
      %1112 = vst.msk [vmem:[%s3 + $0x88] sm:$0xff] %vm703, %v1048
      %1113 = vst.msk [vmem:[%s3 + $0x90] sm:$0xff] %vm703, %v1049
      %1114 = vst.msk [vmem:[%s3 + $0x98] sm:$0xff] %vm703, %v1050
      %1115 = vst.msk [vmem:[%s3 + $0xa0] sm:$0xff] %vm703, %v1051
      %1116 = vst.msk [vmem:[%s3 + $0xa8] sm:$0xff] %vm703, %v1052
      %1117 = vst.msk [vmem:[%s3 + $0xb0] sm:$0xff] %vm703, %v1053
      %1118 = vst.msk [vmem:[%s3 + $0xb8] sm:$0xff] %vm703, %v1054
      %1119 = vst.msk [vmem:[%s3 + $0xc0] sm:$0xff] %vm703, %v1055
      %1120 = vst.msk [vmem:[%s3 + $0xc8] sm:$0xff] %vm703, %v1056
      %1121 = vst.msk [vmem:[%s3 + $0xd0] sm:$0xff] %vm703, %v1057
      %1122 = vst.msk [vmem:[%s3 + $0xd8] sm:$0xff] %vm703, %v1058
      %1123 = vst.msk [vmem:[%s3 + $0xe0] sm:$0xff] %vm703, %v1059
      %1124 = vst.msk [vmem:[%s3 + $0xe8] sm:$0xff] %vm703, %v1060
      %1125 = vst.msk [vmem:[%s3 + $0xf0] sm:$0xff] %vm703, %v1061
      %1126 = vst.msk [vmem:[%s3 + $0xf8] sm:$0xff] %vm703, %v1062
      %1127 = vst.msk [vmem:[%s3 + $0x100] sm:$0xff] %vm703, %v1063
      %1128 = vst.msk [vmem:[%s3 + $0x108] sm:$0xff] %vm703, %v1064
      %1129 = vst.msk [vmem:[%s3 + $0x110] sm:$0xff] %vm703, %v1065
      %1130 = vst.msk [vmem:[%s3 + $0x118] sm:$0xff] %vm703, %v1066
      %1131 = vst.msk [vmem:[%s3 + $0x120] sm:$0xff] %vm703, %v1067
      %1132 = vst.msk [vmem:[%s3 + $0x128] sm:$0xff] %vm703, %v1068
      %1133 = vst.msk [vmem:[%s3 + $0x130] sm:$0xff] %vm703, %v1069
      %1134 = vst.msk [vmem:[%s3 + $0x138] sm:$0xff] %vm703, %v1070
      %1135 = vst.msk [vmem:[%s3 + $0x140] sm:$0xff] %vm703, %v1071
      %1136 = vst.msk [vmem:[%s3 + $0x148] sm:$0xff] %vm703, %v1072
      %1137 = vst.msk [vmem:[%s3 + $0x150] sm:$0xff] %vm703, %v1073
      %1138 = vst.msk [vmem:[%s3 + $0x158] sm:$0xff] %vm703, %v1074
      %1139 = vst.msk [vmem:[%s3 + $0x160] sm:$0xff] %vm703, %v1075
      %1140 = vst.msk [vmem:[%s3 + $0x168] sm:$0xff] %vm703, %v1076
      %1141 = vst.msk [vmem:[%s3 + $0x170] sm:$0xff] %vm703, %v1077
      %1142 = vst.msk [vmem:[%s3 + $0x178] sm:$0xff] %vm703, %v1078
      %1143 = vst.msk [vmem:[%s3 + $0x180] sm:$0xff] %vm703, %v1079
      %1144 = vst.msk [vmem:[%s3 + $0x188] sm:$0xff] %vm703, %v1080
      %1145 = vst.msk [vmem:[%s3 + $0x190] sm:$0xff] %vm703, %v1081
      %1146 = vst.msk [vmem:[%s3 + $0x198] sm:$0xff] %vm703, %v1082
      %1147 = vst.msk [vmem:[%s3 + $0x1a0] sm:$0xff] %vm703, %v1083
      %1148 = vst.msk [vmem:[%s3 + $0x1a8] sm:$0xff] %vm703, %v1084
      %1149 = vst.msk [vmem:[%s3 + $0x1b0] sm:$0xff] %vm703, %v1085
      %1150 = vst.msk [vmem:[%s3 + $0x1b8] sm:$0xff] %vm703, %v1086
      %1151 = vst.msk [vmem:[%s3 + $0x1c0] sm:$0xff] %vm703, %v1087
      %1152 = vst.msk [vmem:[%s3 + $0x1c8] sm:$0xff] %vm703, %v1088
      %1153 = vst.msk [vmem:[%s3 + $0x1d0] sm:$0xff] %vm703, %v1089
      %1154 = vst.msk [vmem:[%s3 + $0x1d8] sm:$0xff] %vm703, %v1090
      %1155 = vst.msk [vmem:[%s3 + $0x1e0] sm:$0xff] %vm703, %v1091
      %1156 = vst.msk [vmem:[%s3 + $0x1e8] sm:$0xff] %vm703, %v1092
      %1157 = vst.msk [vmem:[%s3 + $0x1f0] sm:$0xff] %vm703, %v1093
      %1158 = vst.msk [vmem:[%s3 + $0x1f8] sm:$0xff] %vm703, %v1094
    $region21: #{_lambda_.8} parent=1 // pred_fallthru
      _
    // Predicated region
    $region22: #{_lambda_.8} parent=1 // pred_check
      _
    $region23: #{_lambda_.8} parent=1 // pred_check_branch
      %1160 = sbr.rel (0) target = $region25
    $region24: #{_lambda_.8} parent=1 // pred_region
      _
    $region25: #{_lambda_.8} parent=1 // pred_fallthru
      _
    // Predicated region
    $region26: #{_lambda_.8} parent=1 // pred_check
      _
    $region27: #{_lambda_.8} parent=1 // pred_check_branch
      %1162 = sbr.rel (0) target = $region29
    $region28: #{_lambda_.8} parent=1 // pred_region
      %1164 = vsyncadd [#allocation3], 0
      %s1166 = sshll.u32 [#allocation2], 4
      %s1167 = int_to_ptr.vmem [resolvable:$true] %s1166
      %s1168 = sshll.u32 %s4, 4
      %s1169 = int_to_ptr.hbm [resolvable:$true] %s1168
      %1171 = dma.vmem_to_hbm [thread:$0]  %s1167, 128, %s1169, [#allocation3]
    $region29: #{_lambda_.8} parent=1 // pred_fallthru
      _
    // Predicated region
    $region30: #{_lambda_.8} parent=1 // pred_check
      _
    $region31: #{_lambda_.8} parent=1 // pred_check_branch
      %1173 = sbr.rel (0) target = $region33
    $region32: #{_lambda_.8} parent=1 // pred_region
      _
    $region33: #{_lambda_.8} parent=1 // pred_fallthru
      _
    // Predicated region
    $region34: #{_lambda_.8} parent=1 // pred_check
      _
    $region35: #{_lambda_.8} parent=1 // pred_check_branch
      %1175 = sbr.rel (0) target = $region37
    $region36: #{_lambda_.8} parent=1 // pred_region
      %1177 = dma.done [#allocation3], 128
    $region37: #{_lambda_.8} parent=1 // pred_fallthru
      _
    %1178 = vsyncpa [#allocation3], 1

// kernel: _lambda_.9
$region0: #{_lambda_.9}
  #allocation0 [shape = 'u32[]', space=smem, size = 0x4, offset = 0x4, fixed_abs, tag = 'smem constant byte address 0x4 - core index']
  #allocation1 [shape = 'u32[72,128]{1,0:T(1,128)}', space=vmem, size = 0x9000, scoped, tag = 'internal scratch']
  %s0 = inlined_call_operand.vmem [shape: bf16[128,128], index: 0, kind: input, shape index: {}]
  %s1 = inlined_call_operand.vmem [shape: bf16[128,16], index: 1, kind: input, shape index: {}]
  %s2 = inlined_call_operand.vmem [shape: f32[1,16], index: 2, kind: input, shape index: {}]
  %s3 = inlined_call_operand.vmem [shape: f32[128,16], index: 3, kind: output, shape index: {0}]
  %s4 = inlined_call_operand.vmem [shape: f32[8,16], index: 4, kind: output, shape index: {1}]
  %5 = xla_tuple %s3, %s4
  %s6 = sld [smem:[#allocation0]]
  $region38: #{_lambda_.9} parent=0
    _
  %s8 = ssub.s32 1, %s6
  %s9 = scalar_select 0, %s8, %s6
  // Predicated region
  $region2: #{_lambda_.9} parent=0 // pred_check
    _
  $region3: #{_lambda_.9} parent=0 // pred_check_branch
    %11 = sbr.rel (0) target = $region5
  $region4: #{_lambda_.9} parent=0 // pred_region
    _
  $region5: #{_lambda_.9} parent=0 // pred_fallthru
    _
  // Predicated region
  $region6: #{_lambda_.9} parent=0 // pred_check
    _
  $region7: #{_lambda_.9} parent=0 // pred_check_branch
    %13 = sbr.rel (0) target = $region9
  $region8: #{_lambda_.9} parent=0 // pred_region
    _
  $region9: #{_lambda_.9} parent=0 // pred_fallthru
    _
  // Predicated region
  $region10: #{_lambda_.9} parent=0 // pred_check
    _
  $region11: #{_lambda_.9} parent=0 // pred_check_branch
    %15 = sbr.rel (0) target = $region13
  $region12: #{_lambda_.9} parent=0 // pred_region
    _
  $region13: #{_lambda_.9} parent=0 // pred_fallthru
    _
  %p16 = scmp.eq.s32.totalorder 0, 0
  // Predicated region
  $region14: #{_lambda_.9} parent=0 // pred_check
    %p17 = pneg %p16
  $region15: #{_lambda_.9} parent=0 // pred_check_branch
    %19 = sbr.rel (%p17) target = $region17
  $region16: #{_lambda_.9} parent=0 // pred_region
    %vm20 = vcmask 130048
    %21 = vst.msk [vmem:[%s3] sm:$0xff] %vm20, 0.0
    %22 = vst.msk [vmem:[%s3 + $0x8] sm:$0xff] %vm20, 0.0
    %23 = vst.msk [vmem:[%s3 + $0x10] sm:$0xff] %vm20, 0.0
    %24 = vst.msk [vmem:[%s3 + $0x18] sm:$0xff] %vm20, 0.0
    %25 = vst.msk [vmem:[%s3 + $0x20] sm:$0xff] %vm20, 0.0
    %26 = vst.msk [vmem:[%s3 + $0x28] sm:$0xff] %vm20, 0.0
    %27 = vst.msk [vmem:[%s3 + $0x30] sm:$0xff] %vm20, 0.0
    %28 = vst.msk [vmem:[%s3 + $0x38] sm:$0xff] %vm20, 0.0
    %29 = vst.msk [vmem:[%s3 + $0x40] sm:$0xff] %vm20, 0.0
    %30 = vst.msk [vmem:[%s3 + $0x48] sm:$0xff] %vm20, 0.0
    %31 = vst.msk [vmem:[%s3 + $0x50] sm:$0xff] %vm20, 0.0
    %32 = vst.msk [vmem:[%s3 + $0x58] sm:$0xff] %vm20, 0.0
    %33 = vst.msk [vmem:[%s3 + $0x60] sm:$0xff] %vm20, 0.0
    %34 = vst.msk [vmem:[%s3 + $0x68] sm:$0xff] %vm20, 0.0
    %35 = vst.msk [vmem:[%s3 + $0x70] sm:$0xff] %vm20, 0.0
    %36 = vst.msk [vmem:[%s3 + $0x78] sm:$0xff] %vm20, 0.0
  $region17: #{_lambda_.9} parent=0 // pred_fallthru
    _
  %v37 = vld [vmem:[%s3] sm:$0xff]
  %v38 = vld [vmem:[%s3 + $0x8] sm:$0xff]
  %v39 = vld [vmem:[%s3 + $0x10] sm:$0xff]
  %v40 = vld [vmem:[%s3 + $0x18] sm:$0xff]
  %v41 = vld [vmem:[%s3 + $0x20] sm:$0xff]
  %v42 = vld [vmem:[%s3 + $0x28] sm:$0xff]
  %v43 = vld [vmem:[%s3 + $0x30] sm:$0xff]
  %v44 = vld [vmem:[%s3 + $0x38] sm:$0xff]
  %v45 = vld [vmem:[%s3 + $0x40] sm:$0xff]
  %v46 = vld [vmem:[%s3 + $0x48] sm:$0xff]
  %v47 = vld [vmem:[%s3 + $0x50] sm:$0xff]
  %v48 = vld [vmem:[%s3 + $0x58] sm:$0xff]
  %v49 = vld [vmem:[%s3 + $0x60] sm:$0xff]
  %v50 = vld [vmem:[%s3 + $0x68] sm:$0xff]
  %v51 = vld [vmem:[%s3 + $0x70] sm:$0xff]
  %v52 = vld [vmem:[%s3 + $0x78] sm:$0xff]
  %v53 = vld [vmem:[%s0] sm:$0xf]
  %v54 = vld [vmem:[%s0 + $0x4] sm:$0xf]
  %v55 = vld [vmem:[%s0 + $0x8] sm:$0xf]
  %v56 = vld [vmem:[%s0 + $0xc] sm:$0xf]
  %v57 = vld [vmem:[%s0 + $0x10] sm:$0xf]
  %v58 = vld [vmem:[%s0 + $0x14] sm:$0xf]
  %v59 = vld [vmem:[%s0 + $0x18] sm:$0xf]
  %v60 = vld [vmem:[%s0 + $0x1c] sm:$0xf]
  %v61 = vld [vmem:[%s0 + $0x20] sm:$0xf]
  %v62 = vld [vmem:[%s0 + $0x24] sm:$0xf]
  %v63 = vld [vmem:[%s0 + $0x28] sm:$0xf]
  %v64 = vld [vmem:[%s0 + $0x2c] sm:$0xf]
  %v65 = vld [vmem:[%s0 + $0x30] sm:$0xf]
  %v66 = vld [vmem:[%s0 + $0x34] sm:$0xf]
  %v67 = vld [vmem:[%s0 + $0x38] sm:$0xf]
  %v68 = vld [vmem:[%s0 + $0x3c] sm:$0xf]
  %v69 = vld [vmem:[%s1] sm:$0xf]
  %v70 = vld [vmem:[%s1 + $0x4] sm:$0xf]
  %v71 = vld [vmem:[%s1 + $0x8] sm:$0xf]
  %v72 = vld [vmem:[%s1 + $0xc] sm:$0xf]
  %v73 = vld [vmem:[%s1 + $0x10] sm:$0xf]
  %v74 = vld [vmem:[%s1 + $0x14] sm:$0xf]
  %v75 = vld [vmem:[%s1 + $0x18] sm:$0xf]
  %v76 = vld [vmem:[%s1 + $0x1c] sm:$0xf]
  %v77 = vld [vmem:[%s1 + $0x20] sm:$0xf]
  %v78 = vld [vmem:[%s1 + $0x24] sm:$0xf]
  %v79 = vld [vmem:[%s1 + $0x28] sm:$0xf]
  %v80 = vld [vmem:[%s1 + $0x2c] sm:$0xf]
  %v81 = vld [vmem:[%s1 + $0x30] sm:$0xf]
  %v82 = vld [vmem:[%s1 + $0x34] sm:$0xf]
  %v83 = vld [vmem:[%s1 + $0x38] sm:$0xf]
  %v84 = vld [vmem:[%s1 + $0x3c] sm:$0xf]
  %v101 = vunpack.c.l.b16 %v53
  %v102 = vunpack.c.l.b16 %v54
  %v103 = vunpack.c.l.b16 %v55
  %v104 = vunpack.c.l.b16 %v56
  %v105 = vunpack.c.l.b16 %v57
  %v106 = vunpack.c.l.b16 %v58
  %v107 = vunpack.c.l.b16 %v59
  %v108 = vunpack.c.l.b16 %v60
  %v109 = vunpack.c.l.b16 %v61
  %v110 = vunpack.c.l.b16 %v62
  %v111 = vunpack.c.l.b16 %v63
  %v112 = vunpack.c.l.b16 %v64
  %v113 = vunpack.c.l.b16 %v65
  %v114 = vunpack.c.l.b16 %v66
  %v115 = vunpack.c.l.b16 %v67
  %v116 = vunpack.c.l.b16 %v68
  %v117 = vpack.c.b16 %v102, %v101
  %v118 = vpack.c.b16 %v104, %v103
  %v119 = vpack.c.b16 %v106, %v105
  %v120 = vpack.c.b16 %v108, %v107
  %v121 = vpack.c.b16 %v110, %v109
  %v122 = vpack.c.b16 %v112, %v111
  %v123 = vpack.c.b16 %v114, %v113
  %v124 = vpack.c.b16 %v116, %v115
  %v149 = vunpack.c.l.b16 %v69
  %v150 = vunpack.c.l.b16 %v70
  %v151 = vunpack.c.l.b16 %v71
  %v152 = vunpack.c.l.b16 %v72
  %v153 = vunpack.c.l.b16 %v73
  %v154 = vunpack.c.l.b16 %v74
  %v155 = vunpack.c.l.b16 %v75
  %v156 = vunpack.c.l.b16 %v76
  %v157 = vunpack.c.l.b16 %v77
  %v158 = vunpack.c.l.b16 %v78
  %v159 = vunpack.c.l.b16 %v79
  %v160 = vunpack.c.l.b16 %v80
  %v161 = vunpack.c.l.b16 %v81
  %v162 = vunpack.c.l.b16 %v82
  %v163 = vunpack.c.l.b16 %v83
  %v164 = vunpack.c.l.b16 %v84
  %v165 = vpack.c.b16 %v150, %v149
  %v166 = vpack.c.b16 %v152, %v151
  %v167 = vpack.c.b16 %v154, %v153
  %v168 = vpack.c.b16 %v156, %v155
  %v169 = vpack.c.b16 %v158, %v157
  %v170 = vpack.c.b16 %v160, %v159
  %v171 = vpack.c.b16 %v162, %v161
  %v172 = vpack.c.b16 %v164, %v163
  %181 = vmatpush.bf16.msra.mxu0 %v172
  %182 = vmatpush.bf16.msra.mxu0 %v171
  %183 = vmatpush.bf16.msra.mxu0 %v170
  %184 = vmatpush.bf16.msra.mxu0 %v169
  %185 = vmatpush.bf16.msra.mxu0 %v168
  %186 = vmatpush.bf16.msra.mxu0 %v167
  %187 = vmatpush.bf16.msra.mxu0 %v166
  %188 = vmatpush.bf16.msra.mxu0 %v165
  %189 = vmatmul.bf16.gmra.mxu0 %v117
  %v190 = vpop.f32.mrf.mxu0
  %v191 = vadd.f32 0.0, %v190
  %v192 = vpop.f32.mrf.mxu0
  %v193 = vadd.f32 0.0, %v192
  %194 = vmatmul.bf16.gmra.mxu0 %v118
  %v195 = vpop.f32.mrf.mxu0
  %v196 = vadd.f32 0.0, %v195
  %v197 = vpop.f32.mrf.mxu0
  %v198 = vadd.f32 0.0, %v197
  %199 = vmatmul.bf16.gmra.mxu0 %v119
  %v200 = vpop.f32.mrf.mxu0
  %v201 = vadd.f32 0.0, %v200
  %v202 = vpop.f32.mrf.mxu0
  %v203 = vadd.f32 0.0, %v202
  %204 = vmatmul.bf16.gmra.mxu0 %v120
  %v205 = vpop.f32.mrf.mxu0
  %v206 = vadd.f32 0.0, %v205
  %v207 = vpop.f32.mrf.mxu0
  %v208 = vadd.f32 0.0, %v207
  %209 = vmatmul.bf16.gmra.mxu0 %v121
  %v210 = vpop.f32.mrf.mxu0
  %v211 = vadd.f32 0.0, %v210
  %v212 = vpop.f32.mrf.mxu0
  %v213 = vadd.f32 0.0, %v212
  %214 = vmatmul.bf16.gmra.mxu0 %v122
  %v215 = vpop.f32.mrf.mxu0
  %v216 = vadd.f32 0.0, %v215
  %v217 = vpop.f32.mrf.mxu0
  %v218 = vadd.f32 0.0, %v217
  %219 = vmatmul.bf16.gmra.mxu0 %v123
  %v220 = vpop.f32.mrf.mxu0
  %v221 = vadd.f32 0.0, %v220
  %v222 = vpop.f32.mrf.mxu0
  %v223 = vadd.f32 0.0, %v222
  %224 = vmatmul.bf16.gmra.mxu0 %v124
  %v225 = vpop.f32.mrf.mxu0
  %v226 = vadd.f32 0.0, %v225
  %v227 = vpop.f32.mrf.mxu0
  %v228 = vadd.f32 0.0, %v227
  %229 = vdwg.mxu0
  %v230 = vadd.f32 %v37, %v191
  %v231 = vadd.f32 %v38, %v193
  %v232 = vadd.f32 %v39, %v196
  %v233 = vadd.f32 %v40, %v198
  %v234 = vadd.f32 %v41, %v201
  %v235 = vadd.f32 %v42, %v203
  %v236 = vadd.f32 %v43, %v206
  %v237 = vadd.f32 %v44, %v208
  %v238 = vadd.f32 %v45, %v211
  %v239 = vadd.f32 %v46, %v213
  %v240 = vadd.f32 %v47, %v216
  %v241 = vadd.f32 %v48, %v218
  %v242 = vadd.f32 %v49, %v221
  %v243 = vadd.f32 %v50, %v223
  %v244 = vadd.f32 %v51, %v226
  %v245 = vadd.f32 %v52, %v228
  %vm246 = vcmask 130048
  %247 = vst.msk [vmem:[%s3] sm:$0xff] %vm246, %v230
  %248 = vst.msk [vmem:[%s3 + $0x8] sm:$0xff] %vm246, %v231
  %249 = vst.msk [vmem:[%s3 + $0x10] sm:$0xff] %vm246, %v232
  %250 = vst.msk [vmem:[%s3 + $0x18] sm:$0xff] %vm246, %v233
  %251 = vst.msk [vmem:[%s3 + $0x20] sm:$0xff] %vm246, %v234
  %252 = vst.msk [vmem:[%s3 + $0x28] sm:$0xff] %vm246, %v235
  %253 = vst.msk [vmem:[%s3 + $0x30] sm:$0xff] %vm246, %v236
  %254 = vst.msk [vmem:[%s3 + $0x38] sm:$0xff] %vm246, %v237
  %255 = vst.msk [vmem:[%s3 + $0x40] sm:$0xff] %vm246, %v238
  %256 = vst.msk [vmem:[%s3 + $0x48] sm:$0xff] %vm246, %v239
  %257 = vst.msk [vmem:[%s3 + $0x50] sm:$0xff] %vm246, %v240
  %258 = vst.msk [vmem:[%s3 + $0x58] sm:$0xff] %vm246, %v241
  %259 = vst.msk [vmem:[%s3 + $0x60] sm:$0xff] %vm246, %v242
  %260 = vst.msk [vmem:[%s3 + $0x68] sm:$0xff] %vm246, %v243
  %261 = vst.msk [vmem:[%s3 + $0x70] sm:$0xff] %vm246, %v244
  %262 = vst.msk [vmem:[%s3 + $0x78] sm:$0xff] %vm246, %v245
  // Predicated region
  $region18: #{_lambda_.9} parent=0 // pred_check
    %p263 = pneg %p16
  $region19: #{_lambda_.9} parent=0 // pred_check_branch
    %265 = sbr.rel (%p263) target = $region21
  $region20: #{_lambda_.9} parent=0 // pred_region
    %v266 = vld [vmem:[%s3] sm:$0xff]
    %v267 = vld [vmem:[%s3 + $0x8] sm:$0xff]
    %v268 = vld [vmem:[%s3 + $0x10] sm:$0xff]
    %v269 = vld [vmem:[%s3 + $0x18] sm:$0xff]
    %v270 = vld [vmem:[%s3 + $0x20] sm:$0xff]
    %v271 = vld [vmem:[%s3 + $0x28] sm:$0xff]
    %v272 = vld [vmem:[%s3 + $0x30] sm:$0xff]
    %v273 = vld [vmem:[%s3 + $0x38] sm:$0xff]
    %v274 = vld [vmem:[%s3 + $0x40] sm:$0xff]
    %v275 = vld [vmem:[%s3 + $0x48] sm:$0xff]
    %v276 = vld [vmem:[%s3 + $0x50] sm:$0xff]
    %v277 = vld [vmem:[%s3 + $0x58] sm:$0xff]
    %v278 = vld [vmem:[%s3 + $0x60] sm:$0xff]
    %v279 = vld [vmem:[%s3 + $0x68] sm:$0xff]
    %v280 = vld [vmem:[%s3 + $0x70] sm:$0xff]
    %v281 = vld [vmem:[%s3 + $0x78] sm:$0xff]
    %v282 = vld [vmem:[%s2] sm:$0x1]
    %v284 = vperm.slane %v282, 0
    %v286 = vadd.f32 %v266, %v284
    %v287 = vadd.f32 %v267, %v284
    %v288 = vadd.f32 %v268, %v284
    %v289 = vadd.f32 %v269, %v284
    %v290 = vadd.f32 %v270, %v284
    %v291 = vadd.f32 %v271, %v284
    %v292 = vadd.f32 %v272, %v284
    %v293 = vadd.f32 %v273, %v284
    %v294 = vadd.f32 %v274, %v284
    %v295 = vadd.f32 %v275, %v284
    %v296 = vadd.f32 %v276, %v284
    %v297 = vadd.f32 %v277, %v284
    %v298 = vadd.f32 %v278, %v284
    %v299 = vadd.f32 %v279, %v284
    %v300 = vadd.f32 %v280, %v284
    %v301 = vadd.f32 %v281, %v284
    %302 = vst.msk [vmem:[%s3] sm:$0xff] %vm246, %v286
    %303 = vst.msk [vmem:[%s3 + $0x8] sm:$0xff] %vm246, %v287
    %304 = vst.msk [vmem:[%s3 + $0x10] sm:$0xff] %vm246, %v288
    %305 = vst.msk [vmem:[%s3 + $0x18] sm:$0xff] %vm246, %v289
    %306 = vst.msk [vmem:[%s3 + $0x20] sm:$0xff] %vm246, %v290
    %307 = vst.msk [vmem:[%s3 + $0x28] sm:$0xff] %vm246, %v291
    %308 = vst.msk [vmem:[%s3 + $0x30] sm:$0xff] %vm246, %v292
    %309 = vst.msk [vmem:[%s3 + $0x38] sm:$0xff] %vm246, %v293
    %310 = vst.msk [vmem:[%s3 + $0x40] sm:$0xff] %vm246, %v294
    %311 = vst.msk [vmem:[%s3 + $0x48] sm:$0xff] %vm246, %v295
    %312 = vst.msk [vmem:[%s3 + $0x50] sm:$0xff] %vm246, %v296
    %313 = vst.msk [vmem:[%s3 + $0x58] sm:$0xff] %vm246, %v297
    %314 = vst.msk [vmem:[%s3 + $0x60] sm:$0xff] %vm246, %v298
    %315 = vst.msk [vmem:[%s3 + $0x68] sm:$0xff] %vm246, %v299
    %316 = vst.msk [vmem:[%s3 + $0x70] sm:$0xff] %vm246, %v300
    %317 = vst.msk [vmem:[%s3 + $0x78] sm:$0xff] %vm246, %v301
    %s318 = smul.u32 0, 128
    %v319 = vlaneseq
    %v320 = vshrl.u32 %v319, 7
    %v321 = vadd.s32 %v320, 8
    %v322 = vadd.s32 %v320, 16
    %v323 = vadd.s32 %v320, 24
    %v324 = vadd.s32 %v320, 32
    %v325 = vadd.s32 %v320, 40
    %v326 = vadd.s32 %v320, 48
    %v327 = vadd.s32 %v320, 56
    %v328 = vadd.s32 %v320, 64
    %v329 = vadd.s32 %v320, 72
    %v330 = vadd.s32 %v320, 80
    %v331 = vadd.s32 %v320, 88
    %v332 = vadd.s32 %v320, 96
    %v333 = vadd.s32 %v320, 104
    %v334 = vadd.s32 %v320, 112
    %v335 = vadd.s32 %v320, 120
    %v336 = vstv %s318
    %v337 = vadd.s32 %v336, %v320
    %v338 = vadd.s32 %v336, %v321
    %v339 = vadd.s32 %v336, %v322
    %v340 = vadd.s32 %v336, %v323
    %v341 = vadd.s32 %v336, %v324
    %v342 = vadd.s32 %v336, %v325
    %v343 = vadd.s32 %v336, %v326
    %v344 = vadd.s32 %v336, %v327
    %v345 = vadd.s32 %v336, %v328
    %v346 = vadd.s32 %v336, %v329
    %v347 = vadd.s32 %v336, %v330
    %v348 = vadd.s32 %v336, %v331
    %v349 = vadd.s32 %v336, %v332
    %v350 = vadd.s32 %v336, %v333
    %v351 = vadd.s32 %v336, %v334
    %v352 = vadd.s32 %v336, %v335
    %vm353 = vcmp.lt.s32.totalorder %v337, 128
    %vm354 = vcmp.lt.s32.totalorder %v338, 128
    %vm355 = vcmp.lt.s32.totalorder %v339, 128
    %vm356 = vcmp.lt.s32.totalorder %v340, 128
    %vm357 = vcmp.lt.s32.totalorder %v341, 128
    %vm358 = vcmp.lt.s32.totalorder %v342, 128
    %vm359 = vcmp.lt.s32.totalorder %v343, 128
    %vm360 = vcmp.lt.s32.totalorder %v344, 128
    %vm361 = vcmp.lt.s32.totalorder %v345, 128
    %vm362 = vcmp.lt.s32.totalorder %v346, 128
    %vm363 = vcmp.lt.s32.totalorder %v347, 128
    %vm364 = vcmp.lt.s32.totalorder %v348, 128
    %vm365 = vcmp.lt.s32.totalorder %v349, 128
    %vm366 = vcmp.lt.s32.totalorder %v350, 128
    %vm367 = vcmp.lt.s32.totalorder %v351, 128
    %vm368 = vcmp.lt.s32.totalorder %v352, 128
    %v369 = vsel %vm353, %v286, 0.0
    %v370 = vsel %vm354, %v287, 0.0
    %v371 = vsel %vm355, %v288, 0.0
    %v372 = vsel %vm356, %v289, 0.0
    %v373 = vsel %vm357, %v290, 0.0
    %v374 = vsel %vm358, %v291, 0.0
    %v375 = vsel %vm359, %v292, 0.0
    %v376 = vsel %vm360, %v293, 0.0
    %v377 = vsel %vm361, %v294, 0.0
    %v378 = vsel %vm362, %v295, 0.0
    %v379 = vsel %vm363, %v296, 0.0
    %v380 = vsel %vm364, %v297, 0.0
    %v381 = vsel %vm365, %v298, 0.0
    %v382 = vsel %vm366, %v299, 0.0
    %v383 = vsel %vm367, %v300, 0.0
    %v384 = vsel %vm368, %v301, 0.0
    %v385 = vsel %vm246, %v369, 0.0
    %v386 = vsel %vm246, %v370, 0.0
    %v387 = vadd.f32 %v385, %v386
    %v388 = vsel %vm246, %v371, 0.0
    %v389 = vadd.f32 %v387, %v388
    %v390 = vsel %vm246, %v372, 0.0
    %v391 = vadd.f32 %v389, %v390
    %v392 = vsel %vm246, %v373, 0.0
    %v393 = vadd.f32 %v391, %v392
    %v394 = vsel %vm246, %v374, 0.0
    %v395 = vadd.f32 %v393, %v394
    %v396 = vsel %vm246, %v375, 0.0
    %v397 = vadd.f32 %v395, %v396
    %v398 = vsel %vm246, %v376, 0.0
    %v399 = vadd.f32 %v397, %v398
    %v400 = vsel %vm246, %v377, 0.0
    %v401 = vadd.f32 %v399, %v400
    %v402 = vsel %vm246, %v378, 0.0
    %v403 = vadd.f32 %v401, %v402
    %v404 = vsel %vm246, %v379, 0.0
    %v405 = vadd.f32 %v403, %v404
    %v406 = vsel %vm246, %v380, 0.0
    %v407 = vadd.f32 %v405, %v406
    %v408 = vsel %vm246, %v381, 0.0
    %v409 = vadd.f32 %v407, %v408
    %v410 = vsel %vm246, %v382, 0.0
    %v411 = vadd.f32 %v409, %v410
    %v412 = vsel %vm246, %v383, 0.0
    %v413 = vadd.f32 %v411, %v412
    %v414 = vsel %vm246, %v384, 0.0
    %v415 = vadd.f32 %v413, %v414
    %v416 = vrot.slane %v415, 4
    %v417 = vadd.f32 %v415, %v416
    %v418 = vrot.slane %v417, 2
    %v419 = vadd.f32 %v417, %v418
    %v420 = vrot.slane %v419, 1
    %v421 = vadd.f32 %v419, %v420
    %vm422 = vcmask 122880
    %423 = vst.msk [vmem:[%s4] sm:$0x1] %vm422, %v421
    %v424 = vmul.f32 %v369, %v369
    %v425 = vmul.f32 %v370, %v370
    %v426 = vmul.f32 %v371, %v371
    %v427 = vmul.f32 %v372, %v372
    %v428 = vmul.f32 %v373, %v373
    %v429 = vmul.f32 %v374, %v374
    %v430 = vmul.f32 %v375, %v375
    %v431 = vmul.f32 %v376, %v376
    %v432 = vmul.f32 %v377, %v377
    %v433 = vmul.f32 %v378, %v378
    %v434 = vmul.f32 %v379, %v379
    %v435 = vmul.f32 %v380, %v380
    %v436 = vmul.f32 %v381, %v381
    %v437 = vmul.f32 %v382, %v382
    %v438 = vmul.f32 %v383, %v383
    %v439 = vmul.f32 %v384, %v384
    %v440 = vsel %vm246, %v424, 0.0
    %v441 = vsel %vm246, %v425, 0.0
    %v442 = vadd.f32 %v440, %v441
    %v443 = vsel %vm246, %v426, 0.0
    %v444 = vadd.f32 %v442, %v443
    %v445 = vsel %vm246, %v427, 0.0
    %v446 = vadd.f32 %v444, %v445
    %v447 = vsel %vm246, %v428, 0.0
    %v448 = vadd.f32 %v446, %v447
    %v449 = vsel %vm246, %v429, 0.0
    %v450 = vadd.f32 %v448, %v449
    %v451 = vsel %vm246, %v430, 0.0
    %v452 = vadd.f32 %v450, %v451
    %v453 = vsel %vm246, %v431, 0.0
    %v454 = vadd.f32 %v452, %v453
    %v455 = vsel %vm246, %v432, 0.0
    %v456 = vadd.f32 %v454, %v455
    %v457 = vsel %vm246, %v433, 0.0
    %v458 = vadd.f32 %v456, %v457
    %v459 = vsel %vm246, %v434, 0.0
    %v460 = vadd.f32 %v458, %v459
    %v461 = vsel %vm246, %v435, 0.0
    %v462 = vadd.f32 %v460, %v461
    %v463 = vsel %vm246, %v436, 0.0
    %v464 = vadd.f32 %v462, %v463
    %v465 = vsel %vm246, %v437, 0.0
    %v466 = vadd.f32 %v464, %v465
    %v467 = vsel %vm246, %v438, 0.0
    %v468 = vadd.f32 %v466, %v467
    %v469 = vsel %vm246, %v439, 0.0
    %v470 = vadd.f32 %v468, %v469
    %v471 = vrot.slane %v470, 4
    %v472 = vadd.f32 %v470, %v471
    %v473 = vrot.slane %v472, 2
    %v474 = vadd.f32 %v472, %v473
    %v475 = vrot.slane %v474, 1
    %v476 = vadd.f32 %v474, %v475
    %477 = vst.msk [vmem:[%s4 + $0x1] sm:$0x1] %vm422, %v476
  $region21: #{_lambda_.9} parent=0 // pred_fallthru
    _
  // Predicated region
  $region22: #{_lambda_.9} parent=0 // pred_check
    _
  $region23: #{_lambda_.9} parent=0 // pred_check_branch
    %479 = sbr.rel (0) target = $region25
  $region24: #{_lambda_.9} parent=0 // pred_region
    _
  $region25: #{_lambda_.9} parent=0 // pred_fallthru
    _
  // Predicated region
  $region26: #{_lambda_.9} parent=0 // pred_check
    _
  $region27: #{_lambda_.9} parent=0 // pred_check_branch
    %481 = sbr.rel (0) target = $region29
  $region28: #{_lambda_.9} parent=0 // pred_region
    _
  $region29: #{_lambda_.9} parent=0 // pred_fallthru
    _
  // Predicated region
  $region30: #{_lambda_.9} parent=0 // pred_check
    _
  $region31: #{_lambda_.9} parent=0 // pred_check_branch
    %483 = sbr.rel (0) target = $region33
  $region32: #{_lambda_.9} parent=0 // pred_region
    _
  $region33: #{_lambda_.9} parent=0 // pred_fallthru
    _
  // Predicated region
  $region34: #{_lambda_.9} parent=0 // pred_check
    _
  $region35: #{_lambda_.9} parent=0 // pred_check_branch
    %485 = sbr.rel (0) target = $region37
  $region36: #{_lambda_.9} parent=0 // pred_region
    _
  $region37: #{_lambda_.9} parent=0 // pred_fallthru
    _

// kernel: _lambda_.10
$region0: #{_lambda_.10}
  #allocation0 [shape = 'u32[]', space=smem, size = 0x4, offset = 0x4, fixed_abs, tag = 'smem constant byte address 0x4 - core index']
  #allocation1 [shape = 'u32[72,128]{1,0:T(1,128)}', space=vmem, size = 0x9000, scoped, tag = 'internal scratch']
  %s0 = inlined_call_operand.vmem [shape: f32[128,16], index: 0, kind: input, shape index: {}]
  %s1 = inlined_call_operand.vmem [shape: f32[1,16], index: 1, kind: input, shape index: {}]
  %s2 = inlined_call_operand.vmem [shape: f32[1,16], index: 2, kind: input, shape index: {}]
  %s3 = inlined_call_operand.vmem [shape: bf16[128,16], index: 3, kind: output, shape index: {}]
  %s4 = sld [smem:[#allocation0]]
  $region22: #{_lambda_.10} parent=0
    _
  %s6 = ssub.s32 1, %s4
  %s7 = scalar_select 0, %s6, %s4
  // Predicated region
  $region2: #{_lambda_.10} parent=0 // pred_check
    _
  $region3: #{_lambda_.10} parent=0 // pred_check_branch
    %9 = sbr.rel (0) target = $region5
  $region4: #{_lambda_.10} parent=0 // pred_region
    _
  $region5: #{_lambda_.10} parent=0 // pred_fallthru
    _
  // Predicated region
  $region6: #{_lambda_.10} parent=0 // pred_check
    _
  $region7: #{_lambda_.10} parent=0 // pred_check_branch
    %11 = sbr.rel (0) target = $region9
  $region8: #{_lambda_.10} parent=0 // pred_region
    _
  $region9: #{_lambda_.10} parent=0 // pred_fallthru
    _
  // Predicated region
  $region10: #{_lambda_.10} parent=0 // pred_check
    _
  $region11: #{_lambda_.10} parent=0 // pred_check_branch
    %13 = sbr.rel (0) target = $region13
  $region12: #{_lambda_.10} parent=0 // pred_region
    _
  $region13: #{_lambda_.10} parent=0 // pred_fallthru
    _
  %v14 = vld [vmem:[%s0] sm:$0xff]
  %v15 = vld [vmem:[%s0 + $0x8] sm:$0xff]
  %v16 = vld [vmem:[%s0 + $0x10] sm:$0xff]
  %v17 = vld [vmem:[%s0 + $0x18] sm:$0xff]
  %v18 = vld [vmem:[%s0 + $0x20] sm:$0xff]
  %v19 = vld [vmem:[%s0 + $0x28] sm:$0xff]
  %v20 = vld [vmem:[%s0 + $0x30] sm:$0xff]
  %v21 = vld [vmem:[%s0 + $0x38] sm:$0xff]
  %v22 = vld [vmem:[%s0 + $0x40] sm:$0xff]
  %v23 = vld [vmem:[%s0 + $0x48] sm:$0xff]
  %v24 = vld [vmem:[%s0 + $0x50] sm:$0xff]
  %v25 = vld [vmem:[%s0 + $0x58] sm:$0xff]
  %v26 = vld [vmem:[%s0 + $0x60] sm:$0xff]
  %v27 = vld [vmem:[%s0 + $0x68] sm:$0xff]
  %v28 = vld [vmem:[%s0 + $0x70] sm:$0xff]
  %v29 = vld [vmem:[%s0 + $0x78] sm:$0xff]
  %v30 = vld [vmem:[%s1] sm:$0x1]
  %v32 = vperm.slane %v30, 0
  %v34 = vmul.f32 %v14, %v32
  %v35 = vmul.f32 %v15, %v32
  %v36 = vmul.f32 %v16, %v32
  %v37 = vmul.f32 %v17, %v32
  %v38 = vmul.f32 %v18, %v32
  %v39 = vmul.f32 %v19, %v32
  %v40 = vmul.f32 %v20, %v32
  %v41 = vmul.f32 %v21, %v32
  %v42 = vmul.f32 %v22, %v32
  %v43 = vmul.f32 %v23, %v32
  %v44 = vmul.f32 %v24, %v32
  %v45 = vmul.f32 %v25, %v32
  %v46 = vmul.f32 %v26, %v32
  %v47 = vmul.f32 %v27, %v32
  %v48 = vmul.f32 %v28, %v32
  %v49 = vmul.f32 %v29, %v32
  %v50 = vld [vmem:[%s2] sm:$0x1]
  %v52 = vperm.slane %v50, 0
  %v54 = vadd.f32 %v34, %v52
  %v55 = vadd.f32 %v35, %v52
  %v56 = vadd.f32 %v36, %v52
  %v57 = vadd.f32 %v37, %v52
  %v58 = vadd.f32 %v38, %v52
  %v59 = vadd.f32 %v39, %v52
  %v60 = vadd.f32 %v40, %v52
  %v61 = vadd.f32 %v41, %v52
  %v62 = vadd.f32 %v42, %v52
  %v63 = vadd.f32 %v43, %v52
  %v64 = vadd.f32 %v44, %v52
  %v65 = vadd.f32 %v45, %v52
  %v66 = vadd.f32 %v46, %v52
  %v67 = vadd.f32 %v47, %v52
  %v68 = vadd.f32 %v48, %v52
  %v69 = vadd.f32 %v49, %v52
  %vm70 = vcmp.ge.f32.partialorder %v54, 0.0
  %vm71 = vcmp.ge.f32.partialorder %v55, 0.0
  %vm72 = vcmp.ge.f32.partialorder %v56, 0.0
  %vm73 = vcmp.ge.f32.partialorder %v57, 0.0
  %vm74 = vcmp.ge.f32.partialorder %v58, 0.0
  %vm75 = vcmp.ge.f32.partialorder %v59, 0.0
  %vm76 = vcmp.ge.f32.partialorder %v60, 0.0
  %vm77 = vcmp.ge.f32.partialorder %v61, 0.0
  %vm78 = vcmp.ge.f32.partialorder %v62, 0.0
  %vm79 = vcmp.ge.f32.partialorder %v63, 0.0
  %vm80 = vcmp.ge.f32.partialorder %v64, 0.0
  %vm81 = vcmp.ge.f32.partialorder %v65, 0.0
  %vm82 = vcmp.ge.f32.partialorder %v66, 0.0
  %vm83 = vcmp.ge.f32.partialorder %v67, 0.0
  %vm84 = vcmp.ge.f32.partialorder %v68, 0.0
  %vm85 = vcmp.ge.f32.partialorder %v69, 0.0
  %v86 = vmul.f32 %v54, 0.2
  %v87 = vmul.f32 %v55, 0.2
  %v88 = vmul.f32 %v56, 0.2
  %v89 = vmul.f32 %v57, 0.2
  %v90 = vmul.f32 %v58, 0.2
  %v91 = vmul.f32 %v59, 0.2
  %v92 = vmul.f32 %v60, 0.2
  %v93 = vmul.f32 %v61, 0.2
  %v94 = vmul.f32 %v62, 0.2
  %v95 = vmul.f32 %v63, 0.2
  %v96 = vmul.f32 %v64, 0.2
  %v97 = vmul.f32 %v65, 0.2
  %v98 = vmul.f32 %v66, 0.2
  %v99 = vmul.f32 %v67, 0.2
  %v100 = vmul.f32 %v68, 0.2
  %v101 = vmul.f32 %v69, 0.2
  %v102 = vsel %vm70, %v54, %v86
  %v103 = vsel %vm71, %v55, %v87
  %v104 = vsel %vm72, %v56, %v88
  %v105 = vsel %vm73, %v57, %v89
  %v106 = vsel %vm74, %v58, %v90
  %v107 = vsel %vm75, %v59, %v91
  %v108 = vsel %vm76, %v60, %v92
  %v109 = vsel %vm77, %v61, %v93
  %v110 = vsel %vm78, %v62, %v94
  %v111 = vsel %vm79, %v63, %v95
  %v112 = vsel %vm80, %v64, %v96
  %v113 = vsel %vm81, %v65, %v97
  %v114 = vsel %vm82, %v66, %v98
  %v115 = vsel %vm83, %v67, %v99
  %v116 = vsel %vm84, %v68, %v100
  %v117 = vsel %vm85, %v69, %v101
  %v118 = vpack.c.bf16 %v102, %v102
  %v119 = vpack.c.bf16 %v103, %v103
  %v120 = vpack.c.bf16 %v104, %v104
  %v121 = vpack.c.bf16 %v105, %v105
  %v122 = vpack.c.bf16 %v106, %v106
  %v123 = vpack.c.bf16 %v107, %v107
  %v124 = vpack.c.bf16 %v108, %v108
  %v125 = vpack.c.bf16 %v109, %v109
  %v126 = vpack.c.bf16 %v110, %v110
  %v127 = vpack.c.bf16 %v111, %v111
  %v128 = vpack.c.bf16 %v112, %v112
  %v129 = vpack.c.bf16 %v113, %v113
  %v130 = vpack.c.bf16 %v114, %v114
  %v131 = vpack.c.bf16 %v115, %v115
  %v132 = vpack.c.bf16 %v116, %v116
  %v133 = vpack.c.bf16 %v117, %v117
  %vm134 = vcmask 125952
  %135 = vst.msk [vmem:[%s3] sm:$0xf] %vm134, %v118
  %136 = vst.msk [vmem:[%s3 + $0x4] sm:$0xf] %vm134, %v119
  %137 = vst.msk [vmem:[%s3 + $0x8] sm:$0xf] %vm134, %v120
  %138 = vst.msk [vmem:[%s3 + $0xc] sm:$0xf] %vm134, %v121
  %139 = vst.msk [vmem:[%s3 + $0x10] sm:$0xf] %vm134, %v122
  %140 = vst.msk [vmem:[%s3 + $0x14] sm:$0xf] %vm134, %v123
  %141 = vst.msk [vmem:[%s3 + $0x18] sm:$0xf] %vm134, %v124
  %142 = vst.msk [vmem:[%s3 + $0x1c] sm:$0xf] %vm134, %v125
  %143 = vst.msk [vmem:[%s3 + $0x20] sm:$0xf] %vm134, %v126
  %144 = vst.msk [vmem:[%s3 + $0x24] sm:$0xf] %vm134, %v127
  %145 = vst.msk [vmem:[%s3 + $0x28] sm:$0xf] %vm134, %v128
  %146 = vst.msk [vmem:[%s3 + $0x2c] sm:$0xf] %vm134, %v129
  %147 = vst.msk [vmem:[%s3 + $0x30] sm:$0xf] %vm134, %v130
  %148 = vst.msk [vmem:[%s3 + $0x34] sm:$0xf] %vm134, %v131
  %149 = vst.msk [vmem:[%s3 + $0x38] sm:$0xf] %vm134, %v132
  %150 = vst.msk [vmem:[%s3 + $0x3c] sm:$0xf] %vm134, %v133
  // Predicated region
  $region14: #{_lambda_.10} parent=0 // pred_check
    _
  $region15: #{_lambda_.10} parent=0 // pred_check_branch
    %152 = sbr.rel (0) target = $region17
  $region16: #{_lambda_.10} parent=0 // pred_region
    _
  $region17: #{_lambda_.10} parent=0 // pred_fallthru
    _
  // Predicated region
  $region18: #{_lambda_.10} parent=0 // pred_check
    _
  $region19: #{_lambda_.10} parent=0 // pred_check_branch
    %154 = sbr.rel (0) target = $region21
  $region20: #{_lambda_.10} parent=0 // pred_region
    _
  $region21: #{_lambda_.10} parent=0 // pred_fallthru
    _

// kernel: _lambda_.12
$region0: #{_lambda_.12}
  #allocation0 [shape = 'u32[]', space=smem, size = 0x4, offset = 0x4, fixed_abs, tag = 'smem constant byte address 0x4 - core index']
  #allocation1 [shape = 'u32[72,128]{1,0:T(1,128)}', space=vmem, size = 0x9000, scoped, tag = 'internal scratch']
  %s0 = inlined_call_operand.vmem [shape: f32[32,32], index: 0, kind: input, shape index: {}]
  %s1 = inlined_call_operand.vmem [shape: f32[1,32], index: 1, kind: input, shape index: {}]
  %s2 = inlined_call_operand.vmem [shape: f32[1,32], index: 2, kind: input, shape index: {}]
  %s3 = inlined_call_operand.vmem [shape: bf16[32,32], index: 3, kind: output, shape index: {}]
  %s4 = sld [smem:[#allocation0]]
  $region22: #{_lambda_.12} parent=0
    _
  %s6 = ssub.s32 1, %s4
  %s7 = scalar_select 0, %s6, %s4
  // Predicated region
  $region2: #{_lambda_.12} parent=0 // pred_check
    _
  $region3: #{_lambda_.12} parent=0 // pred_check_branch
    %9 = sbr.rel (0) target = $region5
  $region4: #{_lambda_.12} parent=0 // pred_region
    _
  $region5: #{_lambda_.12} parent=0 // pred_fallthru
    _
  // Predicated region
  $region6: #{_lambda_.12} parent=0 // pred_check
    _
  $region7: #{_lambda_.12} parent=0 // pred_check_branch
    %11 = sbr.rel (0) target = $region9
  $region8: #{_lambda_.12} parent=0 // pred_region
    _
  $region9: #{_lambda_.12} parent=0 // pred_fallthru
    _
  // Predicated region
  $region10: #{_lambda_.12} parent=0 // pred_check
    _
  $region11: #{_lambda_.12} parent=0 // pred_check_branch
    %13 = sbr.rel (0) target = $region13
  $region12: #{_lambda_.12} parent=0 // pred_region
    _
  $region13: #{_lambda_.12} parent=0 // pred_fallthru
    _
  %v14 = vld [vmem:[%s0] sm:$0xff]
  %v15 = vld [vmem:[%s0 + $0x8] sm:$0xff]
  %v16 = vld [vmem:[%s0 + $0x10] sm:$0xff]
  %v17 = vld [vmem:[%s0 + $0x18] sm:$0xff]
  %v18 = vld [vmem:[%s1] sm:$0x1]
  %v20 = vperm.slane %v18, 0
  %v22 = vmul.f32 %v14, %v20
  %v23 = vmul.f32 %v15, %v20
  %v24 = vmul.f32 %v16, %v20
  %v25 = vmul.f32 %v17, %v20
  %v26 = vld [vmem:[%s2] sm:$0x1]
  %v28 = vperm.slane %v26, 0
  %v30 = vadd.f32 %v22, %v28
  %v31 = vadd.f32 %v23, %v28
  %v32 = vadd.f32 %v24, %v28
  %v33 = vadd.f32 %v25, %v28
  %vm34 = vcmp.ge.f32.partialorder %v30, 0.0
  %vm35 = vcmp.ge.f32.partialorder %v31, 0.0
  %vm36 = vcmp.ge.f32.partialorder %v32, 0.0
  %vm37 = vcmp.ge.f32.partialorder %v33, 0.0
  %v38 = vmul.f32 %v30, 0.2
  %v39 = vmul.f32 %v31, 0.2
  %v40 = vmul.f32 %v32, 0.2
  %v41 = vmul.f32 %v33, 0.2
  %v42 = vsel %vm34, %v30, %v38
  %v43 = vsel %vm35, %v31, %v39
  %v44 = vsel %vm36, %v32, %v40
  %v45 = vsel %vm37, %v33, %v41
  %v46 = vpack.c.bf16 %v42, %v42
  %v47 = vpack.c.bf16 %v43, %v43
  %v48 = vpack.c.bf16 %v44, %v44
  %v49 = vpack.c.bf16 %v45, %v45
  %vm50 = vcmask 257024
  %51 = vst.msk [vmem:[%s3] sm:$0xf] %vm50, %v46
  %52 = vst.msk [vmem:[%s3 + $0x4] sm:$0xf] %vm50, %v47
  %53 = vst.msk [vmem:[%s3 + $0x8] sm:$0xf] %vm50, %v48
  %54 = vst.msk [vmem:[%s3 + $0xc] sm:$0xf] %vm50, %v49
  // Predicated region
  $region14: #{_lambda_.12} parent=0 // pred_check
    _
  $region15: #{_lambda_.12} parent=0 // pred_check_branch
    %56 = sbr.rel (0) target = $region17
  $region16: #{_lambda_.12} parent=0 // pred_region
    _
  $region17: #{_lambda_.12} parent=0 // pred_fallthru
    _
  // Predicated region
  $region18: #{_lambda_.12} parent=0 // pred_check
    _
  $region19: #{_lambda_.12} parent=0 // pred_check_branch
    %58 = sbr.rel (0) target = $region21
  $region20: #{_lambda_.12} parent=0 // pred_region
    _
  $region21: #{_lambda_.12} parent=0 // pred_fallthru
    _

// kernel: _lambda_.11
$region0: #{_lambda_.11}
  #allocation0 [shape = 'u32[]', space=smem, size = 0x4, offset = 0x4, fixed_abs, tag = 'smem constant byte address 0x4 - core index']
  #allocation1 [shape = 'u32[72,128]{1,0:T(1,128)}', space=vmem, size = 0x9000, scoped, tag = 'internal scratch']
  %s0 = inlined_call_operand.vmem [shape: bf16[32,256], index: 0, kind: input, shape index: {}]
  %s1 = inlined_call_operand.vmem [shape: bf16[256,32], index: 1, kind: input, shape index: {}]
  %s2 = inlined_call_operand.vmem [shape: f32[1,32], index: 2, kind: input, shape index: {}]
  %s3 = inlined_call_operand.vmem [shape: f32[32,32], index: 3, kind: output, shape index: {0}]
  %s4 = inlined_call_operand.vmem [shape: f32[8,32], index: 4, kind: output, shape index: {1}]
  %5 = xla_tuple %s3, %s4
  %s6 = sld [smem:[#allocation0]]
  $region38: #{_lambda_.11} parent=0
    _
  %s8 = ssub.s32 1, %s6
  %s9 = scalar_select 0, %s8, %s6
  // Predicated region
  $region2: #{_lambda_.11} parent=0 // pred_check
    _
  $region3: #{_lambda_.11} parent=0 // pred_check_branch
    %11 = sbr.rel (0) target = $region5
  $region4: #{_lambda_.11} parent=0 // pred_region
    _
  $region5: #{_lambda_.11} parent=0 // pred_fallthru
    _
  // Predicated region
  $region6: #{_lambda_.11} parent=0 // pred_check
    _
  $region7: #{_lambda_.11} parent=0 // pred_check_branch
    %13 = sbr.rel (0) target = $region9
  $region8: #{_lambda_.11} parent=0 // pred_region
    _
  $region9: #{_lambda_.11} parent=0 // pred_fallthru
    _
  // Predicated region
  $region10: #{_lambda_.11} parent=0 // pred_check
    _
  $region11: #{_lambda_.11} parent=0 // pred_check_branch
    %15 = sbr.rel (0) target = $region13
  $region12: #{_lambda_.11} parent=0 // pred_region
    _
  $region13: #{_lambda_.11} parent=0 // pred_fallthru
    _
  %p16 = scmp.eq.s32.totalorder 0, 0
  // Predicated region
  $region14: #{_lambda_.11} parent=0 // pred_check
    %p17 = pneg %p16
  $region15: #{_lambda_.11} parent=0 // pred_check_branch
    %19 = sbr.rel (%p17) target = $region17
  $region16: #{_lambda_.11} parent=0 // pred_region
    %vm20 = vcmask 261120
    %21 = vst.msk [vmem:[%s3] sm:$0xff] %vm20, 0.0
    %22 = vst.msk [vmem:[%s3 + $0x8] sm:$0xff] %vm20, 0.0
    %23 = vst.msk [vmem:[%s3 + $0x10] sm:$0xff] %vm20, 0.0
    %24 = vst.msk [vmem:[%s3 + $0x18] sm:$0xff] %vm20, 0.0
  $region17: #{_lambda_.11} parent=0 // pred_fallthru
    _
  %v25 = vld [vmem:[%s3] sm:$0xff]
  %v26 = vld [vmem:[%s3 + $0x8] sm:$0xff]
  %v27 = vld [vmem:[%s3 + $0x10] sm:$0xff]
  %v28 = vld [vmem:[%s3 + $0x18] sm:$0xff]
  %v29 = vld [vmem:[%s0] sm:$0xff]
  %v30 = vld [vmem:[%s0 + $0x8] sm:$0xff]
  %v31 = vld [vmem:[%s0 + $0x10] sm:$0xff]
  %v32 = vld [vmem:[%s0 + $0x18] sm:$0xff]
  %v33 = vld [vmem:[%s1] sm:$0xf]
  %v34 = vld [vmem:[%s1 + $0x4] sm:$0xf]
  %v35 = vld [vmem:[%s1 + $0x8] sm:$0xf]
  %v36 = vld [vmem:[%s1 + $0xc] sm:$0xf]
  %v37 = vld [vmem:[%s1 + $0x10] sm:$0xf]
  %v38 = vld [vmem:[%s1 + $0x14] sm:$0xf]
  %v39 = vld [vmem:[%s1 + $0x18] sm:$0xf]
  %v40 = vld [vmem:[%s1 + $0x1c] sm:$0xf]
  %v41 = vld [vmem:[%s1 + $0x20] sm:$0xf]
  %v42 = vld [vmem:[%s1 + $0x24] sm:$0xf]
  %v43 = vld [vmem:[%s1 + $0x28] sm:$0xf]
  %v44 = vld [vmem:[%s1 + $0x2c] sm:$0xf]
  %v45 = vld [vmem:[%s1 + $0x30] sm:$0xf]
  %v46 = vld [vmem:[%s1 + $0x34] sm:$0xf]
  %v47 = vld [vmem:[%s1 + $0x38] sm:$0xf]
  %v48 = vld [vmem:[%s1 + $0x3c] sm:$0xf]
  %v49 = vld [vmem:[%s1 + $0x40] sm:$0xf]
  %v50 = vld [vmem:[%s1 + $0x44] sm:$0xf]
  %v51 = vld [vmem:[%s1 + $0x48] sm:$0xf]
  %v52 = vld [vmem:[%s1 + $0x4c] sm:$0xf]
  %v53 = vld [vmem:[%s1 + $0x50] sm:$0xf]
  %v54 = vld [vmem:[%s1 + $0x54] sm:$0xf]
  %v55 = vld [vmem:[%s1 + $0x58] sm:$0xf]
  %v56 = vld [vmem:[%s1 + $0x5c] sm:$0xf]
  %v57 = vld [vmem:[%s1 + $0x60] sm:$0xf]
  %v58 = vld [vmem:[%s1 + $0x64] sm:$0xf]
  %v59 = vld [vmem:[%s1 + $0x68] sm:$0xf]
  %v60 = vld [vmem:[%s1 + $0x6c] sm:$0xf]
  %v61 = vld [vmem:[%s1 + $0x70] sm:$0xf]
  %v62 = vld [vmem:[%s1 + $0x74] sm:$0xf]
  %v63 = vld [vmem:[%s1 + $0x78] sm:$0xf]
  %v64 = vld [vmem:[%s1 + $0x7c] sm:$0xf]
  %v69 = vunpack.c.l.b16 %v29
  %v70 = vunpack.c.h.b16 %v29
  %v71 = vunpack.c.l.b16 %v30
  %v72 = vunpack.c.h.b16 %v30
  %v73 = vunpack.c.l.b16 %v31
  %v74 = vunpack.c.h.b16 %v31
  %v75 = vunpack.c.l.b16 %v32
  %v76 = vunpack.c.h.b16 %v32
  %v77 = vpack.c.b16 %v71, %v69
  %v78 = vpack.c.b16 %v72, %v70
  %v79 = vpack.c.b16 %v75, %v73
  %v80 = vpack.c.b16 %v76, %v74
  %v117 = vunpack.c.l.b16 %v33
  %v118 = vunpack.c.l.b16 %v34
  %v119 = vunpack.c.l.b16 %v35
  %v120 = vunpack.c.l.b16 %v36
  %v121 = vunpack.c.l.b16 %v37
  %v122 = vunpack.c.l.b16 %v38
  %v123 = vunpack.c.l.b16 %v39
  %v124 = vunpack.c.l.b16 %v40
  %v125 = vunpack.c.l.b16 %v41
  %v126 = vunpack.c.l.b16 %v42
  %v127 = vunpack.c.l.b16 %v43
  %v128 = vunpack.c.l.b16 %v44
  %v129 = vunpack.c.l.b16 %v45
  %v130 = vunpack.c.l.b16 %v46
  %v131 = vunpack.c.l.b16 %v47
  %v132 = vunpack.c.l.b16 %v48
  %v133 = vunpack.c.l.b16 %v49
  %v134 = vunpack.c.l.b16 %v50
  %v135 = vunpack.c.l.b16 %v51
  %v136 = vunpack.c.l.b16 %v52
  %v137 = vunpack.c.l.b16 %v53
  %v138 = vunpack.c.l.b16 %v54
  %v139 = vunpack.c.l.b16 %v55
  %v140 = vunpack.c.l.b16 %v56
  %v141 = vunpack.c.l.b16 %v57
  %v142 = vunpack.c.l.b16 %v58
  %v143 = vunpack.c.l.b16 %v59
  %v144 = vunpack.c.l.b16 %v60
  %v145 = vunpack.c.l.b16 %v61
  %v146 = vunpack.c.l.b16 %v62
  %v147 = vunpack.c.l.b16 %v63
  %v148 = vunpack.c.l.b16 %v64
  %v149 = vpack.c.b16 %v118, %v117
  %v150 = vpack.c.b16 %v120, %v119
  %v151 = vpack.c.b16 %v122, %v121
  %v152 = vpack.c.b16 %v124, %v123
  %v153 = vpack.c.b16 %v126, %v125
  %v154 = vpack.c.b16 %v128, %v127
  %v155 = vpack.c.b16 %v130, %v129
  %v156 = vpack.c.b16 %v132, %v131
  %v157 = vpack.c.b16 %v134, %v133
  %v158 = vpack.c.b16 %v136, %v135
  %v159 = vpack.c.b16 %v138, %v137
  %v160 = vpack.c.b16 %v140, %v139
  %v161 = vpack.c.b16 %v142, %v141
  %v162 = vpack.c.b16 %v144, %v143
  %v163 = vpack.c.b16 %v146, %v145
  %v164 = vpack.c.b16 %v148, %v147
  %181 = vmatpush.bf16.msra.mxu0 %v156
  %182 = vmatpush.bf16.msra.mxu0 %v155
  %183 = vmatpush.bf16.msra.mxu0 %v154
  %184 = vmatpush.bf16.msra.mxu0 %v153
  %185 = vmatpush.bf16.msra.mxu0 %v152
  %186 = vmatpush.bf16.msra.mxu0 %v151
  %187 = vmatpush.bf16.msra.mxu0 %v150
  %188 = vmatpush.bf16.msra.mxu0 %v149
  %189 = vmatmul.bf16.gmra.mxu0 %v77
  %v190 = vpop.f32.mrf.mxu0
  %v191 = vadd.f32 0.0, %v190
  %v192 = vpop.f32.mrf.mxu0
  %v193 = vadd.f32 0.0, %v192
  %194 = vmatmul.bf16.gmra.mxu0 %v79
  %v195 = vpop.f32.mrf.mxu0
  %v196 = vadd.f32 0.0, %v195
  %v197 = vpop.f32.mrf.mxu0
  %v198 = vadd.f32 0.0, %v197
  %199 = vdwg.mxu0
  %200 = vmatpush.bf16.msra.mxu0 %v164
  %201 = vmatpush.bf16.msra.mxu0 %v163
  %202 = vmatpush.bf16.msra.mxu0 %v162
  %203 = vmatpush.bf16.msra.mxu0 %v161
  %204 = vmatpush.bf16.msra.mxu0 %v160
  %205 = vmatpush.bf16.msra.mxu0 %v159
  %206 = vmatpush.bf16.msra.mxu0 %v158
  %207 = vmatpush.bf16.msra.mxu0 %v157
  %208 = vmatmul.bf16.gmra.mxu0 %v78
  %v209 = vpop.f32.mrf.mxu0
  %v210 = vadd.f32 %v191, %v209
  %v211 = vpop.f32.mrf.mxu0
  %v212 = vadd.f32 %v193, %v211
  %213 = vmatmul.bf16.gmra.mxu0 %v80
  %v214 = vpop.f32.mrf.mxu0
  %v215 = vadd.f32 %v196, %v214
  %v216 = vpop.f32.mrf.mxu0
  %v217 = vadd.f32 %v198, %v216
  %218 = vdwg.mxu0
  %v219 = vadd.f32 %v25, %v210
  %v220 = vadd.f32 %v26, %v212
  %v221 = vadd.f32 %v27, %v215
  %v222 = vadd.f32 %v28, %v217
  %vm223 = vcmask 261120
  %224 = vst.msk [vmem:[%s3] sm:$0xff] %vm223, %v219
  %225 = vst.msk [vmem:[%s3 + $0x8] sm:$0xff] %vm223, %v220
  %226 = vst.msk [vmem:[%s3 + $0x10] sm:$0xff] %vm223, %v221
  %227 = vst.msk [vmem:[%s3 + $0x18] sm:$0xff] %vm223, %v222
  // Predicated region
  $region18: #{_lambda_.11} parent=0 // pred_check
    %p228 = pneg %p16
  $region19: #{_lambda_.11} parent=0 // pred_check_branch
    %230 = sbr.rel (%p228) target = $region21
  $region20: #{_lambda_.11} parent=0 // pred_region
    %v231 = vld [vmem:[%s3] sm:$0xff]
    %v232 = vld [vmem:[%s3 + $0x8] sm:$0xff]
    %v233 = vld [vmem:[%s3 + $0x10] sm:$0xff]
    %v234 = vld [vmem:[%s3 + $0x18] sm:$0xff]
    %v235 = vld [vmem:[%s2] sm:$0x1]
    %v237 = vperm.slane %v235, 0
    %v239 = vadd.f32 %v231, %v237
    %v240 = vadd.f32 %v232, %v237
    %v241 = vadd.f32 %v233, %v237
    %v242 = vadd.f32 %v234, %v237
    %243 = vst.msk [vmem:[%s3] sm:$0xff] %vm223, %v239
    %244 = vst.msk [vmem:[%s3 + $0x8] sm:$0xff] %vm223, %v240
    %245 = vst.msk [vmem:[%s3 + $0x10] sm:$0xff] %vm223, %v241
    %246 = vst.msk [vmem:[%s3 + $0x18] sm:$0xff] %vm223, %v242
    %s247 = smul.u32 0, 32
    %v248 = vlaneseq
    %v249 = vshrl.u32 %v248, 7
    %v250 = vadd.s32 %v249, 8
    %v251 = vadd.s32 %v249, 16
    %v252 = vadd.s32 %v249, 24
    %v253 = vstv %s247
    %v254 = vadd.s32 %v253, %v249
    %v255 = vadd.s32 %v253, %v250
    %v256 = vadd.s32 %v253, %v251
    %v257 = vadd.s32 %v253, %v252
    %vm258 = vcmp.lt.s32.totalorder %v254, 32
    %vm259 = vcmp.lt.s32.totalorder %v255, 32
    %vm260 = vcmp.lt.s32.totalorder %v256, 32
    %vm261 = vcmp.lt.s32.totalorder %v257, 32
    %v262 = vsel %vm258, %v239, 0.0
    %v263 = vsel %vm259, %v240, 0.0
    %v264 = vsel %vm260, %v241, 0.0
    %v265 = vsel %vm261, %v242, 0.0
    %v266 = vsel %vm223, %v262, 0.0
    %v267 = vsel %vm223, %v263, 0.0
    %v268 = vadd.f32 %v266, %v267
    %v269 = vsel %vm223, %v264, 0.0
    %v270 = vadd.f32 %v268, %v269
    %v271 = vsel %vm223, %v265, 0.0
    %v272 = vadd.f32 %v270, %v271
    %v273 = vrot.slane %v272, 4
    %v274 = vadd.f32 %v272, %v273
    %v275 = vrot.slane %v274, 2
    %v276 = vadd.f32 %v274, %v275
    %v277 = vrot.slane %v276, 1
    %v278 = vadd.f32 %v276, %v277
    %vm279 = vcmask 253952
    %280 = vst.msk [vmem:[%s4] sm:$0x1] %vm279, %v278
    %v281 = vmul.f32 %v262, %v262
    %v282 = vmul.f32 %v263, %v263
    %v283 = vmul.f32 %v264, %v264
    %v284 = vmul.f32 %v265, %v265
    %v285 = vsel %vm223, %v281, 0.0
    %v286 = vsel %vm223, %v282, 0.0
    %v287 = vadd.f32 %v285, %v286
    %v288 = vsel %vm223, %v283, 0.0
    %v289 = vadd.f32 %v287, %v288
    %v290 = vsel %vm223, %v284, 0.0
    %v291 = vadd.f32 %v289, %v290
    %v292 = vrot.slane %v291, 4
    %v293 = vadd.f32 %v291, %v292
    %v294 = vrot.slane %v293, 2
    %v295 = vadd.f32 %v293, %v294
    %v296 = vrot.slane %v295, 1
    %v297 = vadd.f32 %v295, %v296
    %298 = vst.msk [vmem:[%s4 + $0x1] sm:$0x1] %vm279, %v297
  $region21: #{_lambda_.11} parent=0 // pred_fallthru
    _
  // Predicated region
  $region22: #{_lambda_.11} parent=0 // pred_check
    _
  $region23: #{_lambda_.11} parent=0 // pred_check_branch
    %300 = sbr.rel (0) target = $region25
  $region24: #{_lambda_.11} parent=0 // pred_region
    _
  $region25: #{_lambda_.11} parent=0 // pred_fallthru
    _
  // Predicated region
  $region26: #{_lambda_.11} parent=0 // pred_check
    _
  $region27: #{_lambda_.11} parent=0 // pred_check_branch
    %302 = sbr.rel (0) target = $region29
  $region28: #{_lambda_.11} parent=0 // pred_region
    _
  $region29: #{_lambda_.11} parent=0 // pred_fallthru
    _
  // Predicated region
  $region30: #{_lambda_.11} parent=0 // pred_check
    _
  $region31: #{_lambda_.11} parent=0 // pred_check_branch
    %304 = sbr.rel (0) target = $region33
  $region32: #{_lambda_.11} parent=0 // pred_region
    _
  $region33: #{_lambda_.11} parent=0 // pred_fallthru
    _
  // Predicated region
  $region34: #{_lambda_.11} parent=0 // pred_check
    _
  $region35: #{_lambda_.11} parent=0 // pred_check_branch
    %306 = sbr.rel (0) target = $region37
  $region36: #{_lambda_.11} parent=0 // pred_region
    _
  $region37: #{_lambda_.11} parent=0 // pred_fallthru
    _

// kernel: _lambda_.14
$region0: #{_lambda_.14}
  #allocation0 [shape = 'u32[]', space=smem, size = 0x4, offset = 0x4, fixed_abs, tag = 'smem constant byte address 0x4 - core index']
  #allocation1 [shape = 'u32[72,128]{1,0:T(1,128)}', space=vmem, size = 0x9000, scoped, tag = 'internal scratch']
  %s0 = inlined_call_operand.vmem [shape: f32[18,64], index: 0, kind: input, shape index: {}]
  %s1 = inlined_call_operand.vmem [shape: f32[1,64], index: 1, kind: input, shape index: {}]
  %s2 = inlined_call_operand.vmem [shape: f32[1,64], index: 2, kind: input, shape index: {}]
  %s3 = inlined_call_operand.vmem [shape: bf16[18,64], index: 3, kind: output, shape index: {}]
  %s4 = sld [smem:[#allocation0]]
  $region59: #{_lambda_.14} parent=0
    _
  %s6 = ssub.s32 1, %s4
  %s7 = scalar_select 0, %s6, %s4
  $region1: #{_lambda_.14} parent=0
    #allocation2 [shape = 'u8[8192]{0}', space=vmem, size = 0x2000, scoped, tag = 'output window, operand 0, single buffered']
    // Predicated region
    $region2: #{_lambda_.14} parent=1 // pred_check
      _
    $region3: #{_lambda_.14} parent=1 // pred_check_branch
      %9 = sbr.rel (0) target = $region5
    $region4: #{_lambda_.14} parent=1 // pred_region
      _
    $region5: #{_lambda_.14} parent=1 // pred_fallthru
      _
    // Predicated region
    $region6: #{_lambda_.14} parent=1 // pred_check
      _
    $region7: #{_lambda_.14} parent=1 // pred_check_branch
      %11 = sbr.rel (0) target = $region9
    $region8: #{_lambda_.14} parent=1 // pred_region
      _
    $region9: #{_lambda_.14} parent=1 // pred_fallthru
      _
    // Predicated region
    $region10: #{_lambda_.14} parent=1 // pred_check
      _
    $region11: #{_lambda_.14} parent=1 // pred_check_branch
      %13 = sbr.rel (0) target = $region13
    $region12: #{_lambda_.14} parent=1 // pred_region
      _
    $region13: #{_lambda_.14} parent=1 // pred_fallthru
      _
    %v14 = vld [vmem:[%s0] sm:$0xff]
    %v15 = vld [vmem:[%s0 + $0x8] sm:$0xff]
    %v16 = vld [vmem:[%s0 + $0x10] sm:$0xff]
    %v17 = vld [vmem:[%s0 + $0x18] sm:$0xff]
    %v18 = vld [vmem:[%s1] sm:$0x1]
    %v20 = vperm.slane %v18, 0
    %v22 = vmul.f32 %v14, %v20
    %v23 = vmul.f32 %v15, %v20
    %v24 = vmul.f32 %v16, %v20
    %v25 = vmul.f32 %v17, %v20
    %v26 = vld [vmem:[%s2] sm:$0x1]
    %v28 = vperm.slane %v26, 0
    %v30 = vadd.f32 %v22, %v28
    %v31 = vadd.f32 %v23, %v28
    %v32 = vadd.f32 %v24, %v28
    %v33 = vadd.f32 %v25, %v28
    %vm34 = vcmp.ge.f32.partialorder %v30, 0.0
    %vm35 = vcmp.ge.f32.partialorder %v31, 0.0
    %vm36 = vcmp.ge.f32.partialorder %v32, 0.0
    %vm37 = vcmp.ge.f32.partialorder %v33, 0.0
    %v38 = vmul.f32 %v30, 0.2
    %v39 = vmul.f32 %v31, 0.2
    %v40 = vmul.f32 %v32, 0.2
    %v41 = vmul.f32 %v33, 0.2
    %v42 = vsel %vm34, %v30, %v38
    %v43 = vsel %vm35, %v31, %v39
    %v44 = vsel %vm36, %v32, %v40
    %v45 = vsel %vm37, %v33, %v41
    %v46 = vpack.c.bf16 %v42, %v42
    %v47 = vpack.c.bf16 %v43, %v43
    %v48 = vpack.c.bf16 %v44, %v44
    %v49 = vpack.c.bf16 %v45, %v45
    %vm50 = vcmask 519168
    %51 = vst.msk [vmem:[#allocation2] sm:$0xf] %vm50, %v46
    %52 = vst.msk [vmem:[#allocation2 + $0x4] sm:$0xf] %vm50, %v47
    %53 = vst.msk [vmem:[#allocation2 + $0x8] sm:$0xf] %vm50, %v48
    %54 = vst.msk [vmem:[#allocation2 + $0xc] sm:$0xf] %vm50, %v49
    // Predicated region
    $region14: #{_lambda_.14} parent=1 // pred_check
      _
    $region15: #{_lambda_.14} parent=1 // pred_check_branch
      %56 = sbr.rel (0) target = $region17
    $region16: #{_lambda_.14} parent=1 // pred_region
      // Predicated region
      $region18: #{_lambda_.14} parent=16 // pred_check
        _
      $region19: #{_lambda_.14} parent=16 // pred_check_branch
        %58 = sbr.rel (0) target = $region21
      $region20: #{_lambda_.14} parent=16 // pred_region
        // Predicated region
        $region22: #{_lambda_.14} parent=20 // pred_check
          _
        $region23: #{_lambda_.14} parent=20 // pred_check_branch
          %60 = sbr.rel target = $region25
        $region24: #{_lambda_.14} parent=20 // pred_region
          // Predicated region
          $region37: #{_lambda_.14} parent=24 // pred_check
            _
          $region38: #{_lambda_.14} parent=24 // pred_check_branch
            %80 = sbr.rel (0) target = $region40
          $region39: #{_lambda_.14} parent=24 // pred_region
            loop: start=0, step=1, limit=1
            $region41: #{_lambda_.14} parent=39 // loop_pre_header
              _
            $region42: #{_lambda_.14} parent=39 // loop_header
              %s82 = sphi 0, %s86
              %p83 = scmp.ge.s32.totalorder %s82, 1
              %s87 = sphi [#allocation2], [#allocation2]
              %s88 = sphi %s3, %s3
            $region43: #{_lambda_.14} parent=39 // loop_header_branch
              %85 = sbr.rel (%p83) target = $region47
            $region44: #{_lambda_.14} parent=39 // loop_body
              _
            $region45: #{_lambda_.14} parent=39 // loop_footer
              %s86 = sadd.s32 1, %s82
            $region46: #{_lambda_.14} parent=39 // loop_footer_branch
              %81 = sbr.rel target = $region42
            $region47: #{_lambda_.14} parent=39 // loop_exit
              _
            %s90 = ssub.s32 16, 1
            loop: start=0, step=1, limit=1
            $region48: #{_lambda_.14} parent=39 // loop_pre_header
              _
            $region49: #{_lambda_.14} parent=39 // loop_header
              %s92 = sphi 0, %s96
              %p93 = scmp.ge.s32.totalorder %s92, 1
              %s97 = sphi [#allocation2], [#allocation2]
              %s98 = sphi %s3, %s3
            $region50: #{_lambda_.14} parent=39 // loop_header_branch
              %95 = sbr.rel (%p93) target = $region54
            $region51: #{_lambda_.14} parent=39 // loop_body
              %v99 = vld [vmem:[%s97] sm:%s90]
              %100 = vst [vmem:[%s98] sm:%s90] %v99
              %v101 = vld [vmem:[%s97 + $0x4] sm:%s90]
              %102 = vst [vmem:[%s98 + $0x4] sm:%s90] %v101
              %v103 = vld [vmem:[%s97 + $0x8] sm:%s90]
              %104 = vst [vmem:[%s98 + $0x8] sm:%s90] %v103
            $region52: #{_lambda_.14} parent=39 // loop_footer
              %s96 = sadd.s32 1, %s92
            $region53: #{_lambda_.14} parent=39 // loop_footer_branch
              %91 = sbr.rel target = $region49
            $region54: #{_lambda_.14} parent=39 // loop_exit
              _
          $region40: #{_lambda_.14} parent=24 // pred_fallthru
            _
        $region25: #{_lambda_.14} parent=20 // pred_fallthru
          _
        // Predicated region
        $region26: #{_lambda_.14} parent=20 // pred_check
          _
        $region27: #{_lambda_.14} parent=20 // pred_check_branch
          %62 = sbr.rel (0) target = $region29
        $region28: #{_lambda_.14} parent=20 // pred_region
          %s64 = ssub.s32 16, 1
          loop: start=0, step=1, limit=1
          $region30: #{_lambda_.14} parent=28 // loop_pre_header
            _
          $region31: #{_lambda_.14} parent=28 // loop_header
            %s66 = sphi 0, %s70
            %p67 = scmp.ge.s32.totalorder %s66, 1
            %s71 = sphi [#allocation2], [#allocation2]
            %s72 = sphi %s3, %s3
          $region32: #{_lambda_.14} parent=28 // loop_header_branch
            %69 = sbr.rel (%p67) target = $region36
          $region33: #{_lambda_.14} parent=28 // loop_body
            %v73 = vld [vmem:[%s71] sm:%s64]
            %74 = vst [vmem:[%s72] sm:%s64] %v73
            %v75 = vld [vmem:[%s71 + $0x4] sm:%s64]
            %76 = vst [vmem:[%s72 + $0x4] sm:%s64] %v75
            %v77 = vld [vmem:[%s71 + $0x8] sm:%s64]
            %78 = vst [vmem:[%s72 + $0x8] sm:%s64] %v77
          $region34: #{_lambda_.14} parent=28 // loop_footer
            %s70 = sadd.s32 1, %s66
          $region35: #{_lambda_.14} parent=28 // loop_footer_branch
            %65 = sbr.rel target = $region31
          $region36: #{_lambda_.14} parent=28 // loop_exit
            _
        $region29: #{_lambda_.14} parent=20 // pred_fallthru
          _
      $region21: #{_lambda_.14} parent=16 // pred_fallthru
        _
      %105 = vnop
    $region17: #{_lambda_.14} parent=1 // pred_fallthru
      _
    // Predicated region
    $region55: #{_lambda_.14} parent=1 // pred_check
      _
    $region56: #{_lambda_.14} parent=1 // pred_check_branch
      %107 = sbr.rel (0) target = $region58
    $region57: #{_lambda_.14} parent=1 // pred_region
      _
    $region58: #{_lambda_.14} parent=1 // pred_fallthru
      _

// kernel: _lambda_.13
$region0: #{_lambda_.13}
  #allocation0 [shape = 'u32[]', space=smem, size = 0x4, offset = 0x4, fixed_abs, tag = 'smem constant byte address 0x4 - core index']
  #allocation1 [shape = 'u32[72,128]{1,0:T(1,128)}', space=vmem, size = 0x9000, scoped, tag = 'internal scratch']
  %s0 = inlined_call_operand.vmem [shape: bf16[18,512], index: 0, kind: input, shape index: {}]
  %s1 = inlined_call_operand.vmem [shape: bf16[512,64], index: 1, kind: input, shape index: {}]
  %s2 = inlined_call_operand.vmem [shape: f32[1,64], index: 2, kind: input, shape index: {}]
  %s3 = inlined_call_operand.vmem [shape: f32[18,64], index: 3, kind: output, shape index: {0}]
  %s4 = inlined_call_operand.vmem [shape: f32[8,64], index: 4, kind: output, shape index: {1}]
  %5 = xla_tuple %s3, %s4
  %s6 = sld [smem:[#allocation0]]
  $region72: #{_lambda_.13} parent=0
    _
  %s8 = ssub.s32 1, %s6
  %s9 = scalar_select 0, %s8, %s6
  $region1: #{_lambda_.13} parent=0
    #allocation2 [shape = 'u8[16384]{0}', space=vmem, size = 0x4000, scoped, tag = 'output window, operand 0, single buffered']
    // Predicated region
    $region2: #{_lambda_.13} parent=1 // pred_check
      _
    $region3: #{_lambda_.13} parent=1 // pred_check_branch
      %11 = sbr.rel (0) target = $region5
    $region4: #{_lambda_.13} parent=1 // pred_region
      _
    $region5: #{_lambda_.13} parent=1 // pred_fallthru
      _
    // Predicated region
    $region6: #{_lambda_.13} parent=1 // pred_check
      _
    $region7: #{_lambda_.13} parent=1 // pred_check_branch
      %13 = sbr.rel (0) target = $region9
    $region8: #{_lambda_.13} parent=1 // pred_region
      _
    $region9: #{_lambda_.13} parent=1 // pred_fallthru
      _
    // Predicated region
    $region10: #{_lambda_.13} parent=1 // pred_check
      _
    $region11: #{_lambda_.13} parent=1 // pred_check_branch
      %15 = sbr.rel (0) target = $region13
    $region12: #{_lambda_.13} parent=1 // pred_region
      _
    $region13: #{_lambda_.13} parent=1 // pred_fallthru
      _
    %p16 = scmp.eq.s32.totalorder 0, 0
    // Predicated region
    $region14: #{_lambda_.13} parent=1 // pred_check
      %p17 = pneg %p16
    $region15: #{_lambda_.13} parent=1 // pred_check_branch
      %19 = sbr.rel (%p17) target = $region17
    $region16: #{_lambda_.13} parent=1 // pred_region
      %vm20 = vcmask 523264
      %21 = vst.msk [vmem:[#allocation2] sm:$0xff] %vm20, 0.0
      %22 = vst.msk [vmem:[#allocation2 + $0x8] sm:$0xff] %vm20, 0.0
      %23 = vst.msk [vmem:[#allocation2 + $0x10] sm:$0xff] %vm20, 0.0
      %24 = vst.msk [vmem:[#allocation2 + $0x18] sm:$0xff] %vm20, 0.0
    $region17: #{_lambda_.13} parent=1 // pred_fallthru
      _
    %v25 = vld [vmem:[#allocation2] sm:$0xff]
    %v26 = vld [vmem:[#allocation2 + $0x8] sm:$0xff]
    %v27 = vld [vmem:[#allocation2 + $0x10] sm:$0xff]
    %v28 = vld [vmem:[#allocation2 + $0x18] sm:$0xff]
    %v29 = vld [vmem:[%s0] sm:$0xff]
    %v30 = vld [vmem:[%s0 + $0x8] sm:$0xff]
    %v31 = vld [vmem:[%s0 + $0x10] sm:$0xff]
    %v32 = vld [vmem:[%s0 + $0x18] sm:$0xff]
    %v33 = vld [vmem:[%s0 + $0x20] sm:$0xff]
    %v34 = vld [vmem:[%s0 + $0x28] sm:$0xff]
    %v35 = vld [vmem:[%s0 + $0x30] sm:$0xff]
    %v36 = vld [vmem:[%s0 + $0x38] sm:$0xff]
    %v37 = vld [vmem:[%s1] sm:$0xf]
    %v38 = vld [vmem:[%s1 + $0x4] sm:$0xf]
    %v39 = vld [vmem:[%s1 + $0x8] sm:$0xf]
    %v40 = vld [vmem:[%s1 + $0xc] sm:$0xf]
    %v41 = vld [vmem:[%s1 + $0x10] sm:$0xf]
    %v42 = vld [vmem:[%s1 + $0x14] sm:$0xf]
    %v43 = vld [vmem:[%s1 + $0x18] sm:$0xf]
    %v44 = vld [vmem:[%s1 + $0x1c] sm:$0xf]
    %v45 = vld [vmem:[%s1 + $0x20] sm:$0xf]
    %v46 = vld [vmem:[%s1 + $0x24] sm:$0xf]
    %v47 = vld [vmem:[%s1 + $0x28] sm:$0xf]
    %v48 = vld [vmem:[%s1 + $0x2c] sm:$0xf]
    %v49 = vld [vmem:[%s1 + $0x30] sm:$0xf]
    %v50 = vld [vmem:[%s1 + $0x34] sm:$0xf]
    %v51 = vld [vmem:[%s1 + $0x38] sm:$0xf]
    %v52 = vld [vmem:[%s1 + $0x3c] sm:$0xf]
    %v53 = vld [vmem:[%s1 + $0x40] sm:$0xf]
    %v54 = vld [vmem:[%s1 + $0x44] sm:$0xf]
    %v55 = vld [vmem:[%s1 + $0x48] sm:$0xf]
    %v56 = vld [vmem:[%s1 + $0x4c] sm:$0xf]
    %v57 = vld [vmem:[%s1 + $0x50] sm:$0xf]
    %v58 = vld [vmem:[%s1 + $0x54] sm:$0xf]
    %v59 = vld [vmem:[%s1 + $0x58] sm:$0xf]
    %v60 = vld [vmem:[%s1 + $0x5c] sm:$0xf]
    %v61 = vld [vmem:[%s1 + $0x60] sm:$0xf]
    %v62 = vld [vmem:[%s1 + $0x64] sm:$0xf]
    %v63 = vld [vmem:[%s1 + $0x68] sm:$0xf]
    %v64 = vld [vmem:[%s1 + $0x6c] sm:$0xf]
    %v65 = vld [vmem:[%s1 + $0x70] sm:$0xf]
    %v66 = vld [vmem:[%s1 + $0x74] sm:$0xf]
    %v67 = vld [vmem:[%s1 + $0x78] sm:$0xf]
    %v68 = vld [vmem:[%s1 + $0x7c] sm:$0xf]
    %v69 = vld [vmem:[%s1 + $0x80] sm:$0xf]
    %v70 = vld [vmem:[%s1 + $0x84] sm:$0xf]
    %v71 = vld [vmem:[%s1 + $0x88] sm:$0xf]
    %v72 = vld [vmem:[%s1 + $0x8c] sm:$0xf]
    %v73 = vld [vmem:[%s1 + $0x90] sm:$0xf]
    %v74 = vld [vmem:[%s1 + $0x94] sm:$0xf]
    %v75 = vld [vmem:[%s1 + $0x98] sm:$0xf]
    %v76 = vld [vmem:[%s1 + $0x9c] sm:$0xf]
    %v77 = vld [vmem:[%s1 + $0xa0] sm:$0xf]
    %v78 = vld [vmem:[%s1 + $0xa4] sm:$0xf]
    %v79 = vld [vmem:[%s1 + $0xa8] sm:$0xf]
    %v80 = vld [vmem:[%s1 + $0xac] sm:$0xf]
    %v81 = vld [vmem:[%s1 + $0xb0] sm:$0xf]
    %v82 = vld [vmem:[%s1 + $0xb4] sm:$0xf]
    %v83 = vld [vmem:[%s1 + $0xb8] sm:$0xf]
    %v84 = vld [vmem:[%s1 + $0xbc] sm:$0xf]
    %v85 = vld [vmem:[%s1 + $0xc0] sm:$0xf]
    %v86 = vld [vmem:[%s1 + $0xc4] sm:$0xf]
    %v87 = vld [vmem:[%s1 + $0xc8] sm:$0xf]
    %v88 = vld [vmem:[%s1 + $0xcc] sm:$0xf]
    %v89 = vld [vmem:[%s1 + $0xd0] sm:$0xf]
    %v90 = vld [vmem:[%s1 + $0xd4] sm:$0xf]
    %v91 = vld [vmem:[%s1 + $0xd8] sm:$0xf]
    %v92 = vld [vmem:[%s1 + $0xdc] sm:$0xf]
    %v93 = vld [vmem:[%s1 + $0xe0] sm:$0xf]
    %v94 = vld [vmem:[%s1 + $0xe4] sm:$0xf]
    %v95 = vld [vmem:[%s1 + $0xe8] sm:$0xf]
    %v96 = vld [vmem:[%s1 + $0xec] sm:$0xf]
    %v97 = vld [vmem:[%s1 + $0xf0] sm:$0xf]
    %v98 = vld [vmem:[%s1 + $0xf4] sm:$0xf]
    %v99 = vld [vmem:[%s1 + $0xf8] sm:$0xf]
    %v100 = vld [vmem:[%s1 + $0xfc] sm:$0xf]
    %v109 = vunpack.c.l.b16 %v29
    %v110 = vunpack.c.h.b16 %v29
    %v111 = vunpack.c.l.b16 %v30
    %v112 = vunpack.c.h.b16 %v30
    %v113 = vunpack.c.l.b16 %v31
    %v114 = vunpack.c.h.b16 %v31
    %v115 = vunpack.c.l.b16 %v32
    %v116 = vunpack.c.h.b16 %v32
    %v117 = vunpack.c.l.b16 %v33
    %v118 = vunpack.c.h.b16 %v33
    %v119 = vunpack.c.l.b16 %v34
    %v120 = vunpack.c.h.b16 %v34
    %v121 = vunpack.c.l.b16 %v35
    %v122 = vunpack.c.h.b16 %v35
    %v123 = vunpack.c.l.b16 %v36
    %v124 = vunpack.c.h.b16 %v36
    %v125 = vpack.c.b16 %v113, %v109
    %v126 = vpack.c.b16 %v114, %v110
    %v127 = vpack.c.b16 %v115, %v111
    %v128 = vpack.c.b16 %v116, %v112
    %v129 = vpack.c.b16 %v121, %v117
    %v130 = vpack.c.b16 %v122, %v118
    %v131 = vpack.c.b16 %v123, %v119
    %v132 = vpack.c.b16 %v124, %v120
    %v205 = vunpack.c.l.b16 %v37
    %v206 = vunpack.c.l.b16 %v38
    %v207 = vunpack.c.l.b16 %v39
    %v208 = vunpack.c.l.b16 %v40
    %v209 = vunpack.c.l.b16 %v41
    %v210 = vunpack.c.l.b16 %v42
    %v211 = vunpack.c.l.b16 %v43
    %v212 = vunpack.c.l.b16 %v44
    %v213 = vunpack.c.l.b16 %v45
    %v214 = vunpack.c.l.b16 %v46
    %v215 = vunpack.c.l.b16 %v47
    %v216 = vunpack.c.l.b16 %v48
    %v217 = vunpack.c.l.b16 %v49
    %v218 = vunpack.c.l.b16 %v50
    %v219 = vunpack.c.l.b16 %v51
    %v220 = vunpack.c.l.b16 %v52
    %v221 = vunpack.c.l.b16 %v53
    %v222 = vunpack.c.l.b16 %v54
    %v223 = vunpack.c.l.b16 %v55
    %v224 = vunpack.c.l.b16 %v56
    %v225 = vunpack.c.l.b16 %v57
    %v226 = vunpack.c.l.b16 %v58
    %v227 = vunpack.c.l.b16 %v59
    %v228 = vunpack.c.l.b16 %v60
    %v229 = vunpack.c.l.b16 %v61
    %v230 = vunpack.c.l.b16 %v62
    %v231 = vunpack.c.l.b16 %v63
    %v232 = vunpack.c.l.b16 %v64
    %v233 = vunpack.c.l.b16 %v65
    %v234 = vunpack.c.l.b16 %v66
    %v235 = vunpack.c.l.b16 %v67
    %v236 = vunpack.c.l.b16 %v68
    %v237 = vunpack.c.l.b16 %v69
    %v238 = vunpack.c.l.b16 %v70
    %v239 = vunpack.c.l.b16 %v71
    %v240 = vunpack.c.l.b16 %v72
    %v241 = vunpack.c.l.b16 %v73
    %v242 = vunpack.c.l.b16 %v74
    %v243 = vunpack.c.l.b16 %v75
    %v244 = vunpack.c.l.b16 %v76
    %v245 = vunpack.c.l.b16 %v77
    %v246 = vunpack.c.l.b16 %v78
    %v247 = vunpack.c.l.b16 %v79
    %v248 = vunpack.c.l.b16 %v80
    %v249 = vunpack.c.l.b16 %v81
    %v250 = vunpack.c.l.b16 %v82
    %v251 = vunpack.c.l.b16 %v83
    %v252 = vunpack.c.l.b16 %v84
    %v253 = vunpack.c.l.b16 %v85
    %v254 = vunpack.c.l.b16 %v86
    %v255 = vunpack.c.l.b16 %v87
    %v256 = vunpack.c.l.b16 %v88
    %v257 = vunpack.c.l.b16 %v89
    %v258 = vunpack.c.l.b16 %v90
    %v259 = vunpack.c.l.b16 %v91
    %v260 = vunpack.c.l.b16 %v92
    %v261 = vunpack.c.l.b16 %v93
    %v262 = vunpack.c.l.b16 %v94
    %v263 = vunpack.c.l.b16 %v95
    %v264 = vunpack.c.l.b16 %v96
    %v265 = vunpack.c.l.b16 %v97
    %v266 = vunpack.c.l.b16 %v98
    %v267 = vunpack.c.l.b16 %v99
    %v268 = vunpack.c.l.b16 %v100
    %v269 = vpack.c.b16 %v206, %v205
    %v270 = vpack.c.b16 %v208, %v207
    %v271 = vpack.c.b16 %v210, %v209
    %v272 = vpack.c.b16 %v212, %v211
    %v273 = vpack.c.b16 %v214, %v213
    %v274 = vpack.c.b16 %v216, %v215
    %v275 = vpack.c.b16 %v218, %v217
    %v276 = vpack.c.b16 %v220, %v219
    %v277 = vpack.c.b16 %v222, %v221
    %v278 = vpack.c.b16 %v224, %v223
    %v279 = vpack.c.b16 %v226, %v225
    %v280 = vpack.c.b16 %v228, %v227
    %v281 = vpack.c.b16 %v230, %v229
    %v282 = vpack.c.b16 %v232, %v231
    %v283 = vpack.c.b16 %v234, %v233
    %v284 = vpack.c.b16 %v236, %v235
    %v285 = vpack.c.b16 %v238, %v237
    %v286 = vpack.c.b16 %v240, %v239
    %v287 = vpack.c.b16 %v242, %v241
    %v288 = vpack.c.b16 %v244, %v243
    %v289 = vpack.c.b16 %v246, %v245
    %v290 = vpack.c.b16 %v248, %v247
    %v291 = vpack.c.b16 %v250, %v249
    %v292 = vpack.c.b16 %v252, %v251
    %v293 = vpack.c.b16 %v254, %v253
    %v294 = vpack.c.b16 %v256, %v255
    %v295 = vpack.c.b16 %v258, %v257
    %v296 = vpack.c.b16 %v260, %v259
    %v297 = vpack.c.b16 %v262, %v261
    %v298 = vpack.c.b16 %v264, %v263
    %v299 = vpack.c.b16 %v266, %v265
    %v300 = vpack.c.b16 %v268, %v267
    %333 = vmatpush.bf16.msra.mxu0 %v276
    %334 = vmatpush.bf16.msra.mxu0 %v275
    %335 = vmatpush.bf16.msra.mxu0 %v274
    %336 = vmatpush.bf16.msra.mxu0 %v273
    %337 = vmatpush.bf16.msra.mxu0 %v272
    %338 = vmatpush.bf16.msra.mxu0 %v271
    %339 = vmatpush.bf16.msra.mxu0 %v270
    %340 = vmatpush.bf16.msra.mxu0 %v269
    %341 = vmatmul.bf16.gmra.mxu0 %v125
    %v342 = vpop.f32.mrf.mxu0
    %v343 = vadd.f32 0.0, %v342
    %v344 = vpop.f32.mrf.mxu0
    %v345 = vadd.f32 0.0, %v344
    %346 = vmatmul.bf16.gmra.mxu0 %v129
    %v347 = vpop.f32.mrf.mxu0
    %v348 = vadd.f32 0.0, %v347
    %v349 = vpop.f32.mrf.mxu0
    %v350 = vadd.f32 0.0, %v349
    %351 = vdwg.mxu0
    %352 = vmatpush.bf16.msra.mxu0 %v284
    %353 = vmatpush.bf16.msra.mxu0 %v283
    %354 = vmatpush.bf16.msra.mxu0 %v282
    %355 = vmatpush.bf16.msra.mxu0 %v281
    %356 = vmatpush.bf16.msra.mxu0 %v280
    %357 = vmatpush.bf16.msra.mxu0 %v279
    %358 = vmatpush.bf16.msra.mxu0 %v278
    %359 = vmatpush.bf16.msra.mxu0 %v277
    %360 = vmatmul.bf16.gmra.mxu0 %v126
    %v361 = vpop.f32.mrf.mxu0
    %v362 = vadd.f32 %v343, %v361
    %v363 = vpop.f32.mrf.mxu0
    %v364 = vadd.f32 %v345, %v363
    %365 = vmatmul.bf16.gmra.mxu0 %v130
    %v366 = vpop.f32.mrf.mxu0
    %v367 = vadd.f32 %v348, %v366
    %v368 = vpop.f32.mrf.mxu0
    %v369 = vadd.f32 %v350, %v368
    %370 = vdwg.mxu0
    %371 = vmatpush.bf16.msra.mxu0 %v292
    %372 = vmatpush.bf16.msra.mxu0 %v291
    %373 = vmatpush.bf16.msra.mxu0 %v290
    %374 = vmatpush.bf16.msra.mxu0 %v289
    %375 = vmatpush.bf16.msra.mxu0 %v288
    %376 = vmatpush.bf16.msra.mxu0 %v287
    %377 = vmatpush.bf16.msra.mxu0 %v286
    %378 = vmatpush.bf16.msra.mxu0 %v285
    %379 = vmatmul.bf16.gmra.mxu0 %v127
    %v380 = vpop.f32.mrf.mxu0
    %v381 = vadd.f32 %v362, %v380
    %v382 = vpop.f32.mrf.mxu0
    %v383 = vadd.f32 %v364, %v382
    %384 = vmatmul.bf16.gmra.mxu0 %v131
    %v385 = vpop.f32.mrf.mxu0
    %v386 = vadd.f32 %v367, %v385
    %v387 = vpop.f32.mrf.mxu0
    %v388 = vadd.f32 %v369, %v387
    %389 = vdwg.mxu0
    %390 = vmatpush.bf16.msra.mxu0 %v300
    %391 = vmatpush.bf16.msra.mxu0 %v299
    %392 = vmatpush.bf16.msra.mxu0 %v298
    %393 = vmatpush.bf16.msra.mxu0 %v297
    %394 = vmatpush.bf16.msra.mxu0 %v296
    %395 = vmatpush.bf16.msra.mxu0 %v295
    %396 = vmatpush.bf16.msra.mxu0 %v294
    %397 = vmatpush.bf16.msra.mxu0 %v293
    %398 = vmatmul.bf16.gmra.mxu0 %v128
    %v399 = vpop.f32.mrf.mxu0
    %v400 = vadd.f32 %v381, %v399
    %v401 = vpop.f32.mrf.mxu0
    %v402 = vadd.f32 %v383, %v401
    %403 = vmatmul.bf16.gmra.mxu0 %v132
    %v404 = vpop.f32.mrf.mxu0
    %v405 = vadd.f32 %v386, %v404
    %v406 = vpop.f32.mrf.mxu0
    %v407 = vadd.f32 %v388, %v406
    %408 = vdwg.mxu0
    %v409 = vadd.f32 %v25, %v400
    %v410 = vadd.f32 %v26, %v402
    %v411 = vadd.f32 %v27, %v405
    %v412 = vadd.f32 %v28, %v407
    %vm413 = vcmask 523264
    %414 = vst.msk [vmem:[#allocation2] sm:$0xff] %vm413, %v409
    %415 = vst.msk [vmem:[#allocation2 + $0x8] sm:$0xff] %vm413, %v410
    %416 = vst.msk [vmem:[#allocation2 + $0x10] sm:$0xff] %vm413, %v411
    %417 = vst.msk [vmem:[#allocation2 + $0x18] sm:$0xff] %vm413, %v412
    // Predicated region
    $region18: #{_lambda_.13} parent=1 // pred_check
      %p418 = pneg %p16
    $region19: #{_lambda_.13} parent=1 // pred_check_branch
      %420 = sbr.rel (%p418) target = $region21
    $region20: #{_lambda_.13} parent=1 // pred_region
      %v421 = vld [vmem:[#allocation2] sm:$0xff]
      %v422 = vld [vmem:[#allocation2 + $0x8] sm:$0xff]
      %v423 = vld [vmem:[#allocation2 + $0x10] sm:$0xff]
      %v424 = vld [vmem:[#allocation2 + $0x18] sm:$0xff]
      %v425 = vld [vmem:[%s2] sm:$0x1]
      %v427 = vperm.slane %v425, 0
      %v429 = vadd.f32 %v421, %v427
      %v430 = vadd.f32 %v422, %v427
      %v431 = vadd.f32 %v423, %v427
      %v432 = vadd.f32 %v424, %v427
      %433 = vst.msk [vmem:[#allocation2] sm:$0xff] %vm413, %v429
      %434 = vst.msk [vmem:[#allocation2 + $0x8] sm:$0xff] %vm413, %v430
      %435 = vst.msk [vmem:[#allocation2 + $0x10] sm:$0xff] %vm413, %v431
      %436 = vst.msk [vmem:[#allocation2 + $0x18] sm:$0xff] %vm413, %v432
      %s437 = smul.u32 0, 32
      %v438 = vlaneseq
      %v439 = vshrl.u32 %v438, 7
      %v440 = vadd.s32 %v439, 8
      %v441 = vadd.s32 %v439, 16
      %v442 = vadd.s32 %v439, 24
      %v443 = vstv %s437
      %v444 = vadd.s32 %v443, %v439
      %v445 = vadd.s32 %v443, %v440
      %v446 = vadd.s32 %v443, %v441
      %v447 = vadd.s32 %v443, %v442
      %vm448 = vcmp.lt.s32.totalorder %v444, 18
      %vm449 = vcmp.lt.s32.totalorder %v445, 18
      %vm450 = vcmp.lt.s32.totalorder %v446, 18
      %vm451 = vcmp.lt.s32.totalorder %v447, 18
      %v452 = vsel %vm448, %v429, 0.0
      %v453 = vsel %vm449, %v430, 0.0
      %v454 = vsel %vm450, %v431, 0.0
      %v455 = vsel %vm451, %v432, 0.0
      %v456 = vsel %vm413, %v452, 0.0
      %v457 = vsel %vm413, %v453, 0.0
      %v458 = vadd.f32 %v456, %v457
      %v459 = vsel %vm413, %v454, 0.0
      %v460 = vadd.f32 %v458, %v459
      %v461 = vsel %vm413, %v455, 0.0
      %v462 = vadd.f32 %v460, %v461
      %v463 = vrot.slane %v462, 4
      %v464 = vadd.f32 %v462, %v463
      %v465 = vrot.slane %v464, 2
      %v466 = vadd.f32 %v464, %v465
      %v467 = vrot.slane %v466, 1
      %v468 = vadd.f32 %v466, %v467
      %vm469 = vcmask 516096
      %470 = vst.msk [vmem:[%s4] sm:$0x1] %vm469, %v468
      %v471 = vmul.f32 %v452, %v452
      %v472 = vmul.f32 %v453, %v453
      %v473 = vmul.f32 %v454, %v454
      %v474 = vmul.f32 %v455, %v455
      %v475 = vsel %vm413, %v471, 0.0
      %v476 = vsel %vm413, %v472, 0.0
      %v477 = vadd.f32 %v475, %v476
      %v478 = vsel %vm413, %v473, 0.0
      %v479 = vadd.f32 %v477, %v478
      %v480 = vsel %vm413, %v474, 0.0
      %v481 = vadd.f32 %v479, %v480
      %v482 = vrot.slane %v481, 4
      %v483 = vadd.f32 %v481, %v482
      %v484 = vrot.slane %v483, 2
      %v485 = vadd.f32 %v483, %v484
      %v486 = vrot.slane %v485, 1
      %v487 = vadd.f32 %v485, %v486
      %488 = vst.msk [vmem:[%s4 + $0x1] sm:$0x1] %vm469, %v487
    $region21: #{_lambda_.13} parent=1 // pred_fallthru
      _
    // Predicated region
    $region22: #{_lambda_.13} parent=1 // pred_check
      _
    $region23: #{_lambda_.13} parent=1 // pred_check_branch
      %490 = sbr.rel (0) target = $region25
    $region24: #{_lambda_.13} parent=1 // pred_region
      // Predicated region
      $region26: #{_lambda_.13} parent=24 // pred_check
        _
      $region27: #{_lambda_.13} parent=24 // pred_check_branch
        %492 = sbr.rel (0) target = $region29
      $region28: #{_lambda_.13} parent=24 // pred_region
        // Predicated region
        $region30: #{_lambda_.13} parent=28 // pred_check
          _
        $region31: #{_lambda_.13} parent=28 // pred_check_branch
          %494 = sbr.rel (0) target = $region33
        $region32: #{_lambda_.13} parent=28 // pred_region
          // Predicated region
          $region45: #{_lambda_.13} parent=32 // pred_check
            _
          $region46: #{_lambda_.13} parent=32 // pred_check_branch
            %514 = sbr.rel (0) target = $region48
          $region47: #{_lambda_.13} parent=32 // pred_region
            loop: start=0, step=1, limit=1
            $region49: #{_lambda_.13} parent=47 // loop_pre_header
              _
            $region50: #{_lambda_.13} parent=47 // loop_header
              %s516 = sphi 0, %s520
              %p517 = scmp.ge.s32.totalorder %s516, 1
              %s521 = sphi [#allocation2], [#allocation2]
              %s522 = sphi %s3, %s3
            $region51: #{_lambda_.13} parent=47 // loop_header_branch
              %519 = sbr.rel (%p517) target = $region55
            $region52: #{_lambda_.13} parent=47 // loop_body
              %v523 = vld [vmem:[%s521] sm:$0xff]
              %524 = vst [vmem:[%s522] sm:$0xff] %v523
              %v525 = vld [vmem:[%s521 + $0x8] sm:$0xff]
              %526 = vst [vmem:[%s522 + $0x8] sm:$0xff] %v525
              %v527 = vld [vmem:[%s521 + $0x10] sm:$0xff]
              %528 = vst [vmem:[%s522 + $0x10] sm:$0xff] %v527
            $region53: #{_lambda_.13} parent=47 // loop_footer
              %s520 = sadd.s32 1, %s516
            $region54: #{_lambda_.13} parent=47 // loop_footer_branch
              %515 = sbr.rel target = $region50
            $region55: #{_lambda_.13} parent=47 // loop_exit
              _
          $region48: #{_lambda_.13} parent=32 // pred_fallthru
            _
          // Predicated region
          $region56: #{_lambda_.13} parent=32 // pred_check
            _
          $region57: #{_lambda_.13} parent=32 // pred_check_branch
            %530 = sbr.rel target = $region59
          $region58: #{_lambda_.13} parent=32 // pred_region
            _
          $region59: #{_lambda_.13} parent=32 // pred_fallthru
            _
        $region33: #{_lambda_.13} parent=28 // pred_fallthru
          _
        // Predicated region
        $region34: #{_lambda_.13} parent=28 // pred_check
          _
        $region35: #{_lambda_.13} parent=28 // pred_check_branch
          %496 = sbr.rel target = $region37
        $region36: #{_lambda_.13} parent=28 // pred_region
          %s498 = ssub.s32 256, 1
          loop: start=0, step=1, limit=1
          $region38: #{_lambda_.13} parent=36 // loop_pre_header
            _
          $region39: #{_lambda_.13} parent=36 // loop_header
            %s500 = sphi 0, %s504
            %p501 = scmp.ge.s32.totalorder %s500, 1
            %s505 = sphi [#allocation2], [#allocation2]
            %s506 = sphi %s3, %s3
          $region40: #{_lambda_.13} parent=36 // loop_header_branch
            %503 = sbr.rel (%p501) target = $region44
          $region41: #{_lambda_.13} parent=36 // loop_body
            %v507 = vld [vmem:[%s505] sm:%s498]
            %508 = vst [vmem:[%s506] sm:%s498] %v507
            %v509 = vld [vmem:[%s505 + $0x8] sm:%s498]
            %510 = vst [vmem:[%s506 + $0x8] sm:%s498] %v509
            %v511 = vld [vmem:[%s505 + $0x10] sm:%s498]
            %512 = vst [vmem:[%s506 + $0x10] sm:%s498] %v511
          $region42: #{_lambda_.13} parent=36 // loop_footer
            %s504 = sadd.s32 1, %s500
          $region43: #{_lambda_.13} parent=36 // loop_footer_branch
            %499 = sbr.rel target = $region39
          $region44: #{_lambda_.13} parent=36 // loop_exit
            _
        $region37: #{_lambda_.13} parent=28 // pred_fallthru
          _
      $region29: #{_lambda_.13} parent=24 // pred_fallthru
        _
      %531 = vnop
    $region25: #{_lambda_.13} parent=1 // pred_fallthru
      _
    // Predicated region
    $region60: #{_lambda_.13} parent=1 // pred_check
      _
    $region61: #{_lambda_.13} parent=1 // pred_check_branch
      %533 = sbr.rel (0) target = $region63
    $region62: #{_lambda_.13} parent=1 // pred_region
      _
    $region63: #{_lambda_.13} parent=1 // pred_fallthru
      _
    // Predicated region
    $region64: #{_lambda_.13} parent=1 // pred_check
      _
    $region65: #{_lambda_.13} parent=1 // pred_check_branch
      %535 = sbr.rel (0) target = $region67
    $region66: #{_lambda_.13} parent=1 // pred_region
      _
    $region67: #{_lambda_.13} parent=1 // pred_fallthru
      _
    // Predicated region
    $region68: #{_lambda_.13} parent=1 // pred_check
      _
    $region69: #{_lambda_.13} parent=1 // pred_check_branch
      %537 = sbr.rel (0) target = $region71
    $region70: #{_lambda_.13} parent=1 // pred_region
      _
    $region71: #{_lambda_.13} parent=1 // pred_fallthru
      _

// kernel: _lambda_.15
$region0: #{_lambda_.15}
  #allocation0 [shape = 'u32[]', space=smem, size = 0x4, offset = 0x4, fixed_abs, tag = 'smem constant byte address 0x4 - core index']
  #allocation1 [shape = 'u32[72,128]{1,0:T(1,128)}', space=vmem, size = 0x9000, scoped, tag = 'internal scratch']
  #allocation2 [shape = 'f32[1,1]{1,0:T(1,128)S(1)}', space=vmem, size = 0x200, scoped, tag = 'scoped memory for _lambda_.15']
  %s0 = inlined_call_operand.vmem [shape: bf16[8,1024], index: 0, kind: input, shape index: {}]
  %s1 = inlined_call_operand.vmem [shape: bf16[1024,1], index: 1, kind: input, shape index: {}]
  %s2 = inlined_call_operand.<no memory space> [shape: f32[1,1], index: 2, kind: input, shape index: {}]
  %s3 = inlined_call_operand.vmem [shape: f32[8,1], index: 3, kind: output, shape index: {0}]
  %s4 = inlined_call_operand.hbm [shape: f32[8,1], index: 4, kind: output, shape index: {1}]
  %5 = xla_tuple %s3, %s4
  %s6 = sld [smem:[#allocation0]]
  $region118: #{_lambda_.15} parent=0
    _
  %s8 = ssub.s32 1, %s6
  %s9 = scalar_select 0, %s8, %s6
  %v10 = vstv %s2
  %11 = vst [vmem:[#allocation2] sm:$0x1] %v10
  $region1: #{_lambda_.15} parent=0
    #allocation3 [shape = 'u8[32768]{0}', space=vmem, size = 0x8000, scoped, tag = 'input window, operand 0']
    #allocation4 [shape = 'u8[8192]{0}', space=vmem, size = 0x2000, scoped, tag = 'output window, operand 0, single buffered']
    #allocation5 [shape = 'u8[4096]{0}', space=vmem, size = 0x1000, scoped, tag = 'output window, operand 1, single buffered']
    #allocation6 [shape = 's32[2]{0}', space=sflag, size = 0x8, scoped, tag = 'scoped memory for _lambda_.15']
    %12 = vsyncpa [#allocation6], 0
    loop: start=0, step=1, limit=4
    $region2: #{_lambda_.15} parent=1 // loop_pre_header
      _
    $region3: #{_lambda_.15} parent=1 // loop_header
      %s14 = sphi 0, %s18
      %p15 = scmp.ge.s32.totalorder %s14, 4
      %s21 = sphi 0, %s33
      %s22 = sphi 0, %s29
      %s23 = sphi 0, %s21
      %s24 = sphi 0, %s22
      %s25 = sphi 0, %s23
      %s26 = sphi 0, %s24
      %s38 = sphi 0, %s40
      %s41 = sphi 0, %s38
      %s42 = sphi 0, %s41
      %s58 = sphi 0, %s42
      %s64 = sphi 0, %s66
      %s67 = sphi 0, %s64
      %s68 = sphi 0, %s67
      %s84 = sphi 0, %s68
      %s88 = sphi 0, %s88
      %s90 = sphi 0, %s88
      %s91 = sphi 0, %s90
      %s105 = sphi 0, %s91
      %s111 = sphi 0, %s113
      %s114 = sphi 0, %s111
      %s115 = sphi 0, %s114
      %s131 = sphi 0, %s115
      %s137 = sphi 0, %s139
      %s140 = sphi 0, %s137
      %s141 = sphi 0, %s140
      %s157 = sphi 0, %s141
    $region4: #{_lambda_.15} parent=1 // loop_header_branch
      %17 = sbr.rel (%p15) target = $region8
    $region5: #{_lambda_.15} parent=1 // loop_body
      %s19 = ssub.s32 %s14, 1
      %s20 = ssub.s32 %s14, 2
      %s27 = sadd.s32 1, %s22
      %p28 = scmp.ge.s32.totalorder %s27, 2
      %s29 = scalar_select %p28, 0, %s27
      %s30 = sadd.s32 1, %s21
      %s31 = scalar_select %p28, %s30, %s21
      %p32 = scmp.ge.s32.totalorder %s31, 1
      %s33 = scalar_select %p32, 0, %s31
      %s34 = ssub.s32 %s21, %s33
      %s35 = ssub.s32 %s22, %s29
      %s36 = sor.u32 %s34, %s35
      %p37 = scmp.eq.s32.totalorder %s36, 0
      %s39 = sadd.s32 %s38, 1
      %s40 = scalar_select %p37, %s38, %s39
      %p43 = pneg %p37
      %p44 = scmp.eq.s32.totalorder %s14, 1
      %p45 = por %p43, %p44
      %p46 = scmp.ne.s32.totalorder %s38, %s41
      %p47 = scmp.eq.s32.totalorder %s14, 0
      %p48 = por %p46, %p47
      %p49 = scmp.ne.s32.totalorder %s38, %s41
      %p50 = scmp.eq.s32.totalorder %s19, 1
      %p51 = por %p49, %p50
      %p52 = scmp.ne.s32.totalorder %s41, %s42
      %p53 = scmp.eq.s32.totalorder %s19, 0
      %p54 = por %p52, %p53
      %p55 = scmp.ne.s32.totalorder %s41, %s42
      %p56 = scmp.eq.s32.totalorder %s20, 1
      %p57 = por %p55, %p56
      %p59 = scmp.ne.s32.totalorder %s42, %s58
      %p60 = scmp.eq.s32.totalorder %s20, 0
      %p61 = por %p59, %p60
      %s62 = ssub.s32 %s22, %s29
      %p63 = scmp.eq.s32.totalorder %s62, 0
      %s65 = sadd.s32 %s64, 1
      %s66 = scalar_select %p63, %s64, %s65
      %p69 = pneg %p63
      %p70 = scmp.eq.s32.totalorder %s14, 1
      %p71 = por %p69, %p70
      %p72 = scmp.ne.s32.totalorder %s64, %s67
      %p73 = scmp.eq.s32.totalorder %s14, 0
      %p74 = por %p72, %p73
      %p75 = scmp.ne.s32.totalorder %s64, %s67
      %p76 = scmp.eq.s32.totalorder %s19, 1
      %p77 = por %p75, %p76
      %p78 = scmp.ne.s32.totalorder %s67, %s68
      %p79 = scmp.eq.s32.totalorder %s19, 0
      %p80 = por %p78, %p79
      %p81 = scmp.ne.s32.totalorder %s67, %s68
      %p82 = scmp.eq.s32.totalorder %s20, 1
      %p83 = por %p81, %p82
      %p85 = scmp.ne.s32.totalorder %s68, %s84
      %p86 = scmp.eq.s32.totalorder %s20, 0
      %p87 = por %p85, %p86
      %s89 = sadd.s32 %s88, 1
      %p92 = scmp.eq.s32.totalorder %s14, 1
      %p93 = scmp.ne.s32.totalorder %s88, %s90
      %p94 = scmp.eq.s32.totalorder %s14, 0
      %p95 = por %p93, %p94
      %p96 = scmp.ne.s32.totalorder %s88, %s90
      %p97 = scmp.eq.s32.totalorder %s19, 1
      %p98 = por %p96, %p97
      %p99 = scmp.ne.s32.totalorder %s90, %s91
      %p100 = scmp.eq.s32.totalorder %s19, 0
      %p101 = por %p99, %p100
      %p102 = scmp.ne.s32.totalorder %s90, %s91
      %p103 = scmp.eq.s32.totalorder %s20, 1
      %p104 = por %p102, %p103
      %p106 = scmp.ne.s32.totalorder %s91, %s105
      %p107 = scmp.eq.s32.totalorder %s20, 0
      %p108 = por %p106, %p107
      %s109 = ssub.s32 %s21, %s33
      %p110 = scmp.eq.s32.totalorder %s109, 0
      %s112 = sadd.s32 %s111, 1
      %s113 = scalar_select %p110, %s111, %s112
      %p116 = pneg %p110
      %p117 = scmp.eq.s32.totalorder %s14, 1
      %p118 = por %p116, %p117
      %p119 = scmp.ne.s32.totalorder %s111, %s114
      %p120 = scmp.eq.s32.totalorder %s14, 0
      %p121 = por %p119, %p120
      %p122 = scmp.ne.s32.totalorder %s111, %s114
      %p123 = scmp.eq.s32.totalorder %s19, 1
      %p124 = por %p122, %p123
      %p125 = scmp.ne.s32.totalorder %s114, %s115
      %p126 = scmp.eq.s32.totalorder %s19, 0
      %p127 = por %p125, %p126
      %p128 = scmp.ne.s32.totalorder %s114, %s115
      %p129 = scmp.eq.s32.totalorder %s20, 1
      %p130 = por %p128, %p129
      %p132 = scmp.ne.s32.totalorder %s115, %s131
      %p133 = scmp.eq.s32.totalorder %s20, 0
      %p134 = por %p132, %p133
      %s135 = ssub.s32 %s21, %s33
      %p136 = scmp.eq.s32.totalorder %s135, 0
      %s138 = sadd.s32 %s137, 1
      %s139 = scalar_select %p136, %s137, %s138
      %p142 = pneg %p136
      %p143 = scmp.eq.s32.totalorder %s14, 1
      %p144 = por %p142, %p143
      %p145 = scmp.ne.s32.totalorder %s137, %s140
      %p146 = scmp.eq.s32.totalorder %s14, 0
      %p147 = por %p145, %p146
      %p148 = scmp.ne.s32.totalorder %s137, %s140
      %p149 = scmp.eq.s32.totalorder %s19, 1
      %p150 = por %p148, %p149
      %p151 = scmp.ne.s32.totalorder %s140, %s141
      %p152 = scmp.eq.s32.totalorder %s19, 0
      %p153 = por %p151, %p152
      %p154 = scmp.ne.s32.totalorder %s140, %s141
      %p155 = scmp.eq.s32.totalorder %s20, 1
      %p156 = por %p154, %p155
      %p158 = scmp.ne.s32.totalorder %s141, %s157
      %p159 = scmp.eq.s32.totalorder %s20, 0
      %p160 = por %p158, %p159
      %p161 = scmp.le.s32.totalorder 1, %s14
      %p162 = scmp.lt.s32.totalorder %s14, 3
      %p163 = pnand %p161, %p162
      %p164 = pneg %p163
      // Predicated region
      $region9: #{_lambda_.15} parent=5 // pred_check
        _
      $region10: #{_lambda_.15} parent=5 // pred_check_branch
        %166 = sbr.rel (%p163) target = $region12
      $region11: #{_lambda_.15} parent=5 // pred_region
        %s167 = ssub.s32 %s14, 1
        // Predicated region
        $region13: #{_lambda_.15} parent=11 // pred_check
          %p168 = pneg %p101
        $region14: #{_lambda_.15} parent=11 // pred_check_branch
          %170 = sbr.rel (%p168) target = $region16
        $region15: #{_lambda_.15} parent=11 // pred_region
          _
        $region16: #{_lambda_.15} parent=11 // pred_fallthru
          _
      $region12: #{_lambda_.15} parent=5 // pred_fallthru
        _
      %p171 = scmp.lt.s32.totalorder %s14, 2
      // Predicated region
      $region17: #{_lambda_.15} parent=5 // pred_check
        %p172 = pneg %p171
      $region18: #{_lambda_.15} parent=5 // pred_check_branch
        %174 = sbr.rel (%p172) target = $region20
      $region19: #{_lambda_.15} parent=5 // pred_region
        // Predicated region
        $region21: #{_lambda_.15} parent=19 // pred_check
          %p175 = pneg %p48
        $region22: #{_lambda_.15} parent=19 // pred_check_branch
          %177 = sbr.rel (%p175) target = $region24
        $region23: #{_lambda_.15} parent=19 // pred_region
          %s178 = sand.u32 %s38, 1
          %s179 = sand.u32 %s38, 1
          %s180 = smul.addr %s179, 32
          %s181 = scalar_lea.vmem [#allocation3], %s180
          %s182 = smul.u32 2, %s21
          %s183 = smul.u32 4, %s22
          %s184 = ssub.s32 1, %s182
          %s185 = smul.u32 4, %s184
          %s186 = smul.u32 %s185, 4
          %p187 = scmp.ne.s32.totalorder 0, %s186
          %s188 = smul.addr %s182, 8
          %s189 = sadd.s32 %s183, %s188
          %s190 = smul.addr %s189, 4
          %s191 = scalar_lea.vmem %s0, %s190
          // Predicated region
          $region25: #{_lambda_.15} parent=23 // pred_check
            %p192 = pneg %p187
          $region26: #{_lambda_.15} parent=23 // pred_check_branch
            %194 = sbr.rel (%p192) target = $region28
          $region27: #{_lambda_.15} parent=23 // pred_region
            // Predicated region
            $region29: #{_lambda_.15} parent=27 // pred_check
              _
            $region30: #{_lambda_.15} parent=27 // pred_check_branch
              %196 = sbr.rel (0) target = $region32
            $region31: #{_lambda_.15} parent=27 // pred_region
              // While loop
              $region33: #{_lambda_.15} parent=31 // loop_pre_header
                _
              $region34: #{_lambda_.15} parent=31 // loop_header
                %s198 = sphi 0, %s200
                %p199 = scmp.ge.s32.totalorder %s198, %s184
                %s203 = sphi 0, %s212
                %s204 = sphi %s191, %s215
                %s205 = sphi %s181, %s216
              $region35: #{_lambda_.15} parent=31 // loop_header_branch
                %202 = sbr.rel (%p199) target = $region39
              $region36: #{_lambda_.15} parent=31 // loop_body
                %v206 = vld [vmem:[%s204] sm:$0xff]
                %207 = vst [vmem:[%s205] sm:$0xff] %v206
                %v208 = vld [vmem:[%s204 + $0x8] sm:$0xff]
                %209 = vst [vmem:[%s205 + $0x8] sm:$0xff] %v208
                %s210 = sadd.s32 1, %s203
                %p211 = scmp.ge.s32.totalorder %s210, %s184
                %s212 = scalar_select %p211, 0, %s210
                %s213 = smul.u32 %s212, 32
                %s214 = smul.u32 %s212, 16
                %s215 = scalar_lea.vmem %s191, %s213
                %s216 = scalar_lea.vmem %s181, %s214 [#allocation3]
              $region37: #{_lambda_.15} parent=31 // loop_footer
                %s200 = sadd.s32 %s198, 1
              $region38: #{_lambda_.15} parent=31 // loop_footer_branch
                %197 = sbr.rel target = $region34
              $region39: #{_lambda_.15} parent=31 // loop_exit
                _
            $region32: #{_lambda_.15} parent=27 // pred_fallthru
              _
            // Predicated region
            $region40: #{_lambda_.15} parent=27 // pred_check
              _
            $region41: #{_lambda_.15} parent=27 // pred_check_branch
              %218 = sbr.rel target = $region43
            $region42: #{_lambda_.15} parent=27 // pred_region
              _
            $region43: #{_lambda_.15} parent=27 // pred_fallthru
              _
          $region28: #{_lambda_.15} parent=23 // pred_fallthru
            _
          %219 = vnop
        $region24: #{_lambda_.15} parent=19 // pred_fallthru
          _
        // Predicated region
        $region44: #{_lambda_.15} parent=19 // pred_check
          %p220 = pneg %p74
        $region45: #{_lambda_.15} parent=19 // pred_check_branch
          %222 = sbr.rel (%p220) target = $region47
        $region46: #{_lambda_.15} parent=19 // pred_region
          %s223 = smul.u32 64, %s22
          %p224 = scmp.lt.s32.totalorder %s223, 127
          %s225 = scalar_select %p224, %s223, 127
          %s226 = smul.addr %s225, 4
          %s227 = scalar_lea.vmem %s1, %s226
          %s228 = smul.u32 64, %s22
        $region47: #{_lambda_.15} parent=19 // pred_fallthru
          _
      $region20: #{_lambda_.15} parent=5 // pred_fallthru
        _
      %p229 = scmp.le.s32.totalorder 1, %s14
      %p230 = scmp.lt.s32.totalorder %s14, 3
      %p231 = pnand %p229, %p230
      %p232 = pneg %p231
      // Predicated region
      $region48: #{_lambda_.15} parent=5 // pred_check
        _
      $region49: #{_lambda_.15} parent=5 // pred_check_branch
        %234 = sbr.rel (%p231) target = $region51
      $region50: #{_lambda_.15} parent=5 // pred_region
        %s235 = ssub.s32 %s14, 1
        %s236 = sand.u32 %s41, 1
        %s237 = sand.u32 %s41, 1
        %s238 = smul.addr %s237, 32
        %s239 = scalar_lea.vmem [#allocation3], %s238
        // Predicated region
        $region52: #{_lambda_.15} parent=50 // pred_check
          %p240 = pneg %p54
        $region53: #{_lambda_.15} parent=50 // pred_check_branch
          %242 = sbr.rel (%p240) target = $region55
        $region54: #{_lambda_.15} parent=50 // pred_region
          _
        $region55: #{_lambda_.15} parent=50 // pred_fallthru
          _
        %s243 = sand.u32 %s41, 1
        %s244 = sand.u32 %s41, 1
        %s245 = smul.addr %s244, 32
        %s246 = scalar_lea.vmem [#allocation3], %s245
        %p247 = pneg %p54
        %p248 = pneg %p51
        %s249 = smul.u32 64, %s24
        %p250 = scmp.lt.s32.totalorder %s249, 127
        %s251 = scalar_select %p250, %s249, 127
        %s252 = smul.addr %s251, 4
        %s253 = scalar_lea.vmem %s1, %s252
        %p254 = pneg %p80
        %p255 = pneg %p77
        %p256 = pneg %p101
        %p257 = pneg %p98
        %p258 = pneg %p127
        %p259 = pneg %p124
        %p260 = pneg %p153
        %p261 = pneg %p150
        %s262 = smul.u32 2, %s23
        %s263 = smul.u32 4, %s24
        %s264 = ssub.s32 1, %s262
        %s265 = smul.u32 4, %s264
        %s266 = smul.u32 %s265, 4
        %s267 = smul.u32 64, %s24
        %p268 = scmp.lt.s32.totalorder %s267, 127
        %s269 = scalar_select %p268, %s267, 127
        %s270 = smul.addr %s269, 4
        %s271 = scalar_lea.vmem %s1, %s270
        %s272 = smul.u32 64, %s24
        %s273 = smul.u32 2, %s23
        %s274 = ssub.s32 1, %s273
        %s275 = smul.u32 8, %s274
        %p276 = scmp.eq.s32.totalorder %s24, 0
        // Predicated region
        $region56: #{_lambda_.15} parent=50 // pred_check
          %p277 = pneg %p276
        $region57: #{_lambda_.15} parent=50 // pred_check_branch
          %279 = sbr.rel (%p277) target = $region59
        $region58: #{_lambda_.15} parent=50 // pred_region
          %vm280 = vcmask 7168
          %281 = vst.msk [vmem:[#allocation4] sm:$0xff] %vm280, 0.0
          %282 = vst.msk [vmem:[#allocation4 + $0x8] sm:$0xff] %vm280, 0.0
        $region59: #{_lambda_.15} parent=50 // pred_fallthru
          _
        %v283 = vld [vmem:[#allocation4] sm:$0xff]
        %v284 = vld [vmem:[#allocation4 + $0x8] sm:$0xff]
        %v285 = vld [vmem:[%s239] sm:$0xff]
        %v286 = vld [vmem:[%s239 + $0x8] sm:$0xff]
        %v287 = vld [vmem:[%s239 + $0x10] sm:$0xff]
        %v288 = vld [vmem:[%s239 + $0x18] sm:$0xff]
        %v289 = vld [vmem:[%s271] sm:$0xf]
        %v290 = vld [vmem:[%s271 + $0x4] sm:$0xf]
        %v291 = vld [vmem:[%s271 + $0x8] sm:$0xf]
        %v292 = vld [vmem:[%s271 + $0xc] sm:$0xf]
        %v293 = vld [vmem:[%s271 + $0x10] sm:$0xf]
        %v294 = vld [vmem:[%s271 + $0x14] sm:$0xf]
        %v295 = vld [vmem:[%s271 + $0x18] sm:$0xf]
        %v296 = vld [vmem:[%s271 + $0x1c] sm:$0xf]
        %v297 = vld [vmem:[%s271 + $0x20] sm:$0xf]
        %v298 = vld [vmem:[%s271 + $0x24] sm:$0xf]
        %v299 = vld [vmem:[%s271 + $0x28] sm:$0xf]
        %v300 = vld [vmem:[%s271 + $0x2c] sm:$0xf]
        %v301 = vld [vmem:[%s271 + $0x30] sm:$0xf]
        %v302 = vld [vmem:[%s271 + $0x34] sm:$0xf]
        %v303 = vld [vmem:[%s271 + $0x38] sm:$0xf]
        %v304 = vld [vmem:[%s271 + $0x3c] sm:$0xf]
        %v305 = vld [vmem:[%s271 + $0x40] sm:$0xf]
        %v306 = vld [vmem:[%s271 + $0x44] sm:$0xf]
        %v307 = vld [vmem:[%s271 + $0x48] sm:$0xf]
        %v308 = vld [vmem:[%s271 + $0x4c] sm:$0xf]
        %v309 = vld [vmem:[%s271 + $0x50] sm:$0xf]
        %v310 = vld [vmem:[%s271 + $0x54] sm:$0xf]
        %v311 = vld [vmem:[%s271 + $0x58] sm:$0xf]
        %v312 = vld [vmem:[%s271 + $0x5c] sm:$0xf]
        %v313 = vld [vmem:[%s271 + $0x60] sm:$0xf]
        %v314 = vld [vmem:[%s271 + $0x64] sm:$0xf]
        %v315 = vld [vmem:[%s271 + $0x68] sm:$0xf]
        %v316 = vld [vmem:[%s271 + $0x6c] sm:$0xf]
        %v317 = vld [vmem:[%s271 + $0x70] sm:$0xf]
        %v318 = vld [vmem:[%s271 + $0x74] sm:$0xf]
        %v319 = vld [vmem:[%s271 + $0x78] sm:$0xf]
        %v320 = vld [vmem:[%s271 + $0x7c] sm:$0xf]
        %v321 = vld [vmem:[%s271 + $0x80] sm:$0xf]
        %v322 = vld [vmem:[%s271 + $0x84] sm:$0xf]
        %v323 = vld [vmem:[%s271 + $0x88] sm:$0xf]
        %v324 = vld [vmem:[%s271 + $0x8c] sm:$0xf]
        %v325 = vld [vmem:[%s271 + $0x90] sm:$0xf]
        %v326 = vld [vmem:[%s271 + $0x94] sm:$0xf]
        %v327 = vld [vmem:[%s271 + $0x98] sm:$0xf]
        %v328 = vld [vmem:[%s271 + $0x9c] sm:$0xf]
        %v329 = vld [vmem:[%s271 + $0xa0] sm:$0xf]
        %v330 = vld [vmem:[%s271 + $0xa4] sm:$0xf]
        %v331 = vld [vmem:[%s271 + $0xa8] sm:$0xf]
        %v332 = vld [vmem:[%s271 + $0xac] sm:$0xf]
        %v333 = vld [vmem:[%s271 + $0xb0] sm:$0xf]
        %v334 = vld [vmem:[%s271 + $0xb4] sm:$0xf]
        %v335 = vld [vmem:[%s271 + $0xb8] sm:$0xf]
        %v336 = vld [vmem:[%s271 + $0xbc] sm:$0xf]
        %v337 = vld [vmem:[%s271 + $0xc0] sm:$0xf]
        %v338 = vld [vmem:[%s271 + $0xc4] sm:$0xf]
        %v339 = vld [vmem:[%s271 + $0xc8] sm:$0xf]
        %v340 = vld [vmem:[%s271 + $0xcc] sm:$0xf]
        %v341 = vld [vmem:[%s271 + $0xd0] sm:$0xf]
        %v342 = vld [vmem:[%s271 + $0xd4] sm:$0xf]
        %v343 = vld [vmem:[%s271 + $0xd8] sm:$0xf]
        %v344 = vld [vmem:[%s271 + $0xdc] sm:$0xf]
        %v345 = vld [vmem:[%s271 + $0xe0] sm:$0xf]
        %v346 = vld [vmem:[%s271 + $0xe4] sm:$0xf]
        %v347 = vld [vmem:[%s271 + $0xe8] sm:$0xf]
        %v348 = vld [vmem:[%s271 + $0xec] sm:$0xf]
        %v349 = vld [vmem:[%s271 + $0xf0] sm:$0xf]
        %v350 = vld [vmem:[%s271 + $0xf4] sm:$0xf]
        %v351 = vld [vmem:[%s271 + $0xf8] sm:$0xf]
        %v352 = vld [vmem:[%s271 + $0xfc] sm:$0xf]
        %v357 = vunpack.c.l.b16 %v285
        %v358 = vunpack.c.h.b16 %v285
        %v359 = vunpack.c.l.b16 %v286
        %v360 = vunpack.c.h.b16 %v286
        %v361 = vunpack.c.l.b16 %v287
        %v362 = vunpack.c.h.b16 %v287
        %v363 = vunpack.c.l.b16 %v288
        %v364 = vunpack.c.h.b16 %v288
        %v365 = vpack.c.b16 %v361, %v357
        %v366 = vpack.c.b16 %v362, %v358
        %v367 = vpack.c.b16 %v363, %v359
        %v368 = vpack.c.b16 %v364, %v360
        %v437 = vunpack.c.l.b16 %v289
        %v438 = vunpack.c.l.b16 %v290
        %v439 = vunpack.c.l.b16 %v291
        %v440 = vunpack.c.l.b16 %v292
        %v441 = vunpack.c.l.b16 %v293
        %v442 = vunpack.c.l.b16 %v294
        %v443 = vunpack.c.l.b16 %v295
        %v444 = vunpack.c.l.b16 %v296
        %v445 = vunpack.c.l.b16 %v297
        %v446 = vunpack.c.l.b16 %v298
        %v447 = vunpack.c.l.b16 %v299
        %v448 = vunpack.c.l.b16 %v300
        %v449 = vunpack.c.l.b16 %v301
        %v450 = vunpack.c.l.b16 %v302
        %v451 = vunpack.c.l.b16 %v303
        %v452 = vunpack.c.l.b16 %v304
        %v453 = vunpack.c.l.b16 %v305
        %v454 = vunpack.c.l.b16 %v306
        %v455 = vunpack.c.l.b16 %v307
        %v456 = vunpack.c.l.b16 %v308
        %v457 = vunpack.c.l.b16 %v309
        %v458 = vunpack.c.l.b16 %v310
        %v459 = vunpack.c.l.b16 %v311
        %v460 = vunpack.c.l.b16 %v312
        %v461 = vunpack.c.l.b16 %v313
        %v462 = vunpack.c.l.b16 %v314
        %v463 = vunpack.c.l.b16 %v315
        %v464 = vunpack.c.l.b16 %v316
        %v465 = vunpack.c.l.b16 %v317
        %v466 = vunpack.c.l.b16 %v318
        %v467 = vunpack.c.l.b16 %v319
        %v468 = vunpack.c.l.b16 %v320
        %v469 = vunpack.c.l.b16 %v321
        %v470 = vunpack.c.l.b16 %v322
        %v471 = vunpack.c.l.b16 %v323
        %v472 = vunpack.c.l.b16 %v324
        %v473 = vunpack.c.l.b16 %v325
        %v474 = vunpack.c.l.b16 %v326
        %v475 = vunpack.c.l.b16 %v327
        %v476 = vunpack.c.l.b16 %v328
        %v477 = vunpack.c.l.b16 %v329
        %v478 = vunpack.c.l.b16 %v330
        %v479 = vunpack.c.l.b16 %v331
        %v480 = vunpack.c.l.b16 %v332
        %v481 = vunpack.c.l.b16 %v333
        %v482 = vunpack.c.l.b16 %v334
        %v483 = vunpack.c.l.b16 %v335
        %v484 = vunpack.c.l.b16 %v336
        %v485 = vunpack.c.l.b16 %v337
        %v486 = vunpack.c.l.b16 %v338
        %v487 = vunpack.c.l.b16 %v339
        %v488 = vunpack.c.l.b16 %v340
        %v489 = vunpack.c.l.b16 %v341
        %v490 = vunpack.c.l.b16 %v342
        %v491 = vunpack.c.l.b16 %v343
        %v492 = vunpack.c.l.b16 %v344
        %v493 = vunpack.c.l.b16 %v345
        %v494 = vunpack.c.l.b16 %v346
        %v495 = vunpack.c.l.b16 %v347
        %v496 = vunpack.c.l.b16 %v348
        %v497 = vunpack.c.l.b16 %v349
        %v498 = vunpack.c.l.b16 %v350
        %v499 = vunpack.c.l.b16 %v351
        %v500 = vunpack.c.l.b16 %v352
        %v501 = vpack.c.b16 %v438, %v437
        %v502 = vpack.c.b16 %v440, %v439
        %v503 = vpack.c.b16 %v442, %v441
        %v504 = vpack.c.b16 %v444, %v443
        %v505 = vpack.c.b16 %v446, %v445
        %v506 = vpack.c.b16 %v448, %v447
        %v507 = vpack.c.b16 %v450, %v449
        %v508 = vpack.c.b16 %v452, %v451
        %v509 = vpack.c.b16 %v454, %v453
        %v510 = vpack.c.b16 %v456, %v455
        %v511 = vpack.c.b16 %v458, %v457
        %v512 = vpack.c.b16 %v460, %v459
        %v513 = vpack.c.b16 %v462, %v461
        %v514 = vpack.c.b16 %v464, %v463
        %v515 = vpack.c.b16 %v466, %v465
        %v516 = vpack.c.b16 %v468, %v467
        %v517 = vpack.c.b16 %v470, %v469
        %v518 = vpack.c.b16 %v472, %v471
        %v519 = vpack.c.b16 %v474, %v473
        %v520 = vpack.c.b16 %v476, %v475
        %v521 = vpack.c.b16 %v478, %v477
        %v522 = vpack.c.b16 %v480, %v479
        %v523 = vpack.c.b16 %v482, %v481
        %v524 = vpack.c.b16 %v484, %v483
        %v525 = vpack.c.b16 %v486, %v485
        %v526 = vpack.c.b16 %v488, %v487
        %v527 = vpack.c.b16 %v490, %v489
        %v528 = vpack.c.b16 %v492, %v491
        %v529 = vpack.c.b16 %v494, %v493
        %v530 = vpack.c.b16 %v496, %v495
        %v531 = vpack.c.b16 %v498, %v497
        %v532 = vpack.c.b16 %v500, %v499
        %565 = vmatpush.bf16.msra.mxu0 %v508
        %566 = vmatpush.bf16.msra.mxu0 %v507
        %567 = vmatpush.bf16.msra.mxu0 %v506
        %568 = vmatpush.bf16.msra.mxu0 %v505
        %569 = vmatpush.bf16.msra.mxu0 %v504
        %570 = vmatpush.bf16.msra.mxu0 %v503
        %571 = vmatpush.bf16.msra.mxu0 %v502
        %572 = vmatpush.bf16.msra.mxu0 %v501
        %573 = vmatmul.bf16.gmra.mxu0 %v365
        %v574 = vpop.f32.mrf.mxu0
        %v575 = vadd.f32 0.0, %v574
        %v576 = vpop.f32.mrf.mxu0
        %v577 = vadd.f32 0.0, %v576
        %578 = vdwg.mxu0
        %579 = vmatpush.bf16.msra.mxu0 %v516
        %580 = vmatpush.bf16.msra.mxu0 %v515
        %581 = vmatpush.bf16.msra.mxu0 %v514
        %582 = vmatpush.bf16.msra.mxu0 %v513
        %583 = vmatpush.bf16.msra.mxu0 %v512
        %584 = vmatpush.bf16.msra.mxu0 %v511
        %585 = vmatpush.bf16.msra.mxu0 %v510
        %586 = vmatpush.bf16.msra.mxu0 %v509
        %587 = vmatmul.bf16.gmra.mxu0 %v366
        %v588 = vpop.f32.mrf.mxu0
        %v589 = vadd.f32 %v575, %v588
        %v590 = vpop.f32.mrf.mxu0
        %v591 = vadd.f32 %v577, %v590
        %592 = vdwg.mxu0
        %593 = vmatpush.bf16.msra.mxu0 %v524
        %594 = vmatpush.bf16.msra.mxu0 %v523
        %595 = vmatpush.bf16.msra.mxu0 %v522
        %596 = vmatpush.bf16.msra.mxu0 %v521
        %597 = vmatpush.bf16.msra.mxu0 %v520
        %598 = vmatpush.bf16.msra.mxu0 %v519
        %599 = vmatpush.bf16.msra.mxu0 %v518
        %600 = vmatpush.bf16.msra.mxu0 %v517
        %601 = vmatmul.bf16.gmra.mxu0 %v367
        %v602 = vpop.f32.mrf.mxu0
        %v603 = vadd.f32 %v589, %v602
        %v604 = vpop.f32.mrf.mxu0
        %v605 = vadd.f32 %v591, %v604
        %606 = vdwg.mxu0
        %607 = vmatpush.bf16.msra.mxu0 %v532
        %608 = vmatpush.bf16.msra.mxu0 %v531
        %609 = vmatpush.bf16.msra.mxu0 %v530
        %610 = vmatpush.bf16.msra.mxu0 %v529
        %611 = vmatpush.bf16.msra.mxu0 %v528
        %612 = vmatpush.bf16.msra.mxu0 %v527
        %613 = vmatpush.bf16.msra.mxu0 %v526
        %614 = vmatpush.bf16.msra.mxu0 %v525
        %615 = vmatmul.bf16.gmra.mxu0 %v368
        %v616 = vpop.f32.mrf.mxu0
        %v617 = vadd.f32 %v603, %v616
        %v618 = vpop.f32.mrf.mxu0
        %v619 = vadd.f32 %v605, %v618
        %620 = vdwg.mxu0
        %v621 = vadd.f32 %v283, %v617
        %v622 = vadd.f32 %v284, %v619
        %vm623 = vcmask 7168
        %624 = vst.msk [vmem:[#allocation4] sm:$0xff] %vm623, %v621
        %625 = vst.msk [vmem:[#allocation4 + $0x8] sm:$0xff] %vm623, %v622
        %p626 = scmp.eq.s32.totalorder %s24, 1
        // Predicated region
        $region60: #{_lambda_.15} parent=50 // pred_check
          %p627 = pneg %p626
        $region61: #{_lambda_.15} parent=50 // pred_check_branch
          %629 = sbr.rel (%p627) target = $region63
        $region62: #{_lambda_.15} parent=50 // pred_region
          %v630 = vld [vmem:[#allocation4] sm:$0xff]
          %v631 = vld [vmem:[#allocation4 + $0x8] sm:$0xff]
          %v632 = vld [vmem:[#allocation2] sm:$0x1]
          %v634 = vperm.slane %v632, 0
          %v636 = vadd.f32 %v630, %v634
          %v637 = vadd.f32 %v631, %v634
          %638 = vst.msk [vmem:[#allocation4] sm:$0xff] %vm623, %v636
          %639 = vst.msk [vmem:[#allocation4 + $0x8] sm:$0xff] %vm623, %v637
        $region63: #{_lambda_.15} parent=50 // pred_fallthru
          _
        // Predicated region
        $region64: #{_lambda_.15} parent=50 // pred_check
          %p640 = pneg %p124
        $region65: #{_lambda_.15} parent=50 // pred_check_branch
          %642 = sbr.rel (%p640) target = $region67
        $region66: #{_lambda_.15} parent=50 // pred_region
          %s643 = smul.u32 2, %s23
          %s644 = ssub.s32 1, %s643
          %s645 = smul.u32 8, %s644
          %p646 = scmp.ne.s32.totalorder 0, %s645
          %s647 = smul.addr %s643, 8
          %s648 = scalar_lea.vmem %s3, %s647
          // Predicated region
          $region68: #{_lambda_.15} parent=66 // pred_check
            %p649 = pneg %p646
          $region69: #{_lambda_.15} parent=66 // pred_check_branch
            %651 = sbr.rel (%p649) target = $region71
          $region70: #{_lambda_.15} parent=66 // pred_region
            // Predicated region
            $region72: #{_lambda_.15} parent=70 // pred_check
              _
            $region73: #{_lambda_.15} parent=70 // pred_check_branch
              %653 = sbr.rel (0) target = $region75
            $region74: #{_lambda_.15} parent=70 // pred_region
              // Predicated region
              $region87: #{_lambda_.15} parent=74 // pred_check
                _
              $region88: #{_lambda_.15} parent=74 // pred_check_branch
                %677 = sbr.rel (0) target = $region90
              $region89: #{_lambda_.15} parent=74 // pred_region
                // While loop
                $region91: #{_lambda_.15} parent=89 // loop_pre_header
                  _
                $region92: #{_lambda_.15} parent=89 // loop_header
                  %s679 = sphi 0, %s681
                  %p680 = scmp.ge.s32.totalorder %s679, %s644
                  %s684 = sphi 0, %s691
                  %s685 = sphi [#allocation4], %s694
                  %s686 = sphi %s648, %s695
                $region93: #{_lambda_.15} parent=89 // loop_header_branch
                  %683 = sbr.rel (%p680) target = $region97
                $region94: #{_lambda_.15} parent=89 // loop_body
                  %v687 = vld [vmem:[%s685] sm:$0xff]
                  %688 = vst [vmem:[%s686] sm:$0xff] %v687
                  %s689 = sadd.s32 1, %s684
                  %p690 = scmp.ge.s32.totalorder %s689, %s644
                  %s691 = scalar_select %p690, 0, %s689
                  %s692 = smul.u32 %s691, 8
                  %s693 = smul.u32 %s691, 8
                  %s694 = scalar_lea.vmem [#allocation4], %s692
                  %s695 = scalar_lea.vmem %s648, %s693
                $region95: #{_lambda_.15} parent=89 // loop_footer
                  %s681 = sadd.s32 %s679, 1
                $region96: #{_lambda_.15} parent=89 // loop_footer_branch
                  %678 = sbr.rel target = $region92
                $region97: #{_lambda_.15} parent=89 // loop_exit
                  _
              $region90: #{_lambda_.15} parent=74 // pred_fallthru
                _
              // Predicated region
              $region98: #{_lambda_.15} parent=74 // pred_check
                _
              $region99: #{_lambda_.15} parent=74 // pred_check_branch
                %697 = sbr.rel target = $region101
              $region100: #{_lambda_.15} parent=74 // pred_region
                _
              $region101: #{_lambda_.15} parent=74 // pred_fallthru
                _
            $region75: #{_lambda_.15} parent=70 // pred_fallthru
              _
            // Predicated region
            $region76: #{_lambda_.15} parent=70 // pred_check
              _
            $region77: #{_lambda_.15} parent=70 // pred_check_branch
              %655 = sbr.rel target = $region79
            $region78: #{_lambda_.15} parent=70 // pred_region
              %s657 = ssub.s32 256, 1
              // While loop
              $region80: #{_lambda_.15} parent=78 // loop_pre_header
                _
              $region81: #{_lambda_.15} parent=78 // loop_header
                %s659 = sphi 0, %s661
                %p660 = scmp.ge.s32.totalorder %s659, %s644
                %s664 = sphi 0, %s671
                %s665 = sphi [#allocation4], %s674
                %s666 = sphi %s648, %s675
              $region82: #{_lambda_.15} parent=78 // loop_header_branch
                %663 = sbr.rel (%p660) target = $region86
              $region83: #{_lambda_.15} parent=78 // loop_body
                %v667 = vld [vmem:[%s665] sm:%s657]
                %668 = vst [vmem:[%s666] sm:%s657] %v667
                %s669 = sadd.s32 1, %s664
                %p670 = scmp.ge.s32.totalorder %s669, %s644
                %s671 = scalar_select %p670, 0, %s669
                %s672 = smul.u32 %s671, 8
                %s673 = smul.u32 %s671, 8
                %s674 = scalar_lea.vmem [#allocation4], %s672
                %s675 = scalar_lea.vmem %s648, %s673
              $region84: #{_lambda_.15} parent=78 // loop_footer
                %s661 = sadd.s32 %s659, 1
              $region85: #{_lambda_.15} parent=78 // loop_footer_branch
                %658 = sbr.rel target = $region81
              $region86: #{_lambda_.15} parent=78 // loop_exit
                _
            $region79: #{_lambda_.15} parent=70 // pred_fallthru
              _
          $region71: #{_lambda_.15} parent=66 // pred_fallthru
            _
          %698 = vnop
        $region67: #{_lambda_.15} parent=50 // pred_fallthru
          _
        // Predicated region
        $region102: #{_lambda_.15} parent=50 // pred_check
          %p699 = pneg %p150
        $region103: #{_lambda_.15} parent=50 // pred_check_branch
          %701 = sbr.rel (%p699) target = $region105
        $region104: #{_lambda_.15} parent=50 // pred_region
          %703 = vsyncadd [#allocation6], 0
          %s704 = smul.addr %s23, 8
          %s705 = scalar_lea.hbm %s4, %s704
          %s707 = sshll.u32 [#allocation5], 4
          %s708 = int_to_ptr.vmem [resolvable:$true] %s707
          %s709 = sshll.u32 %s705, 4
          %s710 = int_to_ptr.hbm [resolvable:$true] %s709
          %712 = dma.vmem_to_hbm [thread:$0]  %s708, 128, %s710, [#allocation6]
        $region105: #{_lambda_.15} parent=50 // pred_fallthru
          _
        // Predicated region
        $region106: #{_lambda_.15} parent=50 // pred_check
          %p713 = pneg %p124
        $region107: #{_lambda_.15} parent=50 // pred_check_branch
          %715 = sbr.rel (%p713) target = $region109
        $region108: #{_lambda_.15} parent=50 // pred_region
          _
        $region109: #{_lambda_.15} parent=50 // pred_fallthru
          _
        // Predicated region
        $region110: #{_lambda_.15} parent=50 // pred_check
          %p716 = pneg %p150
        $region111: #{_lambda_.15} parent=50 // pred_check_branch
          %718 = sbr.rel (%p716) target = $region113
        $region112: #{_lambda_.15} parent=50 // pred_region
          %720 = dma.done [#allocation6], 128
        $region113: #{_lambda_.15} parent=50 // pred_fallthru
          _
      $region51: #{_lambda_.15} parent=5 // pred_fallthru
        _
      %p721 = scmp.le.s32.totalorder 2, %s14
      // Predicated region
      $region114: #{_lambda_.15} parent=5 // pred_check
        %p722 = pneg %p721
      $region115: #{_lambda_.15} parent=5 // pred_check_branch
        %724 = sbr.rel (%p722) target = $region117
      $region116: #{_lambda_.15} parent=5 // pred_region
        %s725 = ssub.s32 %s14, 2
      $region117: #{_lambda_.15} parent=5 // pred_fallthru
        _
    $region6: #{_lambda_.15} parent=1 // loop_footer
      %s18 = sadd.s32 1, %s14
    $region7: #{_lambda_.15} parent=1 // loop_footer_branch
      %13 = sbr.rel target = $region3
    $region8: #{_lambda_.15} parent=1 // loop_exit
      _
    %726 = vsyncpa [#allocation6], 1
    %s727 = scalar_lea.sflag [#allocation6], 1
    %728 = vsyncpa %s727, 1

</llo_original>
